<compile_context>
chip_gen: v7x
topology: tpu7x:2x2x1
jax: 0.10.0
libtpu: 0.0.40
codegen_flags: <defaults>
</compile_context>

<pallas_src>
import jax
import jax.numpy as jnp
from jax.experimental import pallas as pl
from jax.experimental.pallas import tpu as pltpu

NUM_ATOM_TYPE = 119
NUM_CHIRALITY_TAG = 3
NUM_BOND_TYPE = 5
NUM_BOND_DIRECTION = 3
EMB_DIM = 300
FEAT_DIM = 512
NUM_LAYER = 5
BN_EPS = 1e-5

EMB_PAD = 384   # 300 -> next multiple of 128 (lane-dense)
HID_PAD = 768   # 600 -> next multiple of 128 (lane-dense)


# ---------------------------------------------------------------------------
# Fused Pallas kernel: 5 GINE layers + mean-pool + feat_lin
# ---------------------------------------------------------------------------
def fused_ginet_kernel(a_ref, h0_ref, eagg_ref, w1_ref, b1_ref, w2_ref, b2_ref,
                       scale_ref, shift_ref, p_ref, fw_ref, fb_ref,
                       out_ref, h_scratch):
    l = pl.program_id(0)

    @pl.when(l == 0)
    def _():
        h_scratch[...] = h0_ref[...]

    h = h_scratch[...]

    # aggregate (sum over incoming edges incl. self loops):
    #   aggr[i] = sum_{j->i} h[j] + sum_{e->i} edge_emb[e]   (edge term precomputed)
    aggr = jnp.dot(a_ref[...], h.astype(jnp.bfloat16),
                   preferred_element_type=jnp.float32) + eagg_ref[...]

    # GINE update MLP: Linear(D, 2D) -> ReLU -> Linear(2D, D)
    z = jnp.dot(aggr.astype(jnp.bfloat16), w1_ref[...],
                preferred_element_type=jnp.float32) + b1_ref[...]
    z = jnp.maximum(z, 0.0)
    z = jnp.dot(z.astype(jnp.bfloat16), w2_ref[...],
                preferred_element_type=jnp.float32) + b2_ref[...]

    # BatchNorm1d (eval mode) fused into per-channel scale/shift
    z = z * scale_ref[...] + shift_ref[...]

    # Next-layer input gets ReLU (layers 0..L-2 in the PyTorch forward); on the last
    # layer this scratch write is dead and the un-ReLU'd z feeds the pooling below.
    h_scratch[...] = jnp.maximum(z, 0.0)

    @pl.when(l == pl.num_programs(0) - 1)
    def _():
        # global mean pool as a dense (B, N) matmul, then feat_lin
        pooled = jnp.dot(p_ref[...], z, preferred_element_type=jnp.float32)
        out_ref[...] = (jnp.dot(pooled.astype(jnp.bfloat16), fw_ref[...],
                                preferred_element_type=jnp.float32) + fb_ref[...])


def fused_forward(a, h0, eagg, w1, b1, w2, b2, scale, shift, p, fw, fb):
    n_pad = a.shape[0]
    b_pad = p.shape[0]

    def full2(shape):           # resident across the layer grid (DMA'd once)
        return pl.BlockSpec(shape, lambda l: (0, 0))

    def stack2(d1, d2):         # per-layer slice of a (NUM_LAYER, d1, d2) stack
        return pl.BlockSpec((None, d1, d2), lambda l: (l, 0, 0))

    grid_spec = pltpu.PrefetchScalarGridSpec(
        num_scalar_prefetch=0,
        grid=(NUM_LAYER,),
        in_specs=[
            full2((n_pad, n_pad)),        # A           (bf16)
            full2((n_pad, EMB_PAD)),      # h0          (f32)
            stack2(n_pad, EMB_PAD),       # edge_agg    (f32, per layer)
            stack2(EMB_PAD, HID_PAD),     # w1          (bf16, per layer)
            stack2(1, HID_PAD),           # b1          (f32, per layer)
            stack2(HID_PAD, EMB_PAD),     # w2          (bf16, per layer)
            stack2(1, EMB_PAD),           # b2          (f32, per layer)
            stack2(1, EMB_PAD),           # bn scale    (f32, per layer)
            stack2(1, EMB_PAD),           # bn shift    (f32, per layer)
            full2((b_pad, n_pad)),        # pooling matrix (f32)
            full2((EMB_PAD, FEAT_DIM)),   # feat_w      (bf16)
            full2((1, FEAT_DIM)),         # feat_b      (f32)
        ],
        out_specs=pl.BlockSpec((b_pad, FEAT_DIM), lambda l: (0, 0)),
        scratch_shapes=[pltpu.VMEM((n_pad, EMB_PAD), jnp.float32)],  # resident h
    )
    return pl.pallas_call(
        fused_ginet_kernel,
        out_shape=jax.ShapeDtypeStruct((b_pad, FEAT_DIM), jnp.float32),
        grid_spec=grid_spec,
        compiler_params=pltpu.CompilerParams(
            dimension_semantics=("arbitrary",),      # sequential layer dependence
            vmem_limit_bytes=48 * 1024 * 1024),      # explicit, fits v5e/v6e/v7x
    )(a, h0, eagg, w1, b1, w2, b2, scale, shift, p, fw, fb)


# ---------------------------------------------------------------------------
# Deterministic parameter construction (PyTorch shapes, then padded + stacked)
# ---------------------------------------------------------------------------
def xavier_uniform(key, shape):
    fan_in, fan_out = shape
    bound = jnp.sqrt(6.0 / (fan_in + fan_out))
    return jax.random.uniform(key, shape, jnp.float32, -bound, bound)


def linear_init(key, fan_in, fan_out):
    kw, kb = jax.random.split(key)
    bound = 1.0 / jnp.sqrt(fan_in)
    w = jax.random.uniform(kw, (fan_in, fan_out), jnp.float32, -bound, bound)
    b = jax.random.uniform(kb, (1, fan_out), jnp.float32, -bound, bound)
    return w, b


def _pad2(x, rows, cols):
    return jnp.pad(x, ((0, rows - x.shape[0]), (0, cols - x.shape[1])))


def init_params(key):
    keys = jax.random.split(key, 4 + NUM_LAYER * 4)
    params = {}
    # node-embedding tables padded to EMB_PAD lanes (extra channels are zero)
    params["x_emb1"] = _pad2(xavier_uniform(keys[0], (NUM_ATOM_TYPE, EMB_DIM)),
                             NUM_ATOM_TYPE, EMB_PAD)
    params["x_emb2"] = _pad2(xavier_uniform(keys[1], (NUM_CHIRALITY_TAG, EMB_DIM)),
                             NUM_CHIRALITY_TAG, EMB_PAD)
    fw, fb = linear_init(keys[2], EMB_DIM, FEAT_DIM)
    params["feat_w"] = _pad2(fw, EMB_PAD, FEAT_DIM).astype(jnp.bfloat16)
    params["feat_b"] = fb

    w1s, b1s, w2s, b2s, scs, shs, e1s, e2s = [], [], [], [], [], [], [], []
    for l in range(NUM_LAYER):
        k0, k1, k2, k3 = keys[4 + 4 * l: 8 + 4 * l]
        w1, b1 = linear_init(k0, EMB_DIM, 2 * EMB_DIM)
        w2, b2 = linear_init(k1, 2 * EMB_DIM, EMB_DIM)
        e1 = xavier_uniform(k2, (NUM_BOND_TYPE, EMB_DIM))
        e2 = xavier_uniform(k3, (NUM_BOND_DIRECTION, EMB_DIM))
        w1s.append(_pad2(w1, EMB_PAD, HID_PAD))
        b1s.append(_pad2(b1, 1, HID_PAD))
        w2s.append(_pad2(w2, HID_PAD, EMB_PAD))
        b2s.append(_pad2(b2, 1, EMB_PAD))
        # BatchNorm1d eval mode: weight=1, bias=0, running_mean=0, running_var=1
        scale = jnp.full((1, EMB_DIM), 1.0 / jnp.sqrt(1.0 + BN_EPS), jnp.float32)
        scs.append(_pad2(scale, 1, EMB_PAD))
        shs.append(jnp.zeros((1, EMB_PAD), jnp.float32))
        e1s.append(_pad2(e1, NUM_BOND_TYPE, EMB_PAD))
        e2s.append(_pad2(e2, NUM_BOND_DIRECTION, EMB_PAD))

    params["w1"] = jnp.stack(w1s).astype(jnp.bfloat16)   # (L, 384, 768)
    params["b1"] = jnp.stack(b1s)                        # (L, 1, 768)
    params["w2"] = jnp.stack(w2s).astype(jnp.bfloat16)   # (L, 768, 384)
    params["b2"] = jnp.stack(b2s)                        # (L, 1, 384)
    params["bn_scale"] = jnp.stack(scs)                  # (L, 1, 384)
    params["bn_shift"] = jnp.stack(shs)                  # (L, 1, 384)
    params["edge_emb1"] = jnp.stack(e1s)                 # (L, 5, 384)
    params["edge_emb2"] = jnp.stack(e2s)                 # (L, 3, 384)
    return params


# ---------------------------------------------------------------------------
# Forward pass (gather/scatter glue in JAX, full hot path in the fused kernel)
# ---------------------------------------------------------------------------
def _round_up(x, m):
    return ((x + m - 1) // m) * m


def ginet_feat_forward(params, x, edge_index, edge_attr, batch, num_graphs):
    n = x.shape[0]
    n_pad = _round_up(max(n, 8), 128)          # lane/MXU-friendly node count
    b_pad = _round_up(max(num_graphs, 1), 8)   # sublane-friendly graph count

    # node embedding lookups (gather glue); padded rows are zero
    h0 = params["x_emb1"][x[:, 0]] + params["x_emb2"][x[:, 1]]
    h0 = jnp.pad(h0, ((0, n_pad - n), (0, 0)))

    # add self loops (GINEConv.forward): self-loop edge_attr = [4, 0]
    src, dst = edge_index[0], edge_index[1]
    ar = jnp.arange(n, dtype=src.dtype)
    src_full = jnp.concatenate([src, ar])
    dst_full = jnp.concatenate([dst, ar])
    ea_full = jnp.concatenate(
        [edge_attr,
         jnp.stack([jnp.full((n,), 4, edge_attr.dtype),
                    jnp.zeros((n,), edge_attr.dtype)], axis=1)], axis=0)

    # dense adjacency A[i, j] = #edges j -> i (source_to_target flow), stored bf16
    # (small integer counts are exactly representable in bf16)
    a = (jnp.zeros((n_pad, n_pad), jnp.float32)
         .at[dst_full, src_full].add(1.0)).astype(jnp.bfloat16)

    # per-layer, per-target-node sum of edge embeddings (independent of h)
    e_emb = (params["edge_emb1"][:, ea_full[:, 0], :]
             + params["edge_emb2"][:, ea_full[:, 1], :])            # (L, E+n, 384)
    eagg = (jnp.zeros((NUM_LAYER, n_pad, EMB_PAD), jnp.float32)
            .at[:, dst_full].add(e_emb))

    # global mean pool as a dense (b_pad, n_pad) matrix; padded nodes masked out
    batch_p = jnp.pad(batch, (0, n_pad - n), constant_values=-1)
    one_hot = (batch_p[None, :] == jnp.arange(b_pad)[:, None]).astype(jnp.float32)
    counts = jnp.maximum(one_hot.sum(axis=1, keepdims=True), 1.0)
    p = one_hot / counts

    out = fused_forward(a, h0, eagg, params["w1"], params["b1"], params["w2"],
                        params["b2"], params["bn_scale"], params["bn_shift"],
                        p, params["feat_w"], params["feat_b"])
    return out[:num_graphs]


if __name__ == "__main__":
    key = jax.random.PRNGKey(0)
    kp, k1, k2, k3, k4, k5 = jax.random.split(key, 6)
    params = init_params(kp)

    N, E, B = 16, 24, 2
    x = jnp.stack([
        jax.random.randint(k1, (N,), 0, NUM_ATOM_TYPE),
        jax.random.randint(k2, (N,), 0, NUM_CHIRALITY_TAG)], axis=1)
    edge_index = jax.random.randint(k3, (2, E), 0, N)
    edge_attr = jnp.stack([
        jax.random.randint(k4, (E,), 0, NUM_BOND_TYPE - 1),  # 4 reserved for self loops
        jax.random.randint(k5, (E,), 0, NUM_BOND_DIRECTION)], axis=1)
    batch = jnp.concatenate([jnp.zeros(N // 2, jnp.int32),
                             jnp.ones(N - N // 2, jnp.int32)])

    out = ginet_feat_forward(params, x, edge_index, edge_attr, batch, B)
    out = jax.block_until_ready(out)
    assert out.shape == (B, FEAT_DIM) and out.dtype == jnp.float32
    assert bool(jnp.all(jnp.isfinite(out)))
    print("KERNEL_OK")
</pallas_src>

<mosaic_0001>
module attributes {stable_mosaic.version = 11 : i64} {
  func.func @fused_ginet_kernel(%arg0: i32, %arg1: memref<128x128xbf16, #tpu.memory_space<vmem>>, %arg2: memref<128x384xf32, #tpu.memory_space<vmem>>, %arg3: memref<1x128x384xf32, #tpu.memory_space<vmem>>, %arg4: memref<1x384x768xbf16, #tpu.memory_space<vmem>>, %arg5: memref<1x1x768xf32, #tpu.memory_space<vmem>>, %arg6: memref<1x768x384xbf16, #tpu.memory_space<vmem>>, %arg7: memref<1x1x384xf32, #tpu.memory_space<vmem>>, %arg8: memref<1x1x384xf32, #tpu.memory_space<vmem>>, %arg9: memref<1x1x384xf32, #tpu.memory_space<vmem>>, %arg10: memref<8x128xf32, #tpu.memory_space<vmem>>, %arg11: memref<384x512xbf16, #tpu.memory_space<vmem>>, %arg12: memref<1x512xf32, #tpu.memory_space<vmem>>, %arg13: memref<8x512xf32, #tpu.memory_space<vmem>>, %arg14: memref<128x384xf32, #tpu.memory_space<vmem>>) attributes {dimension_semantics = [#tpu.dimension_semantics<arbitrary>], iteration_bounds = array<i64: 5>, scalar_prefetch = 0 : i64, scratch_operands = 1 : i64, tpu.core_type = #tpu.core_type<tc>, window_params = [{pipeline_mode = #tpu.pipeline_mode<synchronous>, transform_indices = @transform_0, window_bounds = array<i64: 128, 128>}, {pipeline_mode = #tpu.pipeline_mode<synchronous>, transform_indices = @transform_1, window_bounds = array<i64: 128, 384>}, {transform_indices = @transform_2, window_bounds = array<i64: 1, 128, 384>}, {transform_indices = @transform_3, window_bounds = array<i64: 1, 384, 768>}, {transform_indices = @transform_4, window_bounds = array<i64: 1, 1, 768>}, {transform_indices = @transform_5, window_bounds = array<i64: 1, 768, 384>}, {transform_indices = @transform_6, window_bounds = array<i64: 1, 1, 384>}, {transform_indices = @transform_7, window_bounds = array<i64: 1, 1, 384>}, {transform_indices = @transform_8, window_bounds = array<i64: 1, 1, 384>}, {pipeline_mode = #tpu.pipeline_mode<synchronous>, transform_indices = @transform_9, window_bounds = array<i64: 8, 128>}, {pipeline_mode = #tpu.pipeline_mode<synchronous>, transform_indices = @transform_10, window_bounds = array<i64: 384, 512>}, {pipeline_mode = #tpu.pipeline_mode<synchronous>, transform_indices = @transform_11, window_bounds = array<i64: 1, 512>}, {pipeline_mode = #tpu.pipeline_mode<synchronous>, transform_indices = @transform_12, window_bounds = array<i64: 8, 512>}]} {
    %c0_i32 = arith.constant 0 : i32
    %0 = arith.cmpi eq, %arg0, %c0_i32 : i32
    %1 = arith.extui %0 : i1 to i32
    %c0_i32_0 = arith.constant 0 : i32
    %2 = arith.cmpi ne, %1, %c0_i32_0 : i32
    scf.if %2 {
      %c0_32 = arith.constant 0 : index
      %c0_33 = arith.constant 0 : index
      %42 = vector.load %arg2[%c0_32, %c0_33] : memref<128x384xf32, #tpu.memory_space<vmem>>, vector<128x384xf32>
      %c0_34 = arith.constant 0 : index
      %c0_35 = arith.constant 0 : index
      %43 = vector.load %arg14[%c0_34, %c0_35] : memref<128x384xf32, #tpu.memory_space<vmem>>, vector<128x384xf32>
      tpu.vector_store %arg14[%c0_34, %c0_35], %42 {strides = array<i32>} : memref<128x384xf32, #tpu.memory_space<vmem>>, vector<128x384xf32>,
    } else {
    }
    %c0 = arith.constant 0 : index
    %c0_1 = arith.constant 0 : index
    %3 = vector.load %arg14[%c0, %c0_1] : memref<128x384xf32, #tpu.memory_space<vmem>>, vector<128x384xf32>
    %c0_2 = arith.constant 0 : index
    %c0_3 = arith.constant 0 : index
    %4 = vector.load %arg1[%c0_2, %c0_3] : memref<128x128xbf16, #tpu.memory_space<vmem>>, vector<128x128xbf16>
    %5 = arith.truncf %3 : vector<128x384xf32> to vector<128x384xbf16>
    %cst = arith.constant dense<0.000000e+00> : vector<128x384xf32>
    %6 = tpu.matmul %4, %5, %cst {dimension_numbers = #tpu.dot_dimension_numbers<[1], [0], [0], [1], [0, 0, 1, 1], [], []>} : vector<128x128xbf16>, vector<128x384xbf16>, vector<128x384xf32> -> vector<128x384xf32>
    %c0_4 = arith.constant 0 : index
    %c0_5 = arith.constant 0 : index
    %c0_6 = arith.constant 0 : index
    %7 = vector.load %arg3[%c0_4, %c0_5, %c0_6] : memref<1x128x384xf32, #tpu.memory_space<vmem>>, vector<1x128x384xf32>
    %8 = vector.shape_cast %7 : vector<1x128x384xf32> to vector<128x384xf32>
    %9 = arith.addf %6, %8 : vector<128x384xf32>
    %10 = arith.truncf %9 : vector<128x384xf32> to vector<128x384xbf16>
    %c0_7 = arith.constant 0 : index
    %c0_8 = arith.constant 0 : index
    %c0_9 = arith.constant 0 : index
    %11 = vector.load %arg4[%c0_7, %c0_8, %c0_9] : memref<1x384x768xbf16, #tpu.memory_space<vmem>>, vector<1x384x768xbf16>
    %12 = vector.shape_cast %11 : vector<1x384x768xbf16> to vector<384x768xbf16>
    %cst_10 = arith.constant dense<0.000000e+00> : vector<128x768xf32>
    %13 = tpu.matmul %10, %12, %cst_10 {dimension_numbers = #tpu.dot_dimension_numbers<[1], [0], [0], [1], [0, 0, 1, 1], [], []>} : vector<128x384xbf16>, vector<384x768xbf16>, vector<128x768xf32> -> vector<128x768xf32>
    %c0_11 = arith.constant 0 : index
    %c0_12 = arith.constant 0 : index
    %c0_13 = arith.constant 0 : index
    %14 = vector.load %arg5[%c0_11, %c0_12, %c0_13] : memref<1x1x768xf32, #tpu.memory_space<vmem>>, vector<1x1x768xf32>
    %15 = vector.shape_cast %14 : vector<1x1x768xf32> to vector<1x768xf32>
    %16 = vector.broadcast %15 : vector<1x768xf32> to vector<128x768xf32>
    %17 = arith.addf %13, %16 : vector<128x768xf32>
    %cst_14 = arith.constant 0.000000e+00 : f32
    %18 = vector.broadcast %cst_14 : f32 to vector<128x768xf32>
    %19 = arith.maximumf %17, %18 : vector<128x768xf32>
    %20 = arith.truncf %19 : vector<128x768xf32> to vector<128x768xbf16>
    %c0_15 = arith.constant 0 : index
    %c0_16 = arith.constant 0 : index
    %c0_17 = arith.constant 0 : index
    %21 = vector.load %arg6[%c0_15, %c0_16, %c0_17] : memref<1x768x384xbf16, #tpu.memory_space<vmem>>, vector<1x768x384xbf16>
    %22 = vector.shape_cast %21 : vector<1x768x384xbf16> to vector<768x384xbf16>
    %cst_18 = arith.constant dense<0.000000e+00> : vector<128x384xf32>
    %23 = tpu.matmul %20, %22, %cst_18 {dimension_numbers = #tpu.dot_dimension_numbers<[1], [0], [0], [1], [0, 0, 1, 1], [], []>} : vector<128x768xbf16>, vector<768x384xbf16>, vector<128x384xf32> -> vector<128x384xf32>
    %c0_19 = arith.constant 0 : index
    %c0_20 = arith.constant 0 : index
    %c0_21 = arith.constant 0 : index
    %24 = vector.load %arg7[%c0_19, %c0_20, %c0_21] : memref<1x1x384xf32, #tpu.memory_space<vmem>>, vector<1x1x384xf32>
    %25 = vector.shape_cast %24 : vector<1x1x384xf32> to vector<1x384xf32>
    %26 = vector.broadcast %25 : vector<1x384xf32> to vector<128x384xf32>
    %27 = arith.addf %23, %26 : vector<128x384xf32>
    %c0_22 = arith.constant 0 : index
    %c0_23 = arith.constant 0 : index
    %c0_24 = arith.constant 0 : index
    %28 = vector.load %arg8[%c0_22, %c0_23, %c0_24] : memref<1x1x384xf32, #tpu.memory_space<vmem>>, vector<1x1x384xf32>
    %29 = vector.shape_cast %28 : vector<1x1x384xf32> to vector<1x384xf32>
    %30 = vector.broadcast %29 : vector<1x384xf32> to vector<128x384xf32>
    %31 = arith.mulf %27, %30 : vector<128x384xf32>
    %c0_25 = arith.constant 0 : index
    %c0_26 = arith.constant 0 : index
    %c0_27 = arith.constant 0 : index
    %32 = vector.load %arg9[%c0_25, %c0_26, %c0_27] : memref<1x1x384xf32, #tpu.memory_space<vmem>>, vector<1x1x384xf32>
    %33 = vector.shape_cast %32 : vector<1x1x384xf32> to vector<1x384xf32>
    %34 = vector.broadcast %33 : vector<1x384xf32> to vector<128x384xf32>
    %35 = arith.addf %31, %34 : vector<128x384xf32>
    %cst_28 = arith.constant 0.000000e+00 : f32
    %36 = vector.broadcast %cst_28 : f32 to vector<128x384xf32>
    %37 = arith.maximumf %35, %36 : vector<128x384xf32>
    %c0_29 = arith.constant 0 : index
    %c0_30 = arith.constant 0 : index
    %38 = vector.load %arg14[%c0_29, %c0_30] : memref<128x384xf32, #tpu.memory_space<vmem>>, vector<128x384xf32>
    tpu.vector_store %arg14[%c0_29, %c0_30], %37 {strides = array<i32>} : memref<128x384xf32, #tpu.memory_space<vmem>>, vector<128x384xf32>,
    %c4_i32 = arith.constant 4 : i32
    %39 = arith.cmpi eq, %arg0, %c4_i32 : i32
    %40 = arith.extui %39 : i1 to i32
    %c0_i32_31 = arith.constant 0 : i32
    %41 = arith.cmpi ne, %40, %c0_i32_31 : i32
    scf.if %41 {
      %c0_32 = arith.constant 0 : index
      %c0_33 = arith.constant 0 : index
      %42 = vector.load %arg10[%c0_32, %c0_33] : memref<8x128xf32, #tpu.memory_space<vmem>>, vector<8x128xf32>
      %cst_34 = arith.constant dense<0.000000e+00> : vector<8x384xf32>
      %43 = tpu.matmul %42, %35, %cst_34 {dimension_numbers = #tpu.dot_dimension_numbers<[1], [0], [0], [1], [0, 0, 1, 1], [], []>} : vector<8x128xf32>, vector<128x384xf32>, vector<8x384xf32> -> vector<8x384xf32>
      %44 = arith.truncf %43 : vector<8x384xf32> to vector<8x384xbf16>
      %c0_35 = arith.constant 0 : index
      %c0_36 = arith.constant 0 : index
      %45 = vector.load %arg11[%c0_35, %c0_36] : memref<384x512xbf16, #tpu.memory_space<vmem>>, vector<384x512xbf16>
      %cst_37 = arith.constant dense<0.000000e+00> : vector<8x512xf32>
      %46 = tpu.matmul %44, %45, %cst_37 {dimension_numbers = #tpu.dot_dimension_numbers<[1], [0], [0], [1], [0, 0, 1, 1], [], []>} : vector<8x384xbf16>, vector<384x512xbf16>, vector<8x512xf32> -> vector<8x512xf32>
      %c0_38 = arith.constant 0 : index
      %c0_39 = arith.constant 0 : index
      %47 = vector.load %arg12[%c0_38, %c0_39] : memref<1x512xf32, #tpu.memory_space<vmem>>, vector<1x512xf32>
      %48 = vector.broadcast %47 : vector<1x512xf32> to vector<8x512xf32>
      %49 = arith.addf %46, %48 : vector<8x512xf32>
      %c0_40 = arith.constant 0 : index
      %c0_41 = arith.constant 0 : index
      %50 = vector.load %arg13[%c0_40, %c0_41] : memref<8x512xf32, #tpu.memory_space<vmem>>, vector<8x512xf32>
      tpu.vector_store %arg13[%c0_40, %c0_41], %49 {strides = array<i32>} : memref<8x512xf32, #tpu.memory_space<vmem>>, vector<8x512xf32>,
    } else {
    }
    return
  }
  func.func @transform_0(%arg0: i32) -> (i32, i32) {
    %c0_i32 = arith.constant 0 : i32
    %c0_i32_0 = arith.constant 0 : i32
    %c0_i32_1 = arith.constant 0 : i32
    return %c0_i32, %c0_i32_0 : i32, i32
  }
  func.func @transform_1(%arg0: i32) -> (i32, i32) {
    %c0_i32 = arith.constant 0 : i32
    %c0_i32_0 = arith.constant 0 : i32
    %c0_i32_1 = arith.constant 0 : i32
    return %c0_i32, %c0_i32_0 : i32, i32
  }
  func.func @transform_2(%arg0: i32) -> (i32, i32, i32) {
    %c0_i32 = arith.constant 0 : i32
    %c0_i32_0 = arith.constant 0 : i32
    %c0_i32_1 = arith.constant 0 : i32
    return %arg0, %c0_i32, %c0_i32_0 : i32, i32, i32
  }
  func.func @transform_3(%arg0: i32) -> (i32, i32, i32) {
    %c0_i32 = arith.constant 0 : i32
    %c0_i32_0 = arith.constant 0 : i32
    %c0_i32_1 = arith.constant 0 : i32
    return %arg0, %c0_i32, %c0_i32_0 : i32, i32, i32
  }
  func.func @transform_4(%arg0: i32) -> (i32, i32, i32) {
    %c0_i32 = arith.constant 0 : i32
    %c0_i32_0 = arith.constant 0 : i32
    %c0_i32_1 = arith.constant 0 : i32
    return %arg0, %c0_i32, %c0_i32_0 : i32, i32, i32
  }
  func.func @transform_5(%arg0: i32) -> (i32, i32, i32) {
    %c0_i32 = arith.constant 0 : i32
    %c0_i32_0 = arith.constant 0 : i32
    %c0_i32_1 = arith.constant 0 : i32
    return %arg0, %c0_i32, %c0_i32_0 : i32, i32, i32
  }
  func.func @transform_6(%arg0: i32) -> (i32, i32, i32) {
    %c0_i32 = arith.constant 0 : i32
    %c0_i32_0 = arith.constant 0 : i32
    %c0_i32_1 = arith.constant 0 : i32
    return %arg0, %c0_i32, %c0_i32_0 : i32, i32, i32
  }
  func.func @transform_7(%arg0: i32) -> (i32, i32, i32) {
    %c0_i32 = arith.constant 0 : i32
    %c0_i32_0 = arith.constant 0 : i32
    %c0_i32_1 = arith.constant 0 : i32
    return %arg0, %c0_i32, %c0_i32_0 : i32, i32, i32
  }
  func.func @transform_8(%arg0: i32) -> (i32, i32, i32) {
    %c0_i32 = arith.constant 0 : i32
    %c0_i32_0 = arith.constant 0 : i32
    %c0_i32_1 = arith.constant 0 : i32
    return %arg0, %c0_i32, %c0_i32_0 : i32, i32, i32
  }
  func.func @transform_9(%arg0: i32) -> (i32, i32) {
    %c0_i32 = arith.constant 0 : i32
    %c0_i32_0 = arith.constant 0 : i32
    %c0_i32_1 = arith.constant 0 : i32
    return %c0_i32, %c0_i32_0 : i32, i32
  }
  func.func @transform_10(%arg0: i32) -> (i32, i32) {
    %c0_i32 = arith.constant 0 : i32
    %c0_i32_0 = arith.constant 0 : i32
    %c0_i32_1 = arith.constant 0 : i32
    return %c0_i32, %c0_i32_0 : i32, i32
  }
  func.func @transform_11(%arg0: i32) -> (i32, i32) {
    %c0_i32 = arith.constant 0 : i32
    %c0_i32_0 = arith.constant 0 : i32
    %c0_i32_1 = arith.constant 0 : i32
    return %c0_i32, %c0_i32_0 : i32, i32
  }
  func.func @transform_12(%arg0: i32) -> (i32, i32) {
    %c0_i32 = arith.constant 0 : i32
    %c0_i32_0 = arith.constant 0 : i32
    %c0_i32_1 = arith.constant 0 : i32
    return %c0_i32, %c0_i32_0 : i32, i32
  }
}

</mosaic_0001>

<llo_original>
// kernel: tpu_custom_call.1
$region0: #{tpu_custom_call.1}
  #allocation0 [shape = 'u32[]', space=smem, size = 0x4, offset = 0x4, fixed_abs, tag = 'smem constant byte address 0x4 - core index']
  #allocation1 [shape = 'u32[144,128]{1,0:T(1,128)}', space=vmem, size = 0x12000, scoped, tag = 'internal scratch']
  #allocation2 [shape = 'f32[128,384]{1,0:T(8,128)}', space=vmem, size = 0x30000, scoped, tag = 'scratch operand']
  %s0 = inlined_call_operand.hbm [shape: bf16[128,128], index: 0, kind: input, shape index: {}]
  %s1 = inlined_call_operand.hbm [shape: f32[128,384], index: 1, kind: input, shape index: {}]
  %s2 = inlined_call_operand.hbm [shape: f32[5,128,384], index: 2, kind: input, shape index: {}]
  %s3 = inlined_call_operand.hbm [shape: bf16[5,384,768], index: 3, kind: input, shape index: {}]
  %s4 = inlined_call_operand.hbm [shape: f32[5,1,768], index: 4, kind: input, shape index: {}]
  %s5 = inlined_call_operand.hbm [shape: bf16[5,768,384], index: 5, kind: input, shape index: {}]
  %s6 = inlined_call_operand.hbm [shape: f32[5,1,384], index: 6, kind: input, shape index: {}]
  %s7 = inlined_call_operand.hbm [shape: f32[5,1,384], index: 7, kind: input, shape index: {}]
  %s8 = inlined_call_operand.hbm [shape: f32[5,1,384], index: 8, kind: input, shape index: {}]
  %s9 = inlined_call_operand.hbm [shape: f32[8,128], index: 9, kind: input, shape index: {}]
  %s10 = inlined_call_operand.hbm [shape: bf16[384,512], index: 10, kind: input, shape index: {}]
  %s11 = inlined_call_operand.hbm [shape: f32[1,512], index: 11, kind: input, shape index: {}]
  %s12 = inlined_call_operand.hbm [shape: f32[8,512], index: 12, kind: output, shape index: {}]
  %s13 = sld [smem:[#allocation0]]
  $region137: #{tpu_custom_call.1} parent=0
    _
  %s15 = ssub.s32 1, %s13
  %s16 = scalar_select 0, %s15, %s13
  $region1: #{tpu_custom_call.1} parent=0
    #allocation3 [shape = 'u8[32768]{0}', space=vmem, size = 0x8000, scoped, tag = 'input window, operand 0, single buffered']
    #allocation4 [shape = 's32[2]{0}', space=sflag, size = 0x8, scoped, tag = 'scoped memory for tpu_custom_call.1']
    #allocation5 [shape = 's32[2]{0}', space=sflag, size = 0x8, scoped, tag = 'scoped memory for tpu_custom_call.1']
    #allocation6 [shape = 'u8[196608]{0}', space=vmem, size = 0x30000, scoped, tag = 'input window, operand 1, single buffered']
    #allocation7 [shape = 's32[1]{0}', space=sflag, size = 0x4, scoped, tag = 'scoped memory for tpu_custom_call.1']
    #allocation8 [shape = 'u8[393216]{0}', space=vmem, size = 0x60000, scoped, tag = 'input window, operand 2']
    #allocation9 [shape = 'u8[1179648]{0}', space=vmem, size = 0x120000, scoped, tag = 'input window, operand 3']
    #allocation10 [shape = 'u8[6144]{0}', space=vmem, size = 0x1800, scoped, tag = 'input window, operand 4']
    #allocation11 [shape = 'u8[1179648]{0}', space=vmem, size = 0x120000, scoped, tag = 'input window, operand 5']
    #allocation12 [shape = 'u8[3072]{0}', space=vmem, size = 0xc00, scoped, tag = 'input window, operand 6']
    #allocation13 [shape = 'u8[3072]{0}', space=vmem, size = 0xc00, scoped, tag = 'input window, operand 7']
    #allocation14 [shape = 'u8[3072]{0}', space=vmem, size = 0xc00, scoped, tag = 'input window, operand 8']
    #allocation15 [shape = 'u8[4096]{0}', space=vmem, size = 0x1000, scoped, tag = 'input window, operand 9, single buffered']
    #allocation16 [shape = 'u8[393216]{0}', space=vmem, size = 0x60000, scoped, tag = 'input window, operand 10, single buffered']
    #allocation17 [shape = 's32[1]{0}', space=sflag, size = 0x4, scoped, tag = 'scoped memory for tpu_custom_call.1']
    #allocation18 [shape = 'u8[2048]{0}', space=vmem, size = 0x800, scoped, tag = 'input window, operand 11, single buffered']
    #allocation19 [shape = 'u8[16384]{0}', space=vmem, size = 0x4000, scoped, tag = 'output window, operand 0, single buffered']
    %17 = vsyncpa [#allocation4], 0
    %18 = vsyncpa [#allocation7], 0
    %19 = vsyncpa [#allocation17], 0
    %20 = vsyncpa [#allocation5], 0
    loop: start=0, step=1, limit=7
    $region2: #{tpu_custom_call.1} parent=1 // loop_pre_header
      _
    $region3: #{tpu_custom_call.1} parent=1 // loop_header
      %s22 = sphi 0, %s26
      %p23 = scmp.ge.s32.totalorder %s22, 7
      %s30 = sphi 0, %s30
      %s32 = sphi 0, %s30
      %s33 = sphi 0, %s32
      %s47 = sphi 0, %s33
      %s51 = sphi 0, %s51
      %s53 = sphi 0, %s51
      %s54 = sphi 0, %s53
      %s68 = sphi 0, %s54
      %s74 = sphi 0, %s76
      %s77 = sphi 0, %s74
      %s78 = sphi 0, %s77
      %s94 = sphi 0, %s78
      %s100 = sphi 0, %s102
      %s103 = sphi 0, %s100
      %s104 = sphi 0, %s103
      %s120 = sphi 0, %s104
      %s126 = sphi 0, %s128
      %s129 = sphi 0, %s126
      %s130 = sphi 0, %s129
      %s146 = sphi 0, %s130
      %s152 = sphi 0, %s154
      %s155 = sphi 0, %s152
      %s156 = sphi 0, %s155
      %s172 = sphi 0, %s156
      %s178 = sphi 0, %s180
      %s181 = sphi 0, %s178
      %s182 = sphi 0, %s181
      %s198 = sphi 0, %s182
      %s204 = sphi 0, %s206
      %s207 = sphi 0, %s204
      %s208 = sphi 0, %s207
      %s224 = sphi 0, %s208
      %s230 = sphi 0, %s232
      %s233 = sphi 0, %s230
      %s234 = sphi 0, %s233
      %s250 = sphi 0, %s234
      %s254 = sphi 0, %s254
      %s256 = sphi 0, %s254
      %s257 = sphi 0, %s256
      %s271 = sphi 0, %s257
      %s275 = sphi 0, %s275
      %s277 = sphi 0, %s275
      %s278 = sphi 0, %s277
      %s292 = sphi 0, %s278
      %s296 = sphi 0, %s296
      %s298 = sphi 0, %s296
      %s299 = sphi 0, %s298
      %s313 = sphi 0, %s299
      %s317 = sphi 0, %s317
      %s319 = sphi 0, %s317
      %s320 = sphi 0, %s319
      %s334 = sphi 0, %s320
    $region4: #{tpu_custom_call.1} parent=1 // loop_header_branch
      %25 = sbr.rel (%p23) target = $region8
    $region5: #{tpu_custom_call.1} parent=1 // loop_body
      %s27 = ssub.s32 %s22, 1
      %s28 = ssub.s32 %s22, 2
      %s29 = sadd.s32 %s22, 1
      %s31 = sadd.s32 %s30, 1
      %p34 = scmp.eq.s32.totalorder %s22, 4
      %p35 = scmp.ne.s32.totalorder %s30, %s32
      %p36 = scmp.eq.s32.totalorder %s22, 0
      %p37 = por %p35, %p36
      %p38 = scmp.ne.s32.totalorder %s30, %s32
      %p39 = scmp.eq.s32.totalorder %s27, 4
      %p40 = por %p38, %p39
      %p41 = scmp.ne.s32.totalorder %s32, %s33
      %p42 = scmp.eq.s32.totalorder %s27, 0
      %p43 = por %p41, %p42
      %p44 = scmp.ne.s32.totalorder %s32, %s33
      %p45 = scmp.eq.s32.totalorder %s28, 4
      %p46 = por %p44, %p45
      %p48 = scmp.ne.s32.totalorder %s33, %s47
      %p49 = scmp.eq.s32.totalorder %s28, 0
      %p50 = por %p48, %p49
      %s52 = sadd.s32 %s51, 1
      %p55 = scmp.eq.s32.totalorder %s22, 4
      %p56 = scmp.ne.s32.totalorder %s51, %s53
      %p57 = scmp.eq.s32.totalorder %s22, 0
      %p58 = por %p56, %p57
      %p59 = scmp.ne.s32.totalorder %s51, %s53
      %p60 = scmp.eq.s32.totalorder %s27, 4
      %p61 = por %p59, %p60
      %p62 = scmp.ne.s32.totalorder %s53, %s54
      %p63 = scmp.eq.s32.totalorder %s27, 0
      %p64 = por %p62, %p63
      %p65 = scmp.ne.s32.totalorder %s53, %s54
      %p66 = scmp.eq.s32.totalorder %s28, 4
      %p67 = por %p65, %p66
      %p69 = scmp.ne.s32.totalorder %s54, %s68
      %p70 = scmp.eq.s32.totalorder %s28, 0
      %p71 = por %p69, %p70
      %s72 = ssub.s32 %s22, %s29
      %p73 = scmp.eq.s32.totalorder %s72, 0
      %s75 = sadd.s32 %s74, 1
      %s76 = scalar_select %p73, %s74, %s75
      %p79 = pneg %p73
      %p80 = scmp.eq.s32.totalorder %s22, 4
      %p81 = por %p79, %p80
      %p82 = scmp.ne.s32.totalorder %s74, %s77
      %p83 = scmp.eq.s32.totalorder %s22, 0
      %p84 = por %p82, %p83
      %p85 = scmp.ne.s32.totalorder %s74, %s77
      %p86 = scmp.eq.s32.totalorder %s27, 4
      %p87 = por %p85, %p86
      %p88 = scmp.ne.s32.totalorder %s77, %s78
      %p89 = scmp.eq.s32.totalorder %s27, 0
      %p90 = por %p88, %p89
      %p91 = scmp.ne.s32.totalorder %s77, %s78
      %p92 = scmp.eq.s32.totalorder %s28, 4
      %p93 = por %p91, %p92
      %p95 = scmp.ne.s32.totalorder %s78, %s94
      %p96 = scmp.eq.s32.totalorder %s28, 0
      %p97 = por %p95, %p96
      %s98 = ssub.s32 %s22, %s29
      %p99 = scmp.eq.s32.totalorder %s98, 0
      %s101 = sadd.s32 %s100, 1
      %s102 = scalar_select %p99, %s100, %s101
      %p105 = pneg %p99
      %p106 = scmp.eq.s32.totalorder %s22, 4
      %p107 = por %p105, %p106
      %p108 = scmp.ne.s32.totalorder %s100, %s103
      %p109 = scmp.eq.s32.totalorder %s22, 0
      %p110 = por %p108, %p109
      %p111 = scmp.ne.s32.totalorder %s100, %s103
      %p112 = scmp.eq.s32.totalorder %s27, 4
      %p113 = por %p111, %p112
      %p114 = scmp.ne.s32.totalorder %s103, %s104
      %p115 = scmp.eq.s32.totalorder %s27, 0
      %p116 = por %p114, %p115
      %p117 = scmp.ne.s32.totalorder %s103, %s104
      %p118 = scmp.eq.s32.totalorder %s28, 4
      %p119 = por %p117, %p118
      %p121 = scmp.ne.s32.totalorder %s104, %s120
      %p122 = scmp.eq.s32.totalorder %s28, 0
      %p123 = por %p121, %p122
      %s124 = ssub.s32 %s22, %s29
      %p125 = scmp.eq.s32.totalorder %s124, 0
      %s127 = sadd.s32 %s126, 1
      %s128 = scalar_select %p125, %s126, %s127
      %p131 = pneg %p125
      %p132 = scmp.eq.s32.totalorder %s22, 4
      %p133 = por %p131, %p132
      %p134 = scmp.ne.s32.totalorder %s126, %s129
      %p135 = scmp.eq.s32.totalorder %s22, 0
      %p136 = por %p134, %p135
      %p137 = scmp.ne.s32.totalorder %s126, %s129
      %p138 = scmp.eq.s32.totalorder %s27, 4
      %p139 = por %p137, %p138
      %p140 = scmp.ne.s32.totalorder %s129, %s130
      %p141 = scmp.eq.s32.totalorder %s27, 0
      %p142 = por %p140, %p141
      %p143 = scmp.ne.s32.totalorder %s129, %s130
      %p144 = scmp.eq.s32.totalorder %s28, 4
      %p145 = por %p143, %p144
      %p147 = scmp.ne.s32.totalorder %s130, %s146
      %p148 = scmp.eq.s32.totalorder %s28, 0
      %p149 = por %p147, %p148
      %s150 = ssub.s32 %s22, %s29
      %p151 = scmp.eq.s32.totalorder %s150, 0
      %s153 = sadd.s32 %s152, 1
      %s154 = scalar_select %p151, %s152, %s153
      %p157 = pneg %p151
      %p158 = scmp.eq.s32.totalorder %s22, 4
      %p159 = por %p157, %p158
      %p160 = scmp.ne.s32.totalorder %s152, %s155
      %p161 = scmp.eq.s32.totalorder %s22, 0
      %p162 = por %p160, %p161
      %p163 = scmp.ne.s32.totalorder %s152, %s155
      %p164 = scmp.eq.s32.totalorder %s27, 4
      %p165 = por %p163, %p164
      %p166 = scmp.ne.s32.totalorder %s155, %s156
      %p167 = scmp.eq.s32.totalorder %s27, 0
      %p168 = por %p166, %p167
      %p169 = scmp.ne.s32.totalorder %s155, %s156
      %p170 = scmp.eq.s32.totalorder %s28, 4
      %p171 = por %p169, %p170
      %p173 = scmp.ne.s32.totalorder %s156, %s172
      %p174 = scmp.eq.s32.totalorder %s28, 0
      %p175 = por %p173, %p174
      %s176 = ssub.s32 %s22, %s29
      %p177 = scmp.eq.s32.totalorder %s176, 0
      %s179 = sadd.s32 %s178, 1
      %s180 = scalar_select %p177, %s178, %s179
      %p183 = pneg %p177
      %p184 = scmp.eq.s32.totalorder %s22, 4
      %p185 = por %p183, %p184
      %p186 = scmp.ne.s32.totalorder %s178, %s181
      %p187 = scmp.eq.s32.totalorder %s22, 0
      %p188 = por %p186, %p187
      %p189 = scmp.ne.s32.totalorder %s178, %s181
      %p190 = scmp.eq.s32.totalorder %s27, 4
      %p191 = por %p189, %p190
      %p192 = scmp.ne.s32.totalorder %s181, %s182
      %p193 = scmp.eq.s32.totalorder %s27, 0
      %p194 = por %p192, %p193
      %p195 = scmp.ne.s32.totalorder %s181, %s182
      %p196 = scmp.eq.s32.totalorder %s28, 4
      %p197 = por %p195, %p196
      %p199 = scmp.ne.s32.totalorder %s182, %s198
      %p200 = scmp.eq.s32.totalorder %s28, 0
      %p201 = por %p199, %p200
      %s202 = ssub.s32 %s22, %s29
      %p203 = scmp.eq.s32.totalorder %s202, 0
      %s205 = sadd.s32 %s204, 1
      %s206 = scalar_select %p203, %s204, %s205
      %p209 = pneg %p203
      %p210 = scmp.eq.s32.totalorder %s22, 4
      %p211 = por %p209, %p210
      %p212 = scmp.ne.s32.totalorder %s204, %s207
      %p213 = scmp.eq.s32.totalorder %s22, 0
      %p214 = por %p212, %p213
      %p215 = scmp.ne.s32.totalorder %s204, %s207
      %p216 = scmp.eq.s32.totalorder %s27, 4
      %p217 = por %p215, %p216
      %p218 = scmp.ne.s32.totalorder %s207, %s208
      %p219 = scmp.eq.s32.totalorder %s27, 0
      %p220 = por %p218, %p219
      %p221 = scmp.ne.s32.totalorder %s207, %s208
      %p222 = scmp.eq.s32.totalorder %s28, 4
      %p223 = por %p221, %p222
      %p225 = scmp.ne.s32.totalorder %s208, %s224
      %p226 = scmp.eq.s32.totalorder %s28, 0
      %p227 = por %p225, %p226
      %s228 = ssub.s32 %s22, %s29
      %p229 = scmp.eq.s32.totalorder %s228, 0
      %s231 = sadd.s32 %s230, 1
      %s232 = scalar_select %p229, %s230, %s231
      %p235 = pneg %p229
      %p236 = scmp.eq.s32.totalorder %s22, 4
      %p237 = por %p235, %p236
      %p238 = scmp.ne.s32.totalorder %s230, %s233
      %p239 = scmp.eq.s32.totalorder %s22, 0
      %p240 = por %p238, %p239
      %p241 = scmp.ne.s32.totalorder %s230, %s233
      %p242 = scmp.eq.s32.totalorder %s27, 4
      %p243 = por %p241, %p242
      %p244 = scmp.ne.s32.totalorder %s233, %s234
      %p245 = scmp.eq.s32.totalorder %s27, 0
      %p246 = por %p244, %p245
      %p247 = scmp.ne.s32.totalorder %s233, %s234
      %p248 = scmp.eq.s32.totalorder %s28, 4
      %p249 = por %p247, %p248
      %p251 = scmp.ne.s32.totalorder %s234, %s250
      %p252 = scmp.eq.s32.totalorder %s28, 0
      %p253 = por %p251, %p252
      %s255 = sadd.s32 %s254, 1
      %p258 = scmp.eq.s32.totalorder %s22, 4
      %p259 = scmp.ne.s32.totalorder %s254, %s256
      %p260 = scmp.eq.s32.totalorder %s22, 0
      %p261 = por %p259, %p260
      %p262 = scmp.ne.s32.totalorder %s254, %s256
      %p263 = scmp.eq.s32.totalorder %s27, 4
      %p264 = por %p262, %p263
      %p265 = scmp.ne.s32.totalorder %s256, %s257
      %p266 = scmp.eq.s32.totalorder %s27, 0
      %p267 = por %p265, %p266
      %p268 = scmp.ne.s32.totalorder %s256, %s257
      %p269 = scmp.eq.s32.totalorder %s28, 4
      %p270 = por %p268, %p269
      %p272 = scmp.ne.s32.totalorder %s257, %s271
      %p273 = scmp.eq.s32.totalorder %s28, 0
      %p274 = por %p272, %p273
      %s276 = sadd.s32 %s275, 1
      %p279 = scmp.eq.s32.totalorder %s22, 4
      %p280 = scmp.ne.s32.totalorder %s275, %s277
      %p281 = scmp.eq.s32.totalorder %s22, 0
      %p282 = por %p280, %p281
      %p283 = scmp.ne.s32.totalorder %s275, %s277
      %p284 = scmp.eq.s32.totalorder %s27, 4
      %p285 = por %p283, %p284
      %p286 = scmp.ne.s32.totalorder %s277, %s278
      %p287 = scmp.eq.s32.totalorder %s27, 0
      %p288 = por %p286, %p287
      %p289 = scmp.ne.s32.totalorder %s277, %s278
      %p290 = scmp.eq.s32.totalorder %s28, 4
      %p291 = por %p289, %p290
      %p293 = scmp.ne.s32.totalorder %s278, %s292
      %p294 = scmp.eq.s32.totalorder %s28, 0
      %p295 = por %p293, %p294
      %s297 = sadd.s32 %s296, 1
      %p300 = scmp.eq.s32.totalorder %s22, 4
      %p301 = scmp.ne.s32.totalorder %s296, %s298
      %p302 = scmp.eq.s32.totalorder %s22, 0
      %p303 = por %p301, %p302
      %p304 = scmp.ne.s32.totalorder %s296, %s298
      %p305 = scmp.eq.s32.totalorder %s27, 4
      %p306 = por %p304, %p305
      %p307 = scmp.ne.s32.totalorder %s298, %s299
      %p308 = scmp.eq.s32.totalorder %s27, 0
      %p309 = por %p307, %p308
      %p310 = scmp.ne.s32.totalorder %s298, %s299
      %p311 = scmp.eq.s32.totalorder %s28, 4
      %p312 = por %p310, %p311
      %p314 = scmp.ne.s32.totalorder %s299, %s313
      %p315 = scmp.eq.s32.totalorder %s28, 0
      %p316 = por %p314, %p315
      %s318 = sadd.s32 %s317, 1
      %p321 = scmp.eq.s32.totalorder %s22, 4
      %p322 = scmp.ne.s32.totalorder %s317, %s319
      %p323 = scmp.eq.s32.totalorder %s22, 0
      %p324 = por %p322, %p323
      %p325 = scmp.ne.s32.totalorder %s317, %s319
      %p326 = scmp.eq.s32.totalorder %s27, 4
      %p327 = por %p325, %p326
      %p328 = scmp.ne.s32.totalorder %s319, %s320
      %p329 = scmp.eq.s32.totalorder %s27, 0
      %p330 = por %p328, %p329
      %p331 = scmp.ne.s32.totalorder %s319, %s320
      %p332 = scmp.eq.s32.totalorder %s28, 4
      %p333 = por %p331, %p332
      %p335 = scmp.ne.s32.totalorder %s320, %s334
      %p336 = scmp.eq.s32.totalorder %s28, 0
      %p337 = por %p335, %p336
      %p338 = scmp.le.s32.totalorder 1, %s22
      %p339 = scmp.lt.s32.totalorder %s22, 6
      %p340 = pnand %p338, %p339
      %p341 = pneg %p340
      // Predicated region
      $region9: #{tpu_custom_call.1} parent=5 // pred_check
        _
      $region10: #{tpu_custom_call.1} parent=5 // pred_check_branch
        %343 = sbr.rel (%p340) target = $region12
      $region11: #{tpu_custom_call.1} parent=5 // pred_region
        %s344 = ssub.s32 %s22, 1
        // Predicated region
        $region13: #{tpu_custom_call.1} parent=11 // pred_check
          %p345 = pneg %p43
        $region14: #{tpu_custom_call.1} parent=11 // pred_check_branch
          %347 = sbr.rel (%p345) target = $region16
        $region15: #{tpu_custom_call.1} parent=11 // pred_region
          %s349 = ssub.s32 1024, 1024
          %350 = vsyncadd [#allocation4], %s349
          %s351 = sshll.u32 [#allocation3], 4
          %s352 = int_to_ptr.vmem [resolvable:$true] %s351
          %357 = dma.hbm_to_vmem [thread:$0]  %s0, 1024, %s352, [#allocation4], 64, 64, 4
        $region16: #{tpu_custom_call.1} parent=11 // pred_fallthru
          _
        // Predicated region
        $region17: #{tpu_custom_call.1} parent=11 // pred_check
          %p358 = pneg %p64
        $region18: #{tpu_custom_call.1} parent=11 // pred_check_branch
          %360 = sbr.rel (%p358) target = $region20
        $region19: #{tpu_custom_call.1} parent=11 // pred_region
          %s362 = ssub.s32 6144, 6144
          %363 = vsyncadd [#allocation7], %s362
          %s364 = sshll.u32 [#allocation6], 4
          %s365 = int_to_ptr.vmem [resolvable:$true] %s364
          %370 = dma.hbm_to_vmem [thread:$0]  %s1, 6144, %s365, [#allocation7], 384, 384, 24
        $region20: #{tpu_custom_call.1} parent=11 // pred_fallthru
          _
        // Predicated region
        $region21: #{tpu_custom_call.1} parent=11 // pred_check
          %p371 = pneg %p267
        $region22: #{tpu_custom_call.1} parent=11 // pred_check_branch
          %373 = sbr.rel (%p371) target = $region24
        $region23: #{tpu_custom_call.1} parent=11 // pred_region
          %s375 = ssub.s32 128, 128
          %376 = vsyncadd [#allocation7], %s375
          %s378 = sshll.u32 [#allocation15], 4
          %s379 = int_to_ptr.vmem [resolvable:$true] %s378
          %381 = dma.hbm_to_vmem [thread:$0]  %s9, 128, %s379, [#allocation7]
        $region24: #{tpu_custom_call.1} parent=11 // pred_fallthru
          _
        // Predicated region
        $region25: #{tpu_custom_call.1} parent=11 // pred_check
          %p382 = pneg %p288
        $region26: #{tpu_custom_call.1} parent=11 // pred_check_branch
          %384 = sbr.rel (%p382) target = $region28
        $region27: #{tpu_custom_call.1} parent=11 // pred_region
          %s386 = ssub.s32 12288, 12288
          %387 = vsyncadd [#allocation17], %s386
          %s388 = sshll.u32 [#allocation16], 4
          %s389 = int_to_ptr.vmem [resolvable:$true] %s388
          %394 = dma.hbm_to_vmem [thread:$0]  %s10, 12288, %s389, [#allocation17], 256, 256, 16
        $region28: #{tpu_custom_call.1} parent=11 // pred_fallthru
          _
        // Predicated region
        $region29: #{tpu_custom_call.1} parent=11 // pred_check
          %p395 = pneg %p309
        $region30: #{tpu_custom_call.1} parent=11 // pred_check_branch
          %397 = sbr.rel (%p395) target = $region32
        $region31: #{tpu_custom_call.1} parent=11 // pred_region
          %s399 = ssub.s32 64, 64
          %400 = vsyncadd [#allocation17], %s399
          %s402 = sshll.u32 [#allocation18], 4
          %s403 = int_to_ptr.vmem [resolvable:$true] %s402
          %405 = dma.hbm_to_vmem [thread:$0]  %s11, 64, %s403, [#allocation17]
        $region32: #{tpu_custom_call.1} parent=11 // pred_fallthru
          _
      $region12: #{tpu_custom_call.1} parent=5 // pred_fallthru
        _
      %p406 = scmp.lt.s32.totalorder %s22, 5
      // Predicated region
      $region33: #{tpu_custom_call.1} parent=5 // pred_check
        %p407 = pneg %p406
      $region34: #{tpu_custom_call.1} parent=5 // pred_check_branch
        %409 = sbr.rel (%p407) target = $region36
      $region35: #{tpu_custom_call.1} parent=5 // pred_region
        // Predicated region
        $region37: #{tpu_custom_call.1} parent=35 // pred_check
          %p410 = pneg %p84
        $region38: #{tpu_custom_call.1} parent=35 // pred_check_branch
          %412 = sbr.rel (%p410) target = $region40
        $region39: #{tpu_custom_call.1} parent=35 // pred_region
          %s413 = sand.u32 %s22, 1
          %s414 = scalar_lea.sflag [#allocation4], %s413
          %s415 = sand.u32 %s74, 1
          %s416 = smul.addr %s415, 384
          %s417 = scalar_lea.vmem [#allocation8], %s416
          %s419 = ssub.s32 6144, 6144
          %420 = vsyncadd %s414, %s419
          %s421 = smul.addr %s22, 48
          %s422 = smul.addr %s421, 128
          %s423 = scalar_lea.hbm %s2, %s422
          %s424 = sshll.u32 %s417, 4
          %s425 = int_to_ptr.vmem [resolvable:$true] %s424
          %430 = dma.hbm_to_vmem [thread:$0]  %s423, 6144, %s425, %s414, 384, 384, 24
        $region40: #{tpu_custom_call.1} parent=35 // pred_fallthru
          _
        // Predicated region
        $region41: #{tpu_custom_call.1} parent=35 // pred_check
          %p431 = pneg %p110
        $region42: #{tpu_custom_call.1} parent=35 // pred_check_branch
          %433 = sbr.rel (%p431) target = $region44
        $region43: #{tpu_custom_call.1} parent=35 // pred_region
          %s434 = sand.u32 %s22, 1
          %s435 = scalar_lea.sflag [#allocation4], %s434
          %s436 = sand.u32 %s100, 1
          %s437 = smul.addr %s436, 1152
          %s438 = scalar_lea.vmem [#allocation9], %s437
          %s440 = ssub.s32 18432, 18432
          %441 = vsyncadd %s435, %s440
          %s442 = smul.addr %s22, 288
          %s443 = smul.addr %s442, 64
          %s444 = scalar_lea.hbm %s3, %s443
          %s445 = sshll.u32 %s438, 4
          %s446 = int_to_ptr.vmem [resolvable:$true] %s445
          %451 = dma.hbm_to_vmem [thread:$0]  %s444, 18432, %s446, %s435, 384, 384, 24
        $region44: #{tpu_custom_call.1} parent=35 // pred_fallthru
          _
        // Predicated region
        $region45: #{tpu_custom_call.1} parent=35 // pred_check
          %p452 = pneg %p136
        $region46: #{tpu_custom_call.1} parent=35 // pred_check_branch
          %454 = sbr.rel (%p452) target = $region48
        $region47: #{tpu_custom_call.1} parent=35 // pred_region
          %s455 = sand.u32 %s22, 1
          %s456 = scalar_lea.sflag [#allocation4], %s455
          %s457 = sand.u32 %s126, 1
          %s458 = smul.addr %s457, 6
          %s459 = scalar_lea.vmem [#allocation10], %s458
          %s461 = ssub.s32 96, 96
          %462 = vsyncadd %s456, %s461
          %s463 = smul.addr %s22, 6
          %s464 = smul.addr %s463, 16
          %s465 = scalar_lea.hbm %s4, %s464
          %s467 = sshll.u32 %s459, 4
          %s468 = int_to_ptr.vmem [resolvable:$true] %s467
          %470 = dma.hbm_to_vmem [thread:$0]  %s465, 96, %s468, %s456
        $region48: #{tpu_custom_call.1} parent=35 // pred_fallthru
          _
        // Predicated region
        $region49: #{tpu_custom_call.1} parent=35 // pred_check
          %p471 = pneg %p162
        $region50: #{tpu_custom_call.1} parent=35 // pred_check_branch
          %473 = sbr.rel (%p471) target = $region52
        $region51: #{tpu_custom_call.1} parent=35 // pred_region
          %s474 = sand.u32 %s22, 1
          %s475 = scalar_lea.sflag [#allocation4], %s474
          %s476 = sand.u32 %s152, 1
          %s477 = smul.addr %s476, 1152
          %s478 = scalar_lea.vmem [#allocation11], %s477
          %s480 = ssub.s32 18432, 18432
          %481 = vsyncadd %s475, %s480
          %s482 = smul.addr %s22, 288
          %s483 = smul.addr %s482, 64
          %s484 = scalar_lea.hbm %s5, %s483
          %s485 = sshll.u32 %s478, 4
          %s486 = int_to_ptr.vmem [resolvable:$true] %s485
          %491 = dma.hbm_to_vmem [thread:$0]  %s484, 18432, %s486, %s475, 192, 192, 12
        $region52: #{tpu_custom_call.1} parent=35 // pred_fallthru
          _
        // Predicated region
        $region53: #{tpu_custom_call.1} parent=35 // pred_check
          %p492 = pneg %p188
        $region54: #{tpu_custom_call.1} parent=35 // pred_check_branch
          %494 = sbr.rel (%p492) target = $region56
        $region55: #{tpu_custom_call.1} parent=35 // pred_region
          %s495 = sand.u32 %s22, 1
          %s496 = scalar_lea.sflag [#allocation4], %s495
          %s497 = sand.u32 %s178, 1
          %s498 = smul.addr %s497, 3
          %s499 = scalar_lea.vmem [#allocation12], %s498
          %s501 = ssub.s32 48, 48
          %502 = vsyncadd %s496, %s501
          %s503 = smul.addr %s22, 3
          %s504 = smul.addr %s503, 16
          %s505 = scalar_lea.hbm %s6, %s504
          %s507 = sshll.u32 %s499, 4
          %s508 = int_to_ptr.vmem [resolvable:$true] %s507
          %510 = dma.hbm_to_vmem [thread:$0]  %s505, 48, %s508, %s496
        $region56: #{tpu_custom_call.1} parent=35 // pred_fallthru
          _
        // Predicated region
        $region57: #{tpu_custom_call.1} parent=35 // pred_check
          %p511 = pneg %p214
        $region58: #{tpu_custom_call.1} parent=35 // pred_check_branch
          %513 = sbr.rel (%p511) target = $region60
        $region59: #{tpu_custom_call.1} parent=35 // pred_region
          %s514 = sand.u32 %s22, 1
          %s515 = scalar_lea.sflag [#allocation4], %s514
          %s516 = sand.u32 %s204, 1
          %s517 = smul.addr %s516, 3
          %s518 = scalar_lea.vmem [#allocation13], %s517
          %s520 = ssub.s32 48, 48
          %521 = vsyncadd %s515, %s520
          %s522 = smul.addr %s22, 3
          %s523 = smul.addr %s522, 16
          %s524 = scalar_lea.hbm %s7, %s523
          %s526 = sshll.u32 %s518, 4
          %s527 = int_to_ptr.vmem [resolvable:$true] %s526
          %529 = dma.hbm_to_vmem [thread:$0]  %s524, 48, %s527, %s515
        $region60: #{tpu_custom_call.1} parent=35 // pred_fallthru
          _
        // Predicated region
        $region61: #{tpu_custom_call.1} parent=35 // pred_check
          %p530 = pneg %p240
        $region62: #{tpu_custom_call.1} parent=35 // pred_check_branch
          %532 = sbr.rel (%p530) target = $region64
        $region63: #{tpu_custom_call.1} parent=35 // pred_region
          %s533 = sand.u32 %s22, 1
          %s534 = scalar_lea.sflag [#allocation4], %s533
          %s535 = sand.u32 %s230, 1
          %s536 = smul.addr %s535, 3
          %s537 = scalar_lea.vmem [#allocation14], %s536
          %s539 = ssub.s32 48, 48
          %540 = vsyncadd %s534, %s539
          %s541 = smul.addr %s22, 3
          %s542 = smul.addr %s541, 16
          %s543 = scalar_lea.hbm %s8, %s542
          %s545 = sshll.u32 %s537, 4
          %s546 = int_to_ptr.vmem [resolvable:$true] %s545
          %548 = dma.hbm_to_vmem [thread:$0]  %s543, 48, %s546, %s534
        $region64: #{tpu_custom_call.1} parent=35 // pred_fallthru
          _
      $region36: #{tpu_custom_call.1} parent=5 // pred_fallthru
        _
      %p549 = scmp.le.s32.totalorder 1, %s22
      %p550 = scmp.lt.s32.totalorder %s22, 6
      %p551 = pnand %p549, %p550
      %p552 = pneg %p551
      // Predicated region
      $region65: #{tpu_custom_call.1} parent=5 // pred_check
        _
      $region66: #{tpu_custom_call.1} parent=5 // pred_check_branch
        %554 = sbr.rel (%p551) target = $region68
      $region67: #{tpu_custom_call.1} parent=5 // pred_region
        %s555 = ssub.s32 %s22, 1
        // Predicated region
        $region69: #{tpu_custom_call.1} parent=67 // pred_check
          %p556 = pneg %p43
        $region70: #{tpu_custom_call.1} parent=67 // pred_check_branch
          %558 = sbr.rel (%p556) target = $region72
        $region71: #{tpu_custom_call.1} parent=67 // pred_region
          %559 = dma.done [#allocation4], 1024
        $region72: #{tpu_custom_call.1} parent=67 // pred_fallthru
          _
        // Predicated region
        $region73: #{tpu_custom_call.1} parent=67 // pred_check
          %p560 = pneg %p64
        $region74: #{tpu_custom_call.1} parent=67 // pred_check_branch
          %562 = sbr.rel (%p560) target = $region76
        $region75: #{tpu_custom_call.1} parent=67 // pred_region
          %563 = dma.done [#allocation7], 6144
        $region76: #{tpu_custom_call.1} parent=67 // pred_fallthru
          _
        %s564 = sand.u32 %s27, 1
        %s565 = scalar_lea.sflag [#allocation4], %s564
        %s566 = sand.u32 %s77, 1
        %s567 = smul.addr %s566, 384
        %s568 = scalar_lea.vmem [#allocation8], %s567
        // Predicated region
        $region77: #{tpu_custom_call.1} parent=67 // pred_check
          %p569 = pneg %p90
        $region78: #{tpu_custom_call.1} parent=67 // pred_check_branch
          %571 = sbr.rel (%p569) target = $region80
        $region79: #{tpu_custom_call.1} parent=67 // pred_region
          %572 = dma.done %s565, 6144
        $region80: #{tpu_custom_call.1} parent=67 // pred_fallthru
          _
        %s573 = sand.u32 %s27, 1
        %s574 = scalar_lea.sflag [#allocation4], %s573
        %s575 = sand.u32 %s103, 1
        %s576 = smul.addr %s575, 1152
        %s577 = scalar_lea.vmem [#allocation9], %s576
        // Predicated region
        $region81: #{tpu_custom_call.1} parent=67 // pred_check
          %p578 = pneg %p116
        $region82: #{tpu_custom_call.1} parent=67 // pred_check_branch
          %580 = sbr.rel (%p578) target = $region84
        $region83: #{tpu_custom_call.1} parent=67 // pred_region
          %581 = dma.done %s574, 18432
        $region84: #{tpu_custom_call.1} parent=67 // pred_fallthru
          _
        %s582 = sand.u32 %s27, 1
        %s583 = scalar_lea.sflag [#allocation4], %s582
        %s584 = sand.u32 %s129, 1
        %s585 = smul.addr %s584, 6
        %s586 = scalar_lea.vmem [#allocation10], %s585
        // Predicated region
        $region85: #{tpu_custom_call.1} parent=67 // pred_check
          %p587 = pneg %p142
        $region86: #{tpu_custom_call.1} parent=67 // pred_check_branch
          %589 = sbr.rel (%p587) target = $region88
        $region87: #{tpu_custom_call.1} parent=67 // pred_region
          %590 = dma.done %s583, 96
        $region88: #{tpu_custom_call.1} parent=67 // pred_fallthru
          _
        %s591 = sand.u32 %s27, 1
        %s592 = scalar_lea.sflag [#allocation4], %s591
        %s593 = sand.u32 %s155, 1
        %s594 = smul.addr %s593, 1152
        %s595 = scalar_lea.vmem [#allocation11], %s594
        // Predicated region
        $region89: #{tpu_custom_call.1} parent=67 // pred_check
          %p596 = pneg %p168
        $region90: #{tpu_custom_call.1} parent=67 // pred_check_branch
          %598 = sbr.rel (%p596) target = $region92
        $region91: #{tpu_custom_call.1} parent=67 // pred_region
          %599 = dma.done %s592, 18432
        $region92: #{tpu_custom_call.1} parent=67 // pred_fallthru
          _
        %s600 = sand.u32 %s27, 1
        %s601 = scalar_lea.sflag [#allocation4], %s600
        %s602 = sand.u32 %s181, 1
        %s603 = smul.addr %s602, 3
        %s604 = scalar_lea.vmem [#allocation12], %s603
        // Predicated region
        $region93: #{tpu_custom_call.1} parent=67 // pred_check
          %p605 = pneg %p194
        $region94: #{tpu_custom_call.1} parent=67 // pred_check_branch
          %607 = sbr.rel (%p605) target = $region96
        $region95: #{tpu_custom_call.1} parent=67 // pred_region
          %608 = dma.done %s601, 48
        $region96: #{tpu_custom_call.1} parent=67 // pred_fallthru
          _
        %s609 = sand.u32 %s27, 1
        %s610 = scalar_lea.sflag [#allocation4], %s609
        %s611 = sand.u32 %s207, 1
        %s612 = smul.addr %s611, 3
        %s613 = scalar_lea.vmem [#allocation13], %s612
        // Predicated region
        $region97: #{tpu_custom_call.1} parent=67 // pred_check
          %p614 = pneg %p220
        $region98: #{tpu_custom_call.1} parent=67 // pred_check_branch
          %616 = sbr.rel (%p614) target = $region100
        $region99: #{tpu_custom_call.1} parent=67 // pred_region
          %617 = dma.done %s610, 48
        $region100: #{tpu_custom_call.1} parent=67 // pred_fallthru
          _
        %s618 = sand.u32 %s27, 1
        %s619 = scalar_lea.sflag [#allocation4], %s618
        %s620 = sand.u32 %s233, 1
        %s621 = smul.addr %s620, 3
        %s622 = scalar_lea.vmem [#allocation14], %s621
        // Predicated region
        $region101: #{tpu_custom_call.1} parent=67 // pred_check
          %p623 = pneg %p246
        $region102: #{tpu_custom_call.1} parent=67 // pred_check_branch
          %625 = sbr.rel (%p623) target = $region104
        $region103: #{tpu_custom_call.1} parent=67 // pred_region
          %626 = dma.done %s619, 48
        $region104: #{tpu_custom_call.1} parent=67 // pred_fallthru
          _
        // Predicated region
        $region105: #{tpu_custom_call.1} parent=67 // pred_check
          %p627 = pneg %p267
        $region106: #{tpu_custom_call.1} parent=67 // pred_check_branch
          %629 = sbr.rel (%p627) target = $region108
        $region107: #{tpu_custom_call.1} parent=67 // pred_region
          %630 = dma.done [#allocation7], 128
        $region108: #{tpu_custom_call.1} parent=67 // pred_fallthru
          _
        // Predicated region
        $region109: #{tpu_custom_call.1} parent=67 // pred_check
          %p631 = pneg %p288
        $region110: #{tpu_custom_call.1} parent=67 // pred_check_branch
          %633 = sbr.rel (%p631) target = $region112
        $region111: #{tpu_custom_call.1} parent=67 // pred_region
          %634 = dma.done [#allocation17], 12288
        $region112: #{tpu_custom_call.1} parent=67 // pred_fallthru
          _
        // Predicated region
        $region113: #{tpu_custom_call.1} parent=67 // pred_check
          %p635 = pneg %p309
        $region114: #{tpu_custom_call.1} parent=67 // pred_check_branch
          %637 = sbr.rel (%p635) target = $region116
        $region115: #{tpu_custom_call.1} parent=67 // pred_region
          %638 = dma.done [#allocation17], 64
        $region116: #{tpu_custom_call.1} parent=67 // pred_fallthru
          _
        %p639 = pneg %p43
        %p640 = pneg %p40
        %p641 = pneg %p64
        %p642 = pneg %p61
        %s643 = sand.u32 %s27, 1
        %s644 = scalar_lea.sflag [#allocation4], %s643
        %s645 = sand.u32 %s77, 1
        %s646 = smul.addr %s645, 384
        %s647 = scalar_lea.vmem [#allocation8], %s646
        %p648 = pneg %p90
        %p649 = pneg %p87
        %s650 = sand.u32 %s27, 1
        %s651 = scalar_lea.sflag [#allocation4], %s650
        %s652 = sand.u32 %s103, 1
        %s653 = smul.addr %s652, 1152
        %s654 = scalar_lea.vmem [#allocation9], %s653
        %p655 = pneg %p116
        %p656 = pneg %p113
        %s657 = sand.u32 %s27, 1
        %s658 = scalar_lea.sflag [#allocation4], %s657
        %s659 = sand.u32 %s129, 1
        %s660 = smul.addr %s659, 6
        %s661 = scalar_lea.vmem [#allocation10], %s660
        %p662 = pneg %p142
        %p663 = pneg %p139
        %s664 = sand.u32 %s27, 1
        %s665 = scalar_lea.sflag [#allocation4], %s664
        %s666 = sand.u32 %s155, 1
        %s667 = smul.addr %s666, 1152
        %s668 = scalar_lea.vmem [#allocation11], %s667
        %p669 = pneg %p168
        %p670 = pneg %p165
        %s671 = sand.u32 %s27, 1
        %s672 = scalar_lea.sflag [#allocation4], %s671
        %s673 = sand.u32 %s181, 1
        %s674 = smul.addr %s673, 3
        %s675 = scalar_lea.vmem [#allocation12], %s674
        %p676 = pneg %p194
        %p677 = pneg %p191
        %s678 = sand.u32 %s27, 1
        %s679 = scalar_lea.sflag [#allocation4], %s678
        %s680 = sand.u32 %s207, 1
        %s681 = smul.addr %s680, 3
        %s682 = scalar_lea.vmem [#allocation13], %s681
        %p683 = pneg %p220
        %p684 = pneg %p217
        %s685 = sand.u32 %s27, 1
        %s686 = scalar_lea.sflag [#allocation4], %s685
        %s687 = sand.u32 %s233, 1
        %s688 = smul.addr %s687, 3
        %s689 = scalar_lea.vmem [#allocation14], %s688
        %p690 = pneg %p246
        %p691 = pneg %p243
        %p692 = pneg %p267
        %p693 = pneg %p264
        %p694 = pneg %p288
        %p695 = pneg %p285
        %p696 = pneg %p309
        %p697 = pneg %p306
        %p698 = pneg %p330
        %p699 = pneg %p327
        %p701 = scmp.eq.s32.totalorder %s27, 0
        // Predicated region
        $region117: #{tpu_custom_call.1} parent=67 // pred_check
          %p702 = pneg %p701
        $region118: #{tpu_custom_call.1} parent=67 // pred_check_branch
          %704 = sbr.rel (%p702) target = $region120
        $region119: #{tpu_custom_call.1} parent=67 // pred_region
          %v705 = vld [vmem:[#allocation6] sm:$0xff]
          %v706 = vld [vmem:[#allocation6 + $0x8] sm:$0xff]
          %v707 = vld [vmem:[#allocation6 + $0x10] sm:$0xff]
          %v708 = vld [vmem:[#allocation6 + $0x18] sm:$0xff]
          %v709 = vld [vmem:[#allocation6 + $0x20] sm:$0xff]
          %v710 = vld [vmem:[#allocation6 + $0x28] sm:$0xff]
          %v711 = vld [vmem:[#allocation6 + $0x30] sm:$0xff]
          %v712 = vld [vmem:[#allocation6 + $0x38] sm:$0xff]
          %v713 = vld [vmem:[#allocation6 + $0x40] sm:$0xff]
          %v714 = vld [vmem:[#allocation6 + $0x48] sm:$0xff]
          %v715 = vld [vmem:[#allocation6 + $0x50] sm:$0xff]
          %v716 = vld [vmem:[#allocation6 + $0x58] sm:$0xff]
          %v717 = vld [vmem:[#allocation6 + $0x60] sm:$0xff]
          %v718 = vld [vmem:[#allocation6 + $0x68] sm:$0xff]
          %v719 = vld [vmem:[#allocation6 + $0x70] sm:$0xff]
          %v720 = vld [vmem:[#allocation6 + $0x78] sm:$0xff]
          %v721 = vld [vmem:[#allocation6 + $0x80] sm:$0xff]
          %v722 = vld [vmem:[#allocation6 + $0x88] sm:$0xff]
          %v723 = vld [vmem:[#allocation6 + $0x90] sm:$0xff]
          %v724 = vld [vmem:[#allocation6 + $0x98] sm:$0xff]
          %v725 = vld [vmem:[#allocation6 + $0xa0] sm:$0xff]
          %v726 = vld [vmem:[#allocation6 + $0xa8] sm:$0xff]
          %v727 = vld [vmem:[#allocation6 + $0xb0] sm:$0xff]
          %v728 = vld [vmem:[#allocation6 + $0xb8] sm:$0xff]
          %v729 = vld [vmem:[#allocation6 + $0xc0] sm:$0xff]
          %v730 = vld [vmem:[#allocation6 + $0xc8] sm:$0xff]
          %v731 = vld [vmem:[#allocation6 + $0xd0] sm:$0xff]
          %v732 = vld [vmem:[#allocation6 + $0xd8] sm:$0xff]
          %v733 = vld [vmem:[#allocation6 + $0xe0] sm:$0xff]
          %v734 = vld [vmem:[#allocation6 + $0xe8] sm:$0xff]
          %v735 = vld [vmem:[#allocation6 + $0xf0] sm:$0xff]
          %v736 = vld [vmem:[#allocation6 + $0xf8] sm:$0xff]
          %v737 = vld [vmem:[#allocation6 + $0x100] sm:$0xff]
          %v738 = vld [vmem:[#allocation6 + $0x108] sm:$0xff]
          %v739 = vld [vmem:[#allocation6 + $0x110] sm:$0xff]
          %v740 = vld [vmem:[#allocation6 + $0x118] sm:$0xff]
          %v741 = vld [vmem:[#allocation6 + $0x120] sm:$0xff]
          %v742 = vld [vmem:[#allocation6 + $0x128] sm:$0xff]
          %v743 = vld [vmem:[#allocation6 + $0x130] sm:$0xff]
          %v744 = vld [vmem:[#allocation6 + $0x138] sm:$0xff]
          %v745 = vld [vmem:[#allocation6 + $0x140] sm:$0xff]
          %v746 = vld [vmem:[#allocation6 + $0x148] sm:$0xff]
          %v747 = vld [vmem:[#allocation6 + $0x150] sm:$0xff]
          %v748 = vld [vmem:[#allocation6 + $0x158] sm:$0xff]
          %v749 = vld [vmem:[#allocation6 + $0x160] sm:$0xff]
          %v750 = vld [vmem:[#allocation6 + $0x168] sm:$0xff]
          %v751 = vld [vmem:[#allocation6 + $0x170] sm:$0xff]
          %v752 = vld [vmem:[#allocation6 + $0x178] sm:$0xff]
          %753 = vst [vmem:[#allocation2] sm:$0xff] %v705
          %754 = vst [vmem:[#allocation2 + $0x8] sm:$0xff] %v706
          %755 = vst [vmem:[#allocation2 + $0x10] sm:$0xff] %v707
          %756 = vst [vmem:[#allocation2 + $0x18] sm:$0xff] %v708
          %757 = vst [vmem:[#allocation2 + $0x20] sm:$0xff] %v709
          %758 = vst [vmem:[#allocation2 + $0x28] sm:$0xff] %v710
          %759 = vst [vmem:[#allocation2 + $0x30] sm:$0xff] %v711
          %760 = vst [vmem:[#allocation2 + $0x38] sm:$0xff] %v712
          %761 = vst [vmem:[#allocation2 + $0x40] sm:$0xff] %v713
          %762 = vst [vmem:[#allocation2 + $0x48] sm:$0xff] %v714
          %763 = vst [vmem:[#allocation2 + $0x50] sm:$0xff] %v715
          %764 = vst [vmem:[#allocation2 + $0x58] sm:$0xff] %v716
          %765 = vst [vmem:[#allocation2 + $0x60] sm:$0xff] %v717
          %766 = vst [vmem:[#allocation2 + $0x68] sm:$0xff] %v718
          %767 = vst [vmem:[#allocation2 + $0x70] sm:$0xff] %v719
          %768 = vst [vmem:[#allocation2 + $0x78] sm:$0xff] %v720
          %769 = vst [vmem:[#allocation2 + $0x80] sm:$0xff] %v721
          %770 = vst [vmem:[#allocation2 + $0x88] sm:$0xff] %v722
          %771 = vst [vmem:[#allocation2 + $0x90] sm:$0xff] %v723
          %772 = vst [vmem:[#allocation2 + $0x98] sm:$0xff] %v724
          %773 = vst [vmem:[#allocation2 + $0xa0] sm:$0xff] %v725
          %774 = vst [vmem:[#allocation2 + $0xa8] sm:$0xff] %v726
          %775 = vst [vmem:[#allocation2 + $0xb0] sm:$0xff] %v727
          %776 = vst [vmem:[#allocation2 + $0xb8] sm:$0xff] %v728
          %777 = vst [vmem:[#allocation2 + $0xc0] sm:$0xff] %v729
          %778 = vst [vmem:[#allocation2 + $0xc8] sm:$0xff] %v730
          %779 = vst [vmem:[#allocation2 + $0xd0] sm:$0xff] %v731
          %780 = vst [vmem:[#allocation2 + $0xd8] sm:$0xff] %v732
          %781 = vst [vmem:[#allocation2 + $0xe0] sm:$0xff] %v733
          %782 = vst [vmem:[#allocation2 + $0xe8] sm:$0xff] %v734
          %783 = vst [vmem:[#allocation2 + $0xf0] sm:$0xff] %v735
          %784 = vst [vmem:[#allocation2 + $0xf8] sm:$0xff] %v736
          %785 = vst [vmem:[#allocation2 + $0x100] sm:$0xff] %v737
          %786 = vst [vmem:[#allocation2 + $0x108] sm:$0xff] %v738
          %787 = vst [vmem:[#allocation2 + $0x110] sm:$0xff] %v739
          %788 = vst [vmem:[#allocation2 + $0x118] sm:$0xff] %v740
          %789 = vst [vmem:[#allocation2 + $0x120] sm:$0xff] %v741
          %790 = vst [vmem:[#allocation2 + $0x128] sm:$0xff] %v742
          %791 = vst [vmem:[#allocation2 + $0x130] sm:$0xff] %v743
          %792 = vst [vmem:[#allocation2 + $0x138] sm:$0xff] %v744
          %793 = vst [vmem:[#allocation2 + $0x140] sm:$0xff] %v745
          %794 = vst [vmem:[#allocation2 + $0x148] sm:$0xff] %v746
          %795 = vst [vmem:[#allocation2 + $0x150] sm:$0xff] %v747
          %796 = vst [vmem:[#allocation2 + $0x158] sm:$0xff] %v748
          %797 = vst [vmem:[#allocation2 + $0x160] sm:$0xff] %v749
          %798 = vst [vmem:[#allocation2 + $0x168] sm:$0xff] %v750
          %799 = vst [vmem:[#allocation2 + $0x170] sm:$0xff] %v751
          %800 = vst [vmem:[#allocation2 + $0x178] sm:$0xff] %v752
        $region120: #{tpu_custom_call.1} parent=67 // pred_fallthru
          _
        %v801 = vld [vmem:[#allocation2] sm:$0xff]
        %v802 = vld [vmem:[#allocation2 + $0x8] sm:$0xff]
        %v803 = vld [vmem:[#allocation2 + $0x10] sm:$0xff]
        %v804 = vld [vmem:[#allocation2 + $0x18] sm:$0xff]
        %v805 = vld [vmem:[#allocation2 + $0x20] sm:$0xff]
        %v806 = vld [vmem:[#allocation2 + $0x28] sm:$0xff]
        %v807 = vld [vmem:[#allocation2 + $0x30] sm:$0xff]
        %v808 = vld [vmem:[#allocation2 + $0x38] sm:$0xff]
        %v809 = vld [vmem:[#allocation2 + $0x40] sm:$0xff]
        %v810 = vld [vmem:[#allocation2 + $0x48] sm:$0xff]
        %v811 = vld [vmem:[#allocation2 + $0x50] sm:$0xff]
        %v812 = vld [vmem:[#allocation2 + $0x58] sm:$0xff]
        %v813 = vld [vmem:[#allocation2 + $0x60] sm:$0xff]
        %v814 = vld [vmem:[#allocation2 + $0x68] sm:$0xff]
        %v815 = vld [vmem:[#allocation2 + $0x70] sm:$0xff]
        %v816 = vld [vmem:[#allocation2 + $0x78] sm:$0xff]
        %v817 = vld [vmem:[#allocation2 + $0x80] sm:$0xff]
        %v818 = vld [vmem:[#allocation2 + $0x88] sm:$0xff]
        %v819 = vld [vmem:[#allocation2 + $0x90] sm:$0xff]
        %v820 = vld [vmem:[#allocation2 + $0x98] sm:$0xff]
        %v821 = vld [vmem:[#allocation2 + $0xa0] sm:$0xff]
        %v822 = vld [vmem:[#allocation2 + $0xa8] sm:$0xff]
        %v823 = vld [vmem:[#allocation2 + $0xb0] sm:$0xff]
        %v824 = vld [vmem:[#allocation2 + $0xb8] sm:$0xff]
        %v825 = vld [vmem:[#allocation2 + $0xc0] sm:$0xff]
        %v826 = vld [vmem:[#allocation2 + $0xc8] sm:$0xff]
        %v827 = vld [vmem:[#allocation2 + $0xd0] sm:$0xff]
        %v828 = vld [vmem:[#allocation2 + $0xd8] sm:$0xff]
        %v829 = vld [vmem:[#allocation2 + $0xe0] sm:$0xff]
        %v830 = vld [vmem:[#allocation2 + $0xe8] sm:$0xff]
        %v831 = vld [vmem:[#allocation2 + $0xf0] sm:$0xff]
        %v832 = vld [vmem:[#allocation2 + $0xf8] sm:$0xff]
        %v833 = vld [vmem:[#allocation2 + $0x100] sm:$0xff]
        %v834 = vld [vmem:[#allocation2 + $0x108] sm:$0xff]
        %v835 = vld [vmem:[#allocation2 + $0x110] sm:$0xff]
        %v836 = vld [vmem:[#allocation2 + $0x118] sm:$0xff]
        %v837 = vld [vmem:[#allocation2 + $0x120] sm:$0xff]
        %v838 = vld [vmem:[#allocation2 + $0x128] sm:$0xff]
        %v839 = vld [vmem:[#allocation2 + $0x130] sm:$0xff]
        %v840 = vld [vmem:[#allocation2 + $0x138] sm:$0xff]
        %v841 = vld [vmem:[#allocation2 + $0x140] sm:$0xff]
        %v842 = vld [vmem:[#allocation2 + $0x148] sm:$0xff]
        %v843 = vld [vmem:[#allocation2 + $0x150] sm:$0xff]
        %v844 = vld [vmem:[#allocation2 + $0x158] sm:$0xff]
        %v845 = vld [vmem:[#allocation2 + $0x160] sm:$0xff]
        %v846 = vld [vmem:[#allocation2 + $0x168] sm:$0xff]
        %v847 = vld [vmem:[#allocation2 + $0x170] sm:$0xff]
        %v848 = vld [vmem:[#allocation2 + $0x178] sm:$0xff]
        %v849 = vld [vmem:[#allocation3] sm:$0xf]
        %v850 = vld [vmem:[#allocation3 + $0x4] sm:$0xf]
        %v851 = vld [vmem:[#allocation3 + $0x8] sm:$0xf]
        %v852 = vld [vmem:[#allocation3 + $0xc] sm:$0xf]
        %v853 = vld [vmem:[#allocation3 + $0x10] sm:$0xf]
        %v854 = vld [vmem:[#allocation3 + $0x14] sm:$0xf]
        %v855 = vld [vmem:[#allocation3 + $0x18] sm:$0xf]
        %v856 = vld [vmem:[#allocation3 + $0x1c] sm:$0xf]
        %v857 = vld [vmem:[#allocation3 + $0x20] sm:$0xf]
        %v858 = vld [vmem:[#allocation3 + $0x24] sm:$0xf]
        %v859 = vld [vmem:[#allocation3 + $0x28] sm:$0xf]
        %v860 = vld [vmem:[#allocation3 + $0x2c] sm:$0xf]
        %v861 = vld [vmem:[#allocation3 + $0x30] sm:$0xf]
        %v862 = vld [vmem:[#allocation3 + $0x34] sm:$0xf]
        %v863 = vld [vmem:[#allocation3 + $0x38] sm:$0xf]
        %v864 = vld [vmem:[#allocation3 + $0x3c] sm:$0xf]
        %v865 = vpack.c.bf16 %v804, %v801
        %v866 = vpack.c.bf16 %v805, %v802
        %v867 = vpack.c.bf16 %v806, %v803
        %v868 = vpack.c.bf16 %v810, %v807
        %v869 = vpack.c.bf16 %v811, %v808
        %v870 = vpack.c.bf16 %v812, %v809
        %v871 = vpack.c.bf16 %v816, %v813
        %v872 = vpack.c.bf16 %v817, %v814
        %v873 = vpack.c.bf16 %v818, %v815
        %v874 = vpack.c.bf16 %v822, %v819
        %v875 = vpack.c.bf16 %v823, %v820
        %v876 = vpack.c.bf16 %v824, %v821
        %v877 = vpack.c.bf16 %v828, %v825
        %v878 = vpack.c.bf16 %v829, %v826
        %v879 = vpack.c.bf16 %v830, %v827
        %v880 = vpack.c.bf16 %v834, %v831
        %v881 = vpack.c.bf16 %v835, %v832
        %v882 = vpack.c.bf16 %v836, %v833
        %v883 = vpack.c.bf16 %v840, %v837
        %v884 = vpack.c.bf16 %v841, %v838
        %v885 = vpack.c.bf16 %v842, %v839
        %v886 = vpack.c.bf16 %v846, %v843
        %v887 = vpack.c.bf16 %v847, %v844
        %v888 = vpack.c.bf16 %v848, %v845
        %v889 = vld [vmem:[%s568] sm:$0xff]
        %v890 = vld [vmem:[%s568 + $0x8] sm:$0xff]
        %v891 = vld [vmem:[%s568 + $0x10] sm:$0xff]
        %v892 = vld [vmem:[%s568 + $0x18] sm:$0xff]
        %v893 = vld [vmem:[%s568 + $0x20] sm:$0xff]
        %v894 = vld [vmem:[%s568 + $0x28] sm:$0xff]
        %v895 = vld [vmem:[%s568 + $0x30] sm:$0xff]
        %v896 = vld [vmem:[%s568 + $0x38] sm:$0xff]
        %v897 = vld [vmem:[%s568 + $0x40] sm:$0xff]
        %v898 = vld [vmem:[%s568 + $0x48] sm:$0xff]
        %v899 = vld [vmem:[%s568 + $0x50] sm:$0xff]
        %v900 = vld [vmem:[%s568 + $0x58] sm:$0xff]
        %v901 = vld [vmem:[%s568 + $0x60] sm:$0xff]
        %v902 = vld [vmem:[%s568 + $0x68] sm:$0xff]
        %v903 = vld [vmem:[%s568 + $0x70] sm:$0xff]
        %v904 = vld [vmem:[%s568 + $0x78] sm:$0xff]
        %v905 = vld [vmem:[%s568 + $0x80] sm:$0xff]
        %v906 = vld [vmem:[%s568 + $0x88] sm:$0xff]
        %v907 = vld [vmem:[%s568 + $0x90] sm:$0xff]
        %v908 = vld [vmem:[%s568 + $0x98] sm:$0xff]
        %v909 = vld [vmem:[%s568 + $0xa0] sm:$0xff]
        %v910 = vld [vmem:[%s568 + $0xa8] sm:$0xff]
        %v911 = vld [vmem:[%s568 + $0xb0] sm:$0xff]
        %v912 = vld [vmem:[%s568 + $0xb8] sm:$0xff]
        %v913 = vld [vmem:[%s568 + $0xc0] sm:$0xff]
        %v914 = vld [vmem:[%s568 + $0xc8] sm:$0xff]
        %v915 = vld [vmem:[%s568 + $0xd0] sm:$0xff]
        %v916 = vld [vmem:[%s568 + $0xd8] sm:$0xff]
        %v917 = vld [vmem:[%s568 + $0xe0] sm:$0xff]
        %v918 = vld [vmem:[%s568 + $0xe8] sm:$0xff]
        %v919 = vld [vmem:[%s568 + $0xf0] sm:$0xff]
        %v920 = vld [vmem:[%s568 + $0xf8] sm:$0xff]
        %v921 = vld [vmem:[%s568 + $0x100] sm:$0xff]
        %v922 = vld [vmem:[%s568 + $0x108] sm:$0xff]
        %v923 = vld [vmem:[%s568 + $0x110] sm:$0xff]
        %v924 = vld [vmem:[%s568 + $0x118] sm:$0xff]
        %v925 = vld [vmem:[%s568 + $0x120] sm:$0xff]
        %v926 = vld [vmem:[%s568 + $0x128] sm:$0xff]
        %v927 = vld [vmem:[%s568 + $0x130] sm:$0xff]
        %v928 = vld [vmem:[%s568 + $0x138] sm:$0xff]
        %v929 = vld [vmem:[%s568 + $0x140] sm:$0xff]
        %v930 = vld [vmem:[%s568 + $0x148] sm:$0xff]
        %v931 = vld [vmem:[%s568 + $0x150] sm:$0xff]
        %v932 = vld [vmem:[%s568 + $0x158] sm:$0xff]
        %v933 = vld [vmem:[%s568 + $0x160] sm:$0xff]
        %v934 = vld [vmem:[%s568 + $0x168] sm:$0xff]
        %v935 = vld [vmem:[%s568 + $0x170] sm:$0xff]
        %v936 = vld [vmem:[%s568 + $0x178] sm:$0xff]
        %v953 = vunpack.c.l.b16 %v849
        %v954 = vunpack.c.l.b16 %v850
        %v955 = vunpack.c.l.b16 %v851
        %v956 = vunpack.c.l.b16 %v852
        %v957 = vunpack.c.l.b16 %v853
        %v958 = vunpack.c.l.b16 %v854
        %v959 = vunpack.c.l.b16 %v855
        %v960 = vunpack.c.l.b16 %v856
        %v961 = vunpack.c.l.b16 %v857
        %v962 = vunpack.c.l.b16 %v858
        %v963 = vunpack.c.l.b16 %v859
        %v964 = vunpack.c.l.b16 %v860
        %v965 = vunpack.c.l.b16 %v861
        %v966 = vunpack.c.l.b16 %v862
        %v967 = vunpack.c.l.b16 %v863
        %v968 = vunpack.c.l.b16 %v864
        %v969 = vpack.c.b16 %v954, %v953
        %v970 = vpack.c.b16 %v956, %v955
        %v971 = vpack.c.b16 %v958, %v957
        %v972 = vpack.c.b16 %v960, %v959
        %v973 = vpack.c.b16 %v962, %v961
        %v974 = vpack.c.b16 %v964, %v963
        %v975 = vpack.c.b16 %v966, %v965
        %v976 = vpack.c.b16 %v968, %v967
        %985 = vmatprep.subr.bf16.mxu0 %v866
        %986 = vmatpush1.bf16.msra.mxu0 %v865
        %987 = vmatprep.subr.bf16.mxu0 %v869
        %988 = vmatpush1.bf16.msra.mxu0 %v868
        %989 = vmatprep.subr.bf16.mxu0 %v872
        %990 = vmatpush1.bf16.msra.mxu0 %v871
        %991 = vmatprep.subr.bf16.mxu0 %v875
        %992 = vmatpush1.bf16.msra.mxu0 %v874
        %993 = vmatprep.subr.bf16.mxu0 %v878
        %994 = vmatpush1.bf16.msra.mxu0 %v877
        %995 = vmatprep.subr.bf16.mxu0 %v881
        %996 = vmatpush1.bf16.msra.mxu0 %v880
        %997 = vmatprep.subr.bf16.mxu0 %v884
        %998 = vmatpush1.bf16.msra.mxu0 %v883
        %999 = vmatprep.subr.bf16.mxu0 %v887
        %1000 = vmatpush1.bf16.msra.mxu0 %v886
        %1001 = vmatprep.subr.bf16.mxu0 0
        %1002 = vmatpush1.bf16.msra.mxu0 0
        %1003 = vmatprep.subr.bf16.mxu0 0
        %1004 = vmatpush1.bf16.msra.mxu0 0
        %1005 = vmatprep.subr.bf16.mxu0 0
        %1006 = vmatpush1.bf16.msra.mxu0 0
        %1007 = vmatprep.subr.bf16.mxu0 0
        %1008 = vmatpush1.bf16.msra.mxu0 0
        %1009 = vmatprep.subr.bf16.mxu0 0
        %1010 = vmatpush1.bf16.msra.mxu0 0
        %1011 = vmatprep.subr.bf16.mxu0 0
        %1012 = vmatpush1.bf16.msra.mxu0 0
        %1013 = vmatprep.subr.bf16.mxu0 0
        %1014 = vmatpush1.bf16.msra.mxu0 0
        %1015 = vmatprep.subr.bf16.mxu0 0
        %1016 = vmatpush1.bf16.msra.mxu0 0
        %1017 = vmatprep.mubr.bf16.mxu0 0
        %1018 = vmatmul.mubr.bf16.gmra.mrb[0].mxu0 %v969
        %v1019 = vpop.f32.mrb[0].mxu0
        %v1020 = vadd.f32 %v889, %v1019
        %v1021 = vpop.f32.mrb[0].mxu0
        %v1022 = vadd.f32 %v890, %v1021
        %v1023 = vpop.f32.mrb[0].mxu0
        %v1024 = vadd.f32 %v892, %v1023
        %v1025 = vpop.f32.mrb[0].mxu0
        %v1026 = vadd.f32 %v893, %v1025
        %1027 = vmatprep.mubr.bf16.mxu0 0
        %1028 = vmatmul.mubr.bf16.gmra.mrb[0].mxu0 %v970
        %v1029 = vpop.f32.mrb[0].mxu0
        %v1030 = vadd.f32 %v895, %v1029
        %v1031 = vpop.f32.mrb[0].mxu0
        %v1032 = vadd.f32 %v896, %v1031
        %v1033 = vpop.f32.mrb[0].mxu0
        %v1034 = vadd.f32 %v898, %v1033
        %v1035 = vpop.f32.mrb[0].mxu0
        %v1036 = vadd.f32 %v899, %v1035
        %1037 = vmatprep.mubr.bf16.mxu0 0
        %1038 = vmatmul.mubr.bf16.gmra.mrb[0].mxu0 %v971
        %v1039 = vpop.f32.mrb[0].mxu0
        %v1040 = vadd.f32 %v901, %v1039
        %v1041 = vpop.f32.mrb[0].mxu0
        %v1042 = vadd.f32 %v902, %v1041
        %v1043 = vpop.f32.mrb[0].mxu0
        %v1044 = vadd.f32 %v904, %v1043
        %v1045 = vpop.f32.mrb[0].mxu0
        %v1046 = vadd.f32 %v905, %v1045
        %1047 = vmatprep.mubr.bf16.mxu0 0
        %1048 = vmatmul.mubr.bf16.gmra.mrb[0].mxu0 %v972
        %v1049 = vpop.f32.mrb[0].mxu0
        %v1050 = vadd.f32 %v907, %v1049
        %v1051 = vpop.f32.mrb[0].mxu0
        %v1052 = vadd.f32 %v908, %v1051
        %v1053 = vpop.f32.mrb[0].mxu0
        %v1054 = vadd.f32 %v910, %v1053
        %v1055 = vpop.f32.mrb[0].mxu0
        %v1056 = vadd.f32 %v911, %v1055
        %1057 = vmatprep.mubr.bf16.mxu0 0
        %1058 = vmatmul.mubr.bf16.gmra.mrb[0].mxu0 %v973
        %v1059 = vpop.f32.mrb[0].mxu0
        %v1060 = vadd.f32 %v913, %v1059
        %v1061 = vpop.f32.mrb[0].mxu0
        %v1062 = vadd.f32 %v914, %v1061
        %v1063 = vpop.f32.mrb[0].mxu0
        %v1064 = vadd.f32 %v916, %v1063
        %v1065 = vpop.f32.mrb[0].mxu0
        %v1066 = vadd.f32 %v917, %v1065
        %1067 = vmatprep.mubr.bf16.mxu0 0
        %1068 = vmatmul.mubr.bf16.gmra.mrb[0].mxu0 %v974
        %v1069 = vpop.f32.mrb[0].mxu0
        %v1070 = vadd.f32 %v919, %v1069
        %v1071 = vpop.f32.mrb[0].mxu0
        %v1072 = vadd.f32 %v920, %v1071
        %v1073 = vpop.f32.mrb[0].mxu0
        %v1074 = vadd.f32 %v922, %v1073
        %v1075 = vpop.f32.mrb[0].mxu0
        %v1076 = vadd.f32 %v923, %v1075
        %1077 = vmatprep.mubr.bf16.mxu0 0
        %1078 = vmatmul.mubr.bf16.gmra.mrb[0].mxu0 %v975
        %v1079 = vpop.f32.mrb[0].mxu0
        %v1080 = vadd.f32 %v925, %v1079
        %v1081 = vpop.f32.mrb[0].mxu0
        %v1082 = vadd.f32 %v926, %v1081
        %v1083 = vpop.f32.mrb[0].mxu0
        %v1084 = vadd.f32 %v928, %v1083
        %v1085 = vpop.f32.mrb[0].mxu0
        %v1086 = vadd.f32 %v929, %v1085
        %1087 = vmatprep.mubr.bf16.mxu0 0
        %1088 = vmatmul.mubr.bf16.gmra.mrb[0].mxu0 %v976
        %v1089 = vpop.f32.mrb[0].mxu0
        %v1090 = vadd.f32 %v931, %v1089
        %v1091 = vpop.f32.mrb[0].mxu0
        %v1092 = vadd.f32 %v932, %v1091
        %v1093 = vpop.f32.mrb[0].mxu0
        %v1094 = vadd.f32 %v934, %v1093
        %v1095 = vpop.f32.mrb[0].mxu0
        %v1096 = vadd.f32 %v935, %v1095
        %1097 = vdwg.mxu0
        %1098 = vmatprep.subr.bf16.mxu0 0
        %1099 = vmatpush1.bf16.msra.mxu0 %v867
        %1100 = vmatprep.subr.bf16.mxu0 0
        %1101 = vmatpush1.bf16.msra.mxu0 %v870
        %1102 = vmatprep.subr.bf16.mxu0 0
        %1103 = vmatpush1.bf16.msra.mxu0 %v873
        %1104 = vmatprep.subr.bf16.mxu0 0
        %1105 = vmatpush1.bf16.msra.mxu0 %v876
        %1106 = vmatprep.subr.bf16.mxu0 0
        %1107 = vmatpush1.bf16.msra.mxu0 %v879
        %1108 = vmatprep.subr.bf16.mxu0 0
        %1109 = vmatpush1.bf16.msra.mxu0 %v882
        %1110 = vmatprep.subr.bf16.mxu0 0
        %1111 = vmatpush1.bf16.msra.mxu0 %v885
        %1112 = vmatprep.subr.bf16.mxu0 0
        %1113 = vmatpush1.bf16.msra.mxu0 %v888
        %1114 = vmatprep.subr.bf16.mxu0 0
        %1115 = vmatpush1.bf16.msra.mxu0 0
        %1116 = vmatprep.subr.bf16.mxu0 0
        %1117 = vmatpush1.bf16.msra.mxu0 0
        %1118 = vmatprep.subr.bf16.mxu0 0
        %1119 = vmatpush1.bf16.msra.mxu0 0
        %1120 = vmatprep.subr.bf16.mxu0 0
        %1121 = vmatpush1.bf16.msra.mxu0 0
        %1122 = vmatprep.subr.bf16.mxu0 0
        %1123 = vmatpush1.bf16.msra.mxu0 0
        %1124 = vmatprep.subr.bf16.mxu0 0
        %1125 = vmatpush1.bf16.msra.mxu0 0
        %1126 = vmatprep.subr.bf16.mxu0 0
        %1127 = vmatpush1.bf16.msra.mxu0 0
        %1128 = vmatprep.subr.bf16.mxu0 0
        %1129 = vmatpush1.bf16.msra.mxu0 0
        %1130 = vmatprep.mubr.bf16.mxu0 0
        %1131 = vmatmul.mubr.bf16.gmra.mrb[0].mxu0 %v969
        %v1132 = vpop.f32.mrb[0].mxu0
        %v1133 = vadd.f32 %v891, %v1132
        %v1134 = vpop.f32.mrb[0].mxu0
        %v1135 = vpop.f32.mrb[0].mxu0
        %v1136 = vadd.f32 %v894, %v1135
        %v1137 = vpop.f32.mrb[0].mxu0
        %1138 = vmatprep.mubr.bf16.mxu0 0
        %1139 = vmatmul.mubr.bf16.gmra.mrb[0].mxu0 %v970
        %v1140 = vpop.f32.mrb[0].mxu0
        %v1141 = vadd.f32 %v897, %v1140
        %v1142 = vpop.f32.mrb[0].mxu0
        %v1143 = vpop.f32.mrb[0].mxu0
        %v1144 = vadd.f32 %v900, %v1143
        %v1145 = vpop.f32.mrb[0].mxu0
        %1146 = vmatprep.mubr.bf16.mxu0 0
        %1147 = vmatmul.mubr.bf16.gmra.mrb[0].mxu0 %v971
        %v1148 = vpop.f32.mrb[0].mxu0
        %v1149 = vadd.f32 %v903, %v1148
        %v1150 = vpop.f32.mrb[0].mxu0
        %v1151 = vpop.f32.mrb[0].mxu0
        %v1152 = vadd.f32 %v906, %v1151
        %v1153 = vpop.f32.mrb[0].mxu0
        %1154 = vmatprep.mubr.bf16.mxu0 0
        %1155 = vmatmul.mubr.bf16.gmra.mrb[0].mxu0 %v972
        %v1156 = vpop.f32.mrb[0].mxu0
        %v1157 = vadd.f32 %v909, %v1156
        %v1158 = vpop.f32.mrb[0].mxu0
        %v1159 = vpop.f32.mrb[0].mxu0
        %v1160 = vadd.f32 %v912, %v1159
        %v1161 = vpop.f32.mrb[0].mxu0
        %1162 = vmatprep.mubr.bf16.mxu0 0
        %1163 = vmatmul.mubr.bf16.gmra.mrb[0].mxu0 %v973
        %v1164 = vpop.f32.mrb[0].mxu0
        %v1165 = vadd.f32 %v915, %v1164
        %v1166 = vpop.f32.mrb[0].mxu0
        %v1167 = vpop.f32.mrb[0].mxu0
        %v1168 = vadd.f32 %v918, %v1167
        %v1169 = vpop.f32.mrb[0].mxu0
        %1170 = vmatprep.mubr.bf16.mxu0 0
        %1171 = vmatmul.mubr.bf16.gmra.mrb[0].mxu0 %v974
        %v1172 = vpop.f32.mrb[0].mxu0
        %v1173 = vadd.f32 %v921, %v1172
        %v1174 = vpop.f32.mrb[0].mxu0
        %v1175 = vpop.f32.mrb[0].mxu0
        %v1176 = vadd.f32 %v924, %v1175
        %v1177 = vpop.f32.mrb[0].mxu0
        %1178 = vmatprep.mubr.bf16.mxu0 0
        %1179 = vmatmul.mubr.bf16.gmra.mrb[0].mxu0 %v975
        %v1180 = vpop.f32.mrb[0].mxu0
        %v1181 = vadd.f32 %v927, %v1180
        %v1182 = vpop.f32.mrb[0].mxu0
        %v1183 = vpop.f32.mrb[0].mxu0
        %v1184 = vadd.f32 %v930, %v1183
        %v1185 = vpop.f32.mrb[0].mxu0
        %1186 = vmatprep.mubr.bf16.mxu0 0
        %1187 = vmatmul.mubr.bf16.gmra.mrb[0].mxu0 %v976
        %v1188 = vpop.f32.mrb[0].mxu0
        %v1189 = vadd.f32 %v933, %v1188
        %v1190 = vpop.f32.mrb[0].mxu0
        %v1191 = vpop.f32.mrb[0].mxu0
        %v1192 = vadd.f32 %v936, %v1191
        %v1193 = vpop.f32.mrb[0].mxu0
        %1194 = vdwg.mxu0
        %v1195 = vpack.c.bf16 %v1024, %v1020
        %v1196 = vpack.c.bf16 %v1026, %v1022
        %v1197 = vpack.c.bf16 %v1136, %v1133
        %v1198 = vpack.c.bf16 %v1034, %v1030
        %v1199 = vpack.c.bf16 %v1036, %v1032
        %v1200 = vpack.c.bf16 %v1144, %v1141
        %v1201 = vpack.c.bf16 %v1044, %v1040
        %v1202 = vpack.c.bf16 %v1046, %v1042
        %v1203 = vpack.c.bf16 %v1152, %v1149
        %v1204 = vpack.c.bf16 %v1054, %v1050
        %v1205 = vpack.c.bf16 %v1056, %v1052
        %v1206 = vpack.c.bf16 %v1160, %v1157
        %v1207 = vpack.c.bf16 %v1064, %v1060
        %v1208 = vpack.c.bf16 %v1066, %v1062
        %v1209 = vpack.c.bf16 %v1168, %v1165
        %v1210 = vpack.c.bf16 %v1074, %v1070
        %v1211 = vpack.c.bf16 %v1076, %v1072
        %v1212 = vpack.c.bf16 %v1176, %v1173
        %v1213 = vpack.c.bf16 %v1084, %v1080
        %v1214 = vpack.c.bf16 %v1086, %v1082
        %v1215 = vpack.c.bf16 %v1184, %v1181
        %v1216 = vpack.c.bf16 %v1094, %v1090
        %v1217 = vpack.c.bf16 %v1096, %v1092
        %v1218 = vpack.c.bf16 %v1192, %v1189
        %v1219 = vld [vmem:[%s577] sm:$0xff]
        %v1220 = vld [vmem:[%s577 + $0x8] sm:$0xff]
        %v1221 = vld [vmem:[%s577 + $0x10] sm:$0xff]
        %v1222 = vld [vmem:[%s577 + $0x18] sm:$0xff]
        %v1223 = vld [vmem:[%s577 + $0x20] sm:$0xff]
        %v1224 = vld [vmem:[%s577 + $0x28] sm:$0xff]
        %v1225 = vld [vmem:[%s577 + $0x30] sm:$0xff]
        %v1226 = vld [vmem:[%s577 + $0x38] sm:$0xff]
        %v1227 = vld [vmem:[%s577 + $0x40] sm:$0xff]
        %v1228 = vld [vmem:[%s577 + $0x48] sm:$0xff]
        %v1229 = vld [vmem:[%s577 + $0x50] sm:$0xff]
        %v1230 = vld [vmem:[%s577 + $0x58] sm:$0xff]
        %v1231 = vld [vmem:[%s577 + $0x60] sm:$0xff]
        %v1232 = vld [vmem:[%s577 + $0x68] sm:$0xff]
        %v1233 = vld [vmem:[%s577 + $0x70] sm:$0xff]
        %v1234 = vld [vmem:[%s577 + $0x78] sm:$0xff]
        %v1235 = vld [vmem:[%s577 + $0x80] sm:$0xff]
        %v1236 = vld [vmem:[%s577 + $0x88] sm:$0xff]
        %v1237 = vld [vmem:[%s577 + $0x90] sm:$0xff]
        %v1238 = vld [vmem:[%s577 + $0x98] sm:$0xff]
        %v1239 = vld [vmem:[%s577 + $0xa0] sm:$0xff]
        %v1240 = vld [vmem:[%s577 + $0xa8] sm:$0xff]
        %v1241 = vld [vmem:[%s577 + $0xb0] sm:$0xff]
        %v1242 = vld [vmem:[%s577 + $0xb8] sm:$0xff]
        %v1243 = vld [vmem:[%s577 + $0xc0] sm:$0xff]
        %v1244 = vld [vmem:[%s577 + $0xc8] sm:$0xff]
        %v1245 = vld [vmem:[%s577 + $0xd0] sm:$0xff]
        %v1246 = vld [vmem:[%s577 + $0xd8] sm:$0xff]
        %v1247 = vld [vmem:[%s577 + $0xe0] sm:$0xff]
        %v1248 = vld [vmem:[%s577 + $0xe8] sm:$0xff]
        %v1249 = vld [vmem:[%s577 + $0xf0] sm:$0xff]
        %v1250 = vld [vmem:[%s577 + $0xf8] sm:$0xff]
        %v1251 = vld [vmem:[%s577 + $0x100] sm:$0xff]
        %v1252 = vld [vmem:[%s577 + $0x108] sm:$0xff]
        %v1253 = vld [vmem:[%s577 + $0x110] sm:$0xff]
        %v1254 = vld [vmem:[%s577 + $0x118] sm:$0xff]
        %v1255 = vld [vmem:[%s577 + $0x120] sm:$0xff]
        %v1256 = vld [vmem:[%s577 + $0x128] sm:$0xff]
        %v1257 = vld [vmem:[%s577 + $0x130] sm:$0xff]
        %v1258 = vld [vmem:[%s577 + $0x138] sm:$0xff]
        %v1259 = vld [vmem:[%s577 + $0x140] sm:$0xff]
        %v1260 = vld [vmem:[%s577 + $0x148] sm:$0xff]
        %v1261 = vld [vmem:[%s577 + $0x150] sm:$0xff]
        %v1262 = vld [vmem:[%s577 + $0x158] sm:$0xff]
        %v1263 = vld [vmem:[%s577 + $0x160] sm:$0xff]
        %v1264 = vld [vmem:[%s577 + $0x168] sm:$0xff]
        %v1265 = vld [vmem:[%s577 + $0x170] sm:$0xff]
        %v1266 = vld [vmem:[%s577 + $0x178] sm:$0xff]
        %v1267 = vld [vmem:[%s577 + $0x180] sm:$0xff]
        %v1268 = vld [vmem:[%s577 + $0x188] sm:$0xff]
        %v1269 = vld [vmem:[%s577 + $0x190] sm:$0xff]
        %v1270 = vld [vmem:[%s577 + $0x198] sm:$0xff]
        %v1271 = vld [vmem:[%s577 + $0x1a0] sm:$0xff]
        %v1272 = vld [vmem:[%s577 + $0x1a8] sm:$0xff]
        %v1273 = vld [vmem:[%s577 + $0x1b0] sm:$0xff]
        %v1274 = vld [vmem:[%s577 + $0x1b8] sm:$0xff]
        %v1275 = vld [vmem:[%s577 + $0x1c0] sm:$0xff]
        %v1276 = vld [vmem:[%s577 + $0x1c8] sm:$0xff]
        %v1277 = vld [vmem:[%s577 + $0x1d0] sm:$0xff]
        %v1278 = vld [vmem:[%s577 + $0x1d8] sm:$0xff]
        %v1279 = vld [vmem:[%s577 + $0x1e0] sm:$0xff]
        %v1280 = vld [vmem:[%s577 + $0x1e8] sm:$0xff]
        %v1281 = vld [vmem:[%s577 + $0x1f0] sm:$0xff]
        %v1282 = vld [vmem:[%s577 + $0x1f8] sm:$0xff]
        %v1283 = vld [vmem:[%s577 + $0x200] sm:$0xff]
        %v1284 = vld [vmem:[%s577 + $0x208] sm:$0xff]
        %v1285 = vld [vmem:[%s577 + $0x210] sm:$0xff]
        %v1286 = vld [vmem:[%s577 + $0x218] sm:$0xff]
        %v1287 = vld [vmem:[%s577 + $0x220] sm:$0xff]
        %v1288 = vld [vmem:[%s577 + $0x228] sm:$0xff]
        %v1289 = vld [vmem:[%s577 + $0x230] sm:$0xff]
        %v1290 = vld [vmem:[%s577 + $0x238] sm:$0xff]
        %v1291 = vld [vmem:[%s577 + $0x240] sm:$0xff]
        %v1292 = vld [vmem:[%s577 + $0x248] sm:$0xff]
        %v1293 = vld [vmem:[%s577 + $0x250] sm:$0xff]
        %v1294 = vld [vmem:[%s577 + $0x258] sm:$0xff]
        %v1295 = vld [vmem:[%s577 + $0x260] sm:$0xff]
        %v1296 = vld [vmem:[%s577 + $0x268] sm:$0xff]
        %v1297 = vld [vmem:[%s577 + $0x270] sm:$0xff]
        %v1298 = vld [vmem:[%s577 + $0x278] sm:$0xff]
        %v1299 = vld [vmem:[%s577 + $0x280] sm:$0xff]
        %v1300 = vld [vmem:[%s577 + $0x288] sm:$0xff]
        %v1301 = vld [vmem:[%s577 + $0x290] sm:$0xff]
        %v1302 = vld [vmem:[%s577 + $0x298] sm:$0xff]
        %v1303 = vld [vmem:[%s577 + $0x2a0] sm:$0xff]
        %v1304 = vld [vmem:[%s577 + $0x2a8] sm:$0xff]
        %v1305 = vld [vmem:[%s577 + $0x2b0] sm:$0xff]
        %v1306 = vld [vmem:[%s577 + $0x2b8] sm:$0xff]
        %v1307 = vld [vmem:[%s577 + $0x2c0] sm:$0xff]
        %v1308 = vld [vmem:[%s577 + $0x2c8] sm:$0xff]
        %v1309 = vld [vmem:[%s577 + $0x2d0] sm:$0xff]
        %v1310 = vld [vmem:[%s577 + $0x2d8] sm:$0xff]
        %v1311 = vld [vmem:[%s577 + $0x2e0] sm:$0xff]
        %v1312 = vld [vmem:[%s577 + $0x2e8] sm:$0xff]
        %v1313 = vld [vmem:[%s577 + $0x2f0] sm:$0xff]
        %v1314 = vld [vmem:[%s577 + $0x2f8] sm:$0xff]
        %v1315 = vld [vmem:[%s577 + $0x300] sm:$0xff]
        %v1316 = vld [vmem:[%s577 + $0x308] sm:$0xff]
        %v1317 = vld [vmem:[%s577 + $0x310] sm:$0xff]
        %v1318 = vld [vmem:[%s577 + $0x318] sm:$0xff]
        %v1319 = vld [vmem:[%s577 + $0x320] sm:$0xff]
        %v1320 = vld [vmem:[%s577 + $0x328] sm:$0xff]
        %v1321 = vld [vmem:[%s577 + $0x330] sm:$0xff]
        %v1322 = vld [vmem:[%s577 + $0x338] sm:$0xff]
        %v1323 = vld [vmem:[%s577 + $0x340] sm:$0xff]
        %v1324 = vld [vmem:[%s577 + $0x348] sm:$0xff]
        %v1325 = vld [vmem:[%s577 + $0x350] sm:$0xff]
        %v1326 = vld [vmem:[%s577 + $0x358] sm:$0xff]
        %v1327 = vld [vmem:[%s577 + $0x360] sm:$0xff]
        %v1328 = vld [vmem:[%s577 + $0x368] sm:$0xff]
        %v1329 = vld [vmem:[%s577 + $0x370] sm:$0xff]
        %v1330 = vld [vmem:[%s577 + $0x378] sm:$0xff]
        %v1331 = vld [vmem:[%s577 + $0x380] sm:$0xff]
        %v1332 = vld [vmem:[%s577 + $0x388] sm:$0xff]
        %v1333 = vld [vmem:[%s577 + $0x390] sm:$0xff]
        %v1334 = vld [vmem:[%s577 + $0x398] sm:$0xff]
        %v1335 = vld [vmem:[%s577 + $0x3a0] sm:$0xff]
        %v1336 = vld [vmem:[%s577 + $0x3a8] sm:$0xff]
        %v1337 = vld [vmem:[%s577 + $0x3b0] sm:$0xff]
        %v1338 = vld [vmem:[%s577 + $0x3b8] sm:$0xff]
        %v1339 = vld [vmem:[%s577 + $0x3c0] sm:$0xff]
        %v1340 = vld [vmem:[%s577 + $0x3c8] sm:$0xff]
        %v1341 = vld [vmem:[%s577 + $0x3d0] sm:$0xff]
        %v1342 = vld [vmem:[%s577 + $0x3d8] sm:$0xff]
        %v1343 = vld [vmem:[%s577 + $0x3e0] sm:$0xff]
        %v1344 = vld [vmem:[%s577 + $0x3e8] sm:$0xff]
        %v1345 = vld [vmem:[%s577 + $0x3f0] sm:$0xff]
        %v1346 = vld [vmem:[%s577 + $0x3f8] sm:$0xff]
        %v1347 = vld [vmem:[%s577 + $0x400] sm:$0xff]
        %v1348 = vld [vmem:[%s577 + $0x408] sm:$0xff]
        %v1349 = vld [vmem:[%s577 + $0x410] sm:$0xff]
        %v1350 = vld [vmem:[%s577 + $0x418] sm:$0xff]
        %v1351 = vld [vmem:[%s577 + $0x420] sm:$0xff]
        %v1352 = vld [vmem:[%s577 + $0x428] sm:$0xff]
        %v1353 = vld [vmem:[%s577 + $0x430] sm:$0xff]
        %v1354 = vld [vmem:[%s577 + $0x438] sm:$0xff]
        %v1355 = vld [vmem:[%s577 + $0x440] sm:$0xff]
        %v1356 = vld [vmem:[%s577 + $0x448] sm:$0xff]
        %v1357 = vld [vmem:[%s577 + $0x450] sm:$0xff]
        %v1358 = vld [vmem:[%s577 + $0x458] sm:$0xff]
        %v1359 = vld [vmem:[%s577 + $0x460] sm:$0xff]
        %v1360 = vld [vmem:[%s577 + $0x468] sm:$0xff]
        %v1361 = vld [vmem:[%s577 + $0x470] sm:$0xff]
        %v1362 = vld [vmem:[%s577 + $0x478] sm:$0xff]
        %v1363 = vld [vmem:[%s586] sm:$0x3f]
        %v1365 = vlaneseq
        %v1366 = vshrl.u32 %v1365, 7
        %v1367 = vsub.s32 0, %v1366
        %v1368 = vrot.slane %v1363, %v1367
        %v1369 = vlaneseq
        %v1370 = vshrl.u32 %v1369, 7
        %v1371 = vsub.s32 1, %v1370
        %v1372 = vrot.slane %v1363, %v1371
        %v1373 = vlaneseq
        %v1374 = vshrl.u32 %v1373, 7
        %v1375 = vsub.s32 2, %v1374
        %v1376 = vrot.slane %v1363, %v1375
        %v1377 = vlaneseq
        %v1378 = vshrl.u32 %v1377, 7
        %v1379 = vsub.s32 3, %v1378
        %v1380 = vrot.slane %v1363, %v1379
        %v1381 = vlaneseq
        %v1382 = vshrl.u32 %v1381, 7
        %v1383 = vsub.s32 4, %v1382
        %v1384 = vrot.slane %v1363, %v1383
        %v1385 = vlaneseq
        %v1386 = vshrl.u32 %v1385, 7
        %v1387 = vsub.s32 5, %v1386
        %v1388 = vrot.slane %v1363, %v1387
        %v1539 = vunpack.c.l.b16 %v1219
        %v1540 = vunpack.c.h.b16 %v1219
        %v1541 = vunpack.c.l.b16 %v1220
        %v1542 = vunpack.c.h.b16 %v1220
        %v1543 = vunpack.c.l.b16 %v1221
        %v1544 = vunpack.c.h.b16 %v1221
        %v1545 = vunpack.c.l.b16 %v1222
        %v1546 = vunpack.c.h.b16 %v1222
        %v1547 = vunpack.c.l.b16 %v1223
        %v1548 = vunpack.c.h.b16 %v1223
        %v1549 = vunpack.c.l.b16 %v1224
        %v1550 = vunpack.c.h.b16 %v1224
        %v1551 = vunpack.c.l.b16 %v1225
        %v1552 = vunpack.c.h.b16 %v1225
        %v1553 = vunpack.c.l.b16 %v1226
        %v1554 = vunpack.c.h.b16 %v1226
        %v1555 = vunpack.c.l.b16 %v1227
        %v1556 = vunpack.c.h.b16 %v1227
        %v1557 = vunpack.c.l.b16 %v1228
        %v1558 = vunpack.c.h.b16 %v1228
        %v1559 = vunpack.c.l.b16 %v1229
        %v1560 = vunpack.c.h.b16 %v1229
        %v1561 = vunpack.c.l.b16 %v1230
        %v1562 = vunpack.c.h.b16 %v1230
        %v1563 = vunpack.c.l.b16 %v1231
        %v1564 = vunpack.c.h.b16 %v1231
        %v1565 = vunpack.c.l.b16 %v1232
        %v1566 = vunpack.c.h.b16 %v1232
        %v1567 = vunpack.c.l.b16 %v1233
        %v1568 = vunpack.c.h.b16 %v1233
        %v1569 = vunpack.c.l.b16 %v1234
        %v1570 = vunpack.c.h.b16 %v1234
        %v1571 = vunpack.c.l.b16 %v1235
        %v1572 = vunpack.c.h.b16 %v1235
        %v1573 = vunpack.c.l.b16 %v1236
        %v1574 = vunpack.c.h.b16 %v1236
        %v1575 = vunpack.c.l.b16 %v1237
        %v1576 = vunpack.c.h.b16 %v1237
        %v1577 = vunpack.c.l.b16 %v1238
        %v1578 = vunpack.c.h.b16 %v1238
        %v1579 = vunpack.c.l.b16 %v1239
        %v1580 = vunpack.c.h.b16 %v1239
        %v1581 = vunpack.c.l.b16 %v1240
        %v1582 = vunpack.c.h.b16 %v1240
        %v1583 = vunpack.c.l.b16 %v1241
        %v1584 = vunpack.c.h.b16 %v1241
        %v1585 = vunpack.c.l.b16 %v1242
        %v1586 = vunpack.c.h.b16 %v1242
        %v1587 = vunpack.c.l.b16 %v1243
        %v1588 = vunpack.c.h.b16 %v1243
        %v1589 = vunpack.c.l.b16 %v1244
        %v1590 = vunpack.c.h.b16 %v1244
        %v1591 = vunpack.c.l.b16 %v1245
        %v1592 = vunpack.c.h.b16 %v1245
        %v1593 = vunpack.c.l.b16 %v1246
        %v1594 = vunpack.c.h.b16 %v1246
        %v1595 = vunpack.c.l.b16 %v1247
        %v1596 = vunpack.c.h.b16 %v1247
        %v1597 = vunpack.c.l.b16 %v1248
        %v1598 = vunpack.c.h.b16 %v1248
        %v1599 = vunpack.c.l.b16 %v1249
        %v1600 = vunpack.c.h.b16 %v1249
        %v1601 = vunpack.c.l.b16 %v1250
        %v1602 = vunpack.c.h.b16 %v1250
        %v1603 = vunpack.c.l.b16 %v1251
        %v1604 = vunpack.c.h.b16 %v1251
        %v1605 = vunpack.c.l.b16 %v1252
        %v1606 = vunpack.c.h.b16 %v1252
        %v1607 = vunpack.c.l.b16 %v1253
        %v1608 = vunpack.c.h.b16 %v1253
        %v1609 = vunpack.c.l.b16 %v1254
        %v1610 = vunpack.c.h.b16 %v1254
        %v1611 = vunpack.c.l.b16 %v1255
        %v1612 = vunpack.c.h.b16 %v1255
        %v1613 = vunpack.c.l.b16 %v1256
        %v1614 = vunpack.c.h.b16 %v1256
        %v1615 = vunpack.c.l.b16 %v1257
        %v1616 = vunpack.c.h.b16 %v1257
        %v1617 = vunpack.c.l.b16 %v1258
        %v1618 = vunpack.c.h.b16 %v1258
        %v1619 = vunpack.c.l.b16 %v1259
        %v1620 = vunpack.c.h.b16 %v1259
        %v1621 = vunpack.c.l.b16 %v1260
        %v1622 = vunpack.c.h.b16 %v1260
        %v1623 = vunpack.c.l.b16 %v1261
        %v1624 = vunpack.c.h.b16 %v1261
        %v1625 = vunpack.c.l.b16 %v1262
        %v1626 = vunpack.c.h.b16 %v1262
        %v1627 = vunpack.c.l.b16 %v1263
        %v1628 = vunpack.c.h.b16 %v1263
        %v1629 = vunpack.c.l.b16 %v1264
        %v1630 = vunpack.c.h.b16 %v1264
        %v1631 = vunpack.c.l.b16 %v1265
        %v1632 = vunpack.c.h.b16 %v1265
        %v1633 = vunpack.c.l.b16 %v1266
        %v1634 = vunpack.c.h.b16 %v1266
        %v1635 = vunpack.c.l.b16 %v1267
        %v1636 = vunpack.c.h.b16 %v1267
        %v1637 = vunpack.c.l.b16 %v1268
        %v1638 = vunpack.c.h.b16 %v1268
        %v1639 = vunpack.c.l.b16 %v1269
        %v1640 = vunpack.c.h.b16 %v1269
        %v1641 = vunpack.c.l.b16 %v1270
        %v1642 = vunpack.c.h.b16 %v1270
        %v1643 = vunpack.c.l.b16 %v1271
        %v1644 = vunpack.c.h.b16 %v1271
        %v1645 = vunpack.c.l.b16 %v1272
        %v1646 = vunpack.c.h.b16 %v1272
        %v1647 = vunpack.c.l.b16 %v1273
        %v1648 = vunpack.c.h.b16 %v1273
        %v1649 = vunpack.c.l.b16 %v1274
        %v1650 = vunpack.c.h.b16 %v1274
        %v1651 = vunpack.c.l.b16 %v1275
        %v1652 = vunpack.c.h.b16 %v1275
        %v1653 = vunpack.c.l.b16 %v1276
        %v1654 = vunpack.c.h.b16 %v1276
        %v1655 = vunpack.c.l.b16 %v1277
        %v1656 = vunpack.c.h.b16 %v1277
        %v1657 = vunpack.c.l.b16 %v1278
        %v1658 = vunpack.c.h.b16 %v1278
        %v1659 = vunpack.c.l.b16 %v1279
        %v1660 = vunpack.c.h.b16 %v1279
        %v1661 = vunpack.c.l.b16 %v1280
        %v1662 = vunpack.c.h.b16 %v1280
        %v1663 = vunpack.c.l.b16 %v1281
        %v1664 = vunpack.c.h.b16 %v1281
        %v1665 = vunpack.c.l.b16 %v1282
        %v1666 = vunpack.c.h.b16 %v1282
        %v1667 = vunpack.c.l.b16 %v1283
        %v1668 = vunpack.c.h.b16 %v1283
        %v1669 = vunpack.c.l.b16 %v1284
        %v1670 = vunpack.c.h.b16 %v1284
        %v1671 = vunpack.c.l.b16 %v1285
        %v1672 = vunpack.c.h.b16 %v1285
        %v1673 = vunpack.c.l.b16 %v1286
        %v1674 = vunpack.c.h.b16 %v1286
        %v1675 = vunpack.c.l.b16 %v1287
        %v1676 = vunpack.c.h.b16 %v1287
        %v1677 = vunpack.c.l.b16 %v1288
        %v1678 = vunpack.c.h.b16 %v1288
        %v1679 = vunpack.c.l.b16 %v1289
        %v1680 = vunpack.c.h.b16 %v1289
        %v1681 = vunpack.c.l.b16 %v1290
        %v1682 = vunpack.c.h.b16 %v1290
        %v1683 = vunpack.c.l.b16 %v1291
        %v1684 = vunpack.c.h.b16 %v1291
        %v1685 = vunpack.c.l.b16 %v1292
        %v1686 = vunpack.c.h.b16 %v1292
        %v1687 = vunpack.c.l.b16 %v1293
        %v1688 = vunpack.c.h.b16 %v1293
        %v1689 = vunpack.c.l.b16 %v1294
        %v1690 = vunpack.c.h.b16 %v1294
        %v1691 = vunpack.c.l.b16 %v1295
        %v1692 = vunpack.c.h.b16 %v1295
        %v1693 = vunpack.c.l.b16 %v1296
        %v1694 = vunpack.c.h.b16 %v1296
        %v1695 = vunpack.c.l.b16 %v1297
        %v1696 = vunpack.c.h.b16 %v1297
        %v1697 = vunpack.c.l.b16 %v1298
        %v1698 = vunpack.c.h.b16 %v1298
        %v1699 = vunpack.c.l.b16 %v1299
        %v1700 = vunpack.c.h.b16 %v1299
        %v1701 = vunpack.c.l.b16 %v1300
        %v1702 = vunpack.c.h.b16 %v1300
        %v1703 = vunpack.c.l.b16 %v1301
        %v1704 = vunpack.c.h.b16 %v1301
        %v1705 = vunpack.c.l.b16 %v1302
        %v1706 = vunpack.c.h.b16 %v1302
        %v1707 = vunpack.c.l.b16 %v1303
        %v1708 = vunpack.c.h.b16 %v1303
        %v1709 = vunpack.c.l.b16 %v1304
        %v1710 = vunpack.c.h.b16 %v1304
        %v1711 = vunpack.c.l.b16 %v1305
        %v1712 = vunpack.c.h.b16 %v1305
        %v1713 = vunpack.c.l.b16 %v1306
        %v1714 = vunpack.c.h.b16 %v1306
        %v1715 = vunpack.c.l.b16 %v1307
        %v1716 = vunpack.c.h.b16 %v1307
        %v1717 = vunpack.c.l.b16 %v1308
        %v1718 = vunpack.c.h.b16 %v1308
        %v1719 = vunpack.c.l.b16 %v1309
        %v1720 = vunpack.c.h.b16 %v1309
        %v1721 = vunpack.c.l.b16 %v1310
        %v1722 = vunpack.c.h.b16 %v1310
        %v1723 = vunpack.c.l.b16 %v1311
        %v1724 = vunpack.c.h.b16 %v1311
        %v1725 = vunpack.c.l.b16 %v1312
        %v1726 = vunpack.c.h.b16 %v1312
        %v1727 = vunpack.c.l.b16 %v1313
        %v1728 = vunpack.c.h.b16 %v1313
        %v1729 = vunpack.c.l.b16 %v1314
        %v1730 = vunpack.c.h.b16 %v1314
        %v1731 = vunpack.c.l.b16 %v1315
        %v1732 = vunpack.c.h.b16 %v1315
        %v1733 = vunpack.c.l.b16 %v1316
        %v1734 = vunpack.c.h.b16 %v1316
        %v1735 = vunpack.c.l.b16 %v1317
        %v1736 = vunpack.c.h.b16 %v1317
        %v1737 = vunpack.c.l.b16 %v1318
        %v1738 = vunpack.c.h.b16 %v1318
        %v1739 = vunpack.c.l.b16 %v1319
        %v1740 = vunpack.c.h.b16 %v1319
        %v1741 = vunpack.c.l.b16 %v1320
        %v1742 = vunpack.c.h.b16 %v1320
        %v1743 = vunpack.c.l.b16 %v1321
        %v1744 = vunpack.c.h.b16 %v1321
        %v1745 = vunpack.c.l.b16 %v1322
        %v1746 = vunpack.c.h.b16 %v1322
        %v1747 = vunpack.c.l.b16 %v1323
        %v1748 = vunpack.c.h.b16 %v1323
        %v1749 = vunpack.c.l.b16 %v1324
        %v1750 = vunpack.c.h.b16 %v1324
        %v1751 = vunpack.c.l.b16 %v1325
        %v1752 = vunpack.c.h.b16 %v1325
        %v1753 = vunpack.c.l.b16 %v1326
        %v1754 = vunpack.c.h.b16 %v1326
        %v1755 = vunpack.c.l.b16 %v1327
        %v1756 = vunpack.c.h.b16 %v1327
        %v1757 = vunpack.c.l.b16 %v1328
        %v1758 = vunpack.c.h.b16 %v1328
        %v1759 = vunpack.c.l.b16 %v1329
        %v1760 = vunpack.c.h.b16 %v1329
        %v1761 = vunpack.c.l.b16 %v1330
        %v1762 = vunpack.c.h.b16 %v1330
        %v1763 = vunpack.c.l.b16 %v1331
        %v1764 = vunpack.c.h.b16 %v1331
        %v1765 = vunpack.c.l.b16 %v1332
        %v1766 = vunpack.c.h.b16 %v1332
        %v1767 = vunpack.c.l.b16 %v1333
        %v1768 = vunpack.c.h.b16 %v1333
        %v1769 = vunpack.c.l.b16 %v1334
        %v1770 = vunpack.c.h.b16 %v1334
        %v1771 = vunpack.c.l.b16 %v1335
        %v1772 = vunpack.c.h.b16 %v1335
        %v1773 = vunpack.c.l.b16 %v1336
        %v1774 = vunpack.c.h.b16 %v1336
        %v1775 = vunpack.c.l.b16 %v1337
        %v1776 = vunpack.c.h.b16 %v1337
        %v1777 = vunpack.c.l.b16 %v1338
        %v1778 = vunpack.c.h.b16 %v1338
        %v1779 = vunpack.c.l.b16 %v1339
        %v1780 = vunpack.c.h.b16 %v1339
        %v1781 = vunpack.c.l.b16 %v1340
        %v1782 = vunpack.c.h.b16 %v1340
        %v1783 = vunpack.c.l.b16 %v1341
        %v1784 = vunpack.c.h.b16 %v1341
        %v1785 = vunpack.c.l.b16 %v1342
        %v1786 = vunpack.c.h.b16 %v1342
        %v1787 = vunpack.c.l.b16 %v1343
        %v1788 = vunpack.c.h.b16 %v1343
        %v1789 = vunpack.c.l.b16 %v1344
        %v1790 = vunpack.c.h.b16 %v1344
        %v1791 = vunpack.c.l.b16 %v1345
        %v1792 = vunpack.c.h.b16 %v1345
        %v1793 = vunpack.c.l.b16 %v1346
        %v1794 = vunpack.c.h.b16 %v1346
        %v1795 = vunpack.c.l.b16 %v1347
        %v1796 = vunpack.c.h.b16 %v1347
        %v1797 = vunpack.c.l.b16 %v1348
        %v1798 = vunpack.c.h.b16 %v1348
        %v1799 = vunpack.c.l.b16 %v1349
        %v1800 = vunpack.c.h.b16 %v1349
        %v1801 = vunpack.c.l.b16 %v1350
        %v1802 = vunpack.c.h.b16 %v1350
        %v1803 = vunpack.c.l.b16 %v1351
        %v1804 = vunpack.c.h.b16 %v1351
        %v1805 = vunpack.c.l.b16 %v1352
        %v1806 = vunpack.c.h.b16 %v1352
        %v1807 = vunpack.c.l.b16 %v1353
        %v1808 = vunpack.c.h.b16 %v1353
        %v1809 = vunpack.c.l.b16 %v1354
        %v1810 = vunpack.c.h.b16 %v1354
        %v1811 = vunpack.c.l.b16 %v1355
        %v1812 = vunpack.c.h.b16 %v1355
        %v1813 = vunpack.c.l.b16 %v1356
        %v1814 = vunpack.c.h.b16 %v1356
        %v1815 = vunpack.c.l.b16 %v1357
        %v1816 = vunpack.c.h.b16 %v1357
        %v1817 = vunpack.c.l.b16 %v1358
        %v1818 = vunpack.c.h.b16 %v1358
        %v1819 = vunpack.c.l.b16 %v1359
        %v1820 = vunpack.c.h.b16 %v1359
        %v1821 = vunpack.c.l.b16 %v1360
        %v1822 = vunpack.c.h.b16 %v1360
        %v1823 = vunpack.c.l.b16 %v1361
        %v1824 = vunpack.c.h.b16 %v1361
        %v1825 = vunpack.c.l.b16 %v1362
        %v1826 = vunpack.c.h.b16 %v1362
        %v1827 = vpack.c.b16 %v1545, %v1539
        %v1828 = vpack.c.b16 %v1546, %v1540
        %v1829 = vpack.c.b16 %v1547, %v1541
        %v1830 = vpack.c.b16 %v1548, %v1542
        %v1831 = vpack.c.b16 %v1549, %v1543
        %v1832 = vpack.c.b16 %v1550, %v1544
        %v1833 = vpack.c.b16 %v1557, %v1551
        %v1834 = vpack.c.b16 %v1558, %v1552
        %v1835 = vpack.c.b16 %v1559, %v1553
        %v1836 = vpack.c.b16 %v1560, %v1554
        %v1837 = vpack.c.b16 %v1561, %v1555
        %v1838 = vpack.c.b16 %v1562, %v1556
        %v1839 = vpack.c.b16 %v1569, %v1563
        %v1840 = vpack.c.b16 %v1570, %v1564
        %v1841 = vpack.c.b16 %v1571, %v1565
        %v1842 = vpack.c.b16 %v1572, %v1566
        %v1843 = vpack.c.b16 %v1573, %v1567
        %v1844 = vpack.c.b16 %v1574, %v1568
        %v1845 = vpack.c.b16 %v1581, %v1575
        %v1846 = vpack.c.b16 %v1582, %v1576
        %v1847 = vpack.c.b16 %v1583, %v1577
        %v1848 = vpack.c.b16 %v1584, %v1578
        %v1849 = vpack.c.b16 %v1585, %v1579
        %v1850 = vpack.c.b16 %v1586, %v1580
        %v1851 = vpack.c.b16 %v1593, %v1587
        %v1852 = vpack.c.b16 %v1594, %v1588
        %v1853 = vpack.c.b16 %v1595, %v1589
        %v1854 = vpack.c.b16 %v1596, %v1590
        %v1855 = vpack.c.b16 %v1597, %v1591
        %v1856 = vpack.c.b16 %v1598, %v1592
        %v1857 = vpack.c.b16 %v1605, %v1599
        %v1858 = vpack.c.b16 %v1606, %v1600
        %v1859 = vpack.c.b16 %v1607, %v1601
        %v1860 = vpack.c.b16 %v1608, %v1602
        %v1861 = vpack.c.b16 %v1609, %v1603
        %v1862 = vpack.c.b16 %v1610, %v1604
        %v1863 = vpack.c.b16 %v1617, %v1611
        %v1864 = vpack.c.b16 %v1618, %v1612
        %v1865 = vpack.c.b16 %v1619, %v1613
        %v1866 = vpack.c.b16 %v1620, %v1614
        %v1867 = vpack.c.b16 %v1621, %v1615
        %v1868 = vpack.c.b16 %v1622, %v1616
        %v1869 = vpack.c.b16 %v1629, %v1623
        %v1870 = vpack.c.b16 %v1630, %v1624
        %v1871 = vpack.c.b16 %v1631, %v1625
        %v1872 = vpack.c.b16 %v1632, %v1626
        %v1873 = vpack.c.b16 %v1633, %v1627
        %v1874 = vpack.c.b16 %v1634, %v1628
        %v1875 = vpack.c.b16 %v1641, %v1635
        %v1876 = vpack.c.b16 %v1642, %v1636
        %v1877 = vpack.c.b16 %v1643, %v1637
        %v1878 = vpack.c.b16 %v1644, %v1638
        %v1879 = vpack.c.b16 %v1645, %v1639
        %v1880 = vpack.c.b16 %v1646, %v1640
        %v1881 = vpack.c.b16 %v1653, %v1647
        %v1882 = vpack.c.b16 %v1654, %v1648
        %v1883 = vpack.c.b16 %v1655, %v1649
        %v1884 = vpack.c.b16 %v1656, %v1650
        %v1885 = vpack.c.b16 %v1657, %v1651
        %v1886 = vpack.c.b16 %v1658, %v1652
        %v1887 = vpack.c.b16 %v1665, %v1659
        %v1888 = vpack.c.b16 %v1666, %v1660
        %v1889 = vpack.c.b16 %v1667, %v1661
        %v1890 = vpack.c.b16 %v1668, %v1662
        %v1891 = vpack.c.b16 %v1669, %v1663
        %v1892 = vpack.c.b16 %v1670, %v1664
        %v1893 = vpack.c.b16 %v1677, %v1671
        %v1894 = vpack.c.b16 %v1678, %v1672
        %v1895 = vpack.c.b16 %v1679, %v1673
        %v1896 = vpack.c.b16 %v1680, %v1674
        %v1897 = vpack.c.b16 %v1681, %v1675
        %v1898 = vpack.c.b16 %v1682, %v1676
        %v1899 = vpack.c.b16 %v1689, %v1683
        %v1900 = vpack.c.b16 %v1690, %v1684
        %v1901 = vpack.c.b16 %v1691, %v1685
        %v1902 = vpack.c.b16 %v1692, %v1686
        %v1903 = vpack.c.b16 %v1693, %v1687
        %v1904 = vpack.c.b16 %v1694, %v1688
        %v1905 = vpack.c.b16 %v1701, %v1695
        %v1906 = vpack.c.b16 %v1702, %v1696
        %v1907 = vpack.c.b16 %v1703, %v1697
        %v1908 = vpack.c.b16 %v1704, %v1698
        %v1909 = vpack.c.b16 %v1705, %v1699
        %v1910 = vpack.c.b16 %v1706, %v1700
        %v1911 = vpack.c.b16 %v1713, %v1707
        %v1912 = vpack.c.b16 %v1714, %v1708
        %v1913 = vpack.c.b16 %v1715, %v1709
        %v1914 = vpack.c.b16 %v1716, %v1710
        %v1915 = vpack.c.b16 %v1717, %v1711
        %v1916 = vpack.c.b16 %v1718, %v1712
        %v1917 = vpack.c.b16 %v1725, %v1719
        %v1918 = vpack.c.b16 %v1726, %v1720
        %v1919 = vpack.c.b16 %v1727, %v1721
        %v1920 = vpack.c.b16 %v1728, %v1722
        %v1921 = vpack.c.b16 %v1729, %v1723
        %v1922 = vpack.c.b16 %v1730, %v1724
        %v1923 = vpack.c.b16 %v1737, %v1731
        %v1924 = vpack.c.b16 %v1738, %v1732
        %v1925 = vpack.c.b16 %v1739, %v1733
        %v1926 = vpack.c.b16 %v1740, %v1734
        %v1927 = vpack.c.b16 %v1741, %v1735
        %v1928 = vpack.c.b16 %v1742, %v1736
        %v1929 = vpack.c.b16 %v1749, %v1743
        %v1930 = vpack.c.b16 %v1750, %v1744
        %v1931 = vpack.c.b16 %v1751, %v1745
        %v1932 = vpack.c.b16 %v1752, %v1746
        %v1933 = vpack.c.b16 %v1753, %v1747
        %v1934 = vpack.c.b16 %v1754, %v1748
        %v1935 = vpack.c.b16 %v1761, %v1755
        %v1936 = vpack.c.b16 %v1762, %v1756
        %v1937 = vpack.c.b16 %v1763, %v1757
        %v1938 = vpack.c.b16 %v1764, %v1758
        %v1939 = vpack.c.b16 %v1765, %v1759
        %v1940 = vpack.c.b16 %v1766, %v1760
        %v1941 = vpack.c.b16 %v1773, %v1767
        %v1942 = vpack.c.b16 %v1774, %v1768
        %v1943 = vpack.c.b16 %v1775, %v1769
        %v1944 = vpack.c.b16 %v1776, %v1770
        %v1945 = vpack.c.b16 %v1777, %v1771
        %v1946 = vpack.c.b16 %v1778, %v1772
        %v1947 = vpack.c.b16 %v1785, %v1779
        %v1948 = vpack.c.b16 %v1786, %v1780
        %v1949 = vpack.c.b16 %v1787, %v1781
        %v1950 = vpack.c.b16 %v1788, %v1782
        %v1951 = vpack.c.b16 %v1789, %v1783
        %v1952 = vpack.c.b16 %v1790, %v1784
        %v1953 = vpack.c.b16 %v1797, %v1791
        %v1954 = vpack.c.b16 %v1798, %v1792
        %v1955 = vpack.c.b16 %v1799, %v1793
        %v1956 = vpack.c.b16 %v1800, %v1794
        %v1957 = vpack.c.b16 %v1801, %v1795
        %v1958 = vpack.c.b16 %v1802, %v1796
        %v1959 = vpack.c.b16 %v1809, %v1803
        %v1960 = vpack.c.b16 %v1810, %v1804
        %v1961 = vpack.c.b16 %v1811, %v1805
        %v1962 = vpack.c.b16 %v1812, %v1806
        %v1963 = vpack.c.b16 %v1813, %v1807
        %v1964 = vpack.c.b16 %v1814, %v1808
        %v1965 = vpack.c.b16 %v1821, %v1815
        %v1966 = vpack.c.b16 %v1822, %v1816
        %v1967 = vpack.c.b16 %v1823, %v1817
        %v1968 = vpack.c.b16 %v1824, %v1818
        %v1969 = vpack.c.b16 %v1825, %v1819
        %v1970 = vpack.c.b16 %v1826, %v1820
        %2115 = vmatprep.subr.bf16.mxu0 %v1828
        %2116 = vmatpush1.bf16.msra.mxu0 %v1827
        %2117 = vmatprep.subr.bf16.mxu0 %v1834
        %2118 = vmatpush1.bf16.msra.mxu0 %v1833
        %2119 = vmatprep.subr.bf16.mxu0 %v1840
        %2120 = vmatpush1.bf16.msra.mxu0 %v1839
        %2121 = vmatprep.subr.bf16.mxu0 %v1846
        %2122 = vmatpush1.bf16.msra.mxu0 %v1845
        %2123 = vmatprep.subr.bf16.mxu0 %v1852
        %2124 = vmatpush1.bf16.msra.mxu0 %v1851
        %2125 = vmatprep.subr.bf16.mxu0 %v1858
        %2126 = vmatpush1.bf16.msra.mxu0 %v1857
        %2127 = vmatprep.subr.bf16.mxu0 %v1864
        %2128 = vmatpush1.bf16.msra.mxu0 %v1863
        %2129 = vmatprep.subr.bf16.mxu0 %v1870
        %2130 = vmatpush1.bf16.msra.mxu0 %v1869
        %2131 = vmatprep.subr.bf16.mxu0 %v1876
        %2132 = vmatpush1.bf16.msra.mxu0 %v1875
        %2133 = vmatprep.subr.bf16.mxu0 %v1882
        %2134 = vmatpush1.bf16.msra.mxu0 %v1881
        %2135 = vmatprep.subr.bf16.mxu0 %v1888
        %2136 = vmatpush1.bf16.msra.mxu0 %v1887
        %2137 = vmatprep.subr.bf16.mxu0 %v1894
        %2138 = vmatpush1.bf16.msra.mxu0 %v1893
        %2139 = vmatprep.subr.bf16.mxu0 %v1900
        %2140 = vmatpush1.bf16.msra.mxu0 %v1899
        %2141 = vmatprep.subr.bf16.mxu0 %v1906
        %2142 = vmatpush1.bf16.msra.mxu0 %v1905
        %2143 = vmatprep.subr.bf16.mxu0 %v1912
        %2144 = vmatpush1.bf16.msra.mxu0 %v1911
        %2145 = vmatprep.subr.bf16.mxu0 %v1918
        %2146 = vmatpush1.bf16.msra.mxu0 %v1917
        %2147 = vmatprep.mubr.bf16.mxu0 %v1196
        %2148 = vmatmul.mubr.bf16.gmra.mrb[0].mxu0 %v1195
        %v2149 = vpop.f32.mrb[0].mxu0
        %v2150 = vadd.f32 %v1368, %v2149
        %v2151 = vpop.f32.mrb[0].mxu0
        %v2152 = vadd.f32 %v1372, %v2151
        %v2153 = vpop.f32.mrb[0].mxu0
        %v2154 = vadd.f32 %v1368, %v2153
        %v2155 = vpop.f32.mrb[0].mxu0
        %v2156 = vadd.f32 %v1372, %v2155
        %2157 = vmatprep.mubr.bf16.mxu0 %v1199
        %2158 = vmatmul.mubr.bf16.gmra.mrb[0].mxu0 %v1198
        %v2159 = vpop.f32.mrb[0].mxu0
        %v2160 = vadd.f32 %v1368, %v2159
        %v2161 = vpop.f32.mrb[0].mxu0
        %v2162 = vadd.f32 %v1372, %v2161
        %v2163 = vpop.f32.mrb[0].mxu0
        %v2164 = vadd.f32 %v1368, %v2163
        %v2165 = vpop.f32.mrb[0].mxu0
        %v2166 = vadd.f32 %v1372, %v2165
        %2167 = vmatprep.mubr.bf16.mxu0 %v1202
        %2168 = vmatmul.mubr.bf16.gmra.mrb[0].mxu0 %v1201
        %v2169 = vpop.f32.mrb[0].mxu0
        %v2170 = vadd.f32 %v1368, %v2169
        %v2171 = vpop.f32.mrb[0].mxu0
        %v2172 = vadd.f32 %v1372, %v2171
        %v2173 = vpop.f32.mrb[0].mxu0
        %v2174 = vadd.f32 %v1368, %v2173
        %v2175 = vpop.f32.mrb[0].mxu0
        %v2176 = vadd.f32 %v1372, %v2175
        %2177 = vmatprep.mubr.bf16.mxu0 %v1205
        %2178 = vmatmul.mubr.bf16.gmra.mrb[0].mxu0 %v1204
        %v2179 = vpop.f32.mrb[0].mxu0
        %v2180 = vadd.f32 %v1368, %v2179
        %v2181 = vpop.f32.mrb[0].mxu0
        %v2182 = vadd.f32 %v1372, %v2181
        %v2183 = vpop.f32.mrb[0].mxu0
        %v2184 = vadd.f32 %v1368, %v2183
        %v2185 = vpop.f32.mrb[0].mxu0
        %v2186 = vadd.f32 %v1372, %v2185
        %2187 = vmatprep.mubr.bf16.mxu0 %v1208
        %2188 = vmatmul.mubr.bf16.gmra.mrb[0].mxu0 %v1207
        %v2189 = vpop.f32.mrb[0].mxu0
        %v2190 = vadd.f32 %v1368, %v2189
        %v2191 = vpop.f32.mrb[0].mxu0
        %v2192 = vadd.f32 %v1372, %v2191
        %v2193 = vpop.f32.mrb[0].mxu0
        %v2194 = vadd.f32 %v1368, %v2193
        %v2195 = vpop.f32.mrb[0].mxu0
        %v2196 = vadd.f32 %v1372, %v2195
        %2197 = vmatprep.mubr.bf16.mxu0 %v1211
        %2198 = vmatmul.mubr.bf16.gmra.mrb[0].mxu0 %v1210
        %v2199 = vpop.f32.mrb[0].mxu0
        %v2200 = vadd.f32 %v1368, %v2199
        %v2201 = vpop.f32.mrb[0].mxu0
        %v2202 = vadd.f32 %v1372, %v2201
        %v2203 = vpop.f32.mrb[0].mxu0
        %v2204 = vadd.f32 %v1368, %v2203
        %v2205 = vpop.f32.mrb[0].mxu0
        %v2206 = vadd.f32 %v1372, %v2205
        %2207 = vmatprep.mubr.bf16.mxu0 %v1214
        %2208 = vmatmul.mubr.bf16.gmra.mrb[0].mxu0 %v1213
        %v2209 = vpop.f32.mrb[0].mxu0
        %v2210 = vadd.f32 %v1368, %v2209
        %v2211 = vpop.f32.mrb[0].mxu0
        %v2212 = vadd.f32 %v1372, %v2211
        %v2213 = vpop.f32.mrb[0].mxu0
        %v2214 = vadd.f32 %v1368, %v2213
        %v2215 = vpop.f32.mrb[0].mxu0
        %v2216 = vadd.f32 %v1372, %v2215
        %2217 = vmatprep.mubr.bf16.mxu0 %v1217
        %2218 = vmatmul.mubr.bf16.gmra.mrb[0].mxu0 %v1216
        %v2219 = vpop.f32.mrb[0].mxu0
        %v2220 = vadd.f32 %v1368, %v2219
        %v2221 = vpop.f32.mrb[0].mxu0
        %v2222 = vadd.f32 %v1372, %v2221
        %v2223 = vpop.f32.mrb[0].mxu0
        %v2224 = vadd.f32 %v1368, %v2223
        %v2225 = vpop.f32.mrb[0].mxu0
        %v2226 = vadd.f32 %v1372, %v2225
        %2227 = vdwg.mxu0
        %2228 = vmatprep.subr.bf16.mxu0 %v1924
        %2229 = vmatpush1.bf16.msra.mxu0 %v1923
        %2230 = vmatprep.subr.bf16.mxu0 %v1930
        %2231 = vmatpush1.bf16.msra.mxu0 %v1929
        %2232 = vmatprep.subr.bf16.mxu0 %v1936
        %2233 = vmatpush1.bf16.msra.mxu0 %v1935
        %2234 = vmatprep.subr.bf16.mxu0 %v1942
        %2235 = vmatpush1.bf16.msra.mxu0 %v1941
        %2236 = vmatprep.subr.bf16.mxu0 %v1948
        %2237 = vmatpush1.bf16.msra.mxu0 %v1947
        %2238 = vmatprep.subr.bf16.mxu0 %v1954
        %2239 = vmatpush1.bf16.msra.mxu0 %v1953
        %2240 = vmatprep.subr.bf16.mxu0 %v1960
        %2241 = vmatpush1.bf16.msra.mxu0 %v1959
        %2242 = vmatprep.subr.bf16.mxu0 %v1966
        %2243 = vmatpush1.bf16.msra.mxu0 %v1965
        %2244 = vmatprep.subr.bf16.mxu0 0
        %2245 = vmatpush1.bf16.msra.mxu0 0
        %2246 = vmatprep.subr.bf16.mxu0 0
        %2247 = vmatpush1.bf16.msra.mxu0 0
        %2248 = vmatprep.subr.bf16.mxu0 0
        %2249 = vmatpush1.bf16.msra.mxu0 0
        %2250 = vmatprep.subr.bf16.mxu0 0
        %2251 = vmatpush1.bf16.msra.mxu0 0
        %2252 = vmatprep.subr.bf16.mxu0 0
        %2253 = vmatpush1.bf16.msra.mxu0 0
        %2254 = vmatprep.subr.bf16.mxu0 0
        %2255 = vmatpush1.bf16.msra.mxu0 0
        %2256 = vmatprep.subr.bf16.mxu0 0
        %2257 = vmatpush1.bf16.msra.mxu0 0
        %2258 = vmatprep.subr.bf16.mxu0 0
        %2259 = vmatpush1.bf16.msra.mxu0 0
        %2260 = vmatprep.mubr.bf16.mxu0 0
        %2261 = vmatmul.mubr.bf16.gmra.mrb[0].mxu0 %v1197
        %v2262 = vpop.f32.mrb[0].mxu0
        %v2263 = vadd.f32 %v2150, %v2262
        %v2264 = vpop.f32.mrb[0].mxu0
        %v2265 = vadd.f32 %v2152, %v2264
        %v2266 = vpop.f32.mrb[0].mxu0
        %v2267 = vadd.f32 %v2154, %v2266
        %v2268 = vpop.f32.mrb[0].mxu0
        %v2269 = vadd.f32 %v2156, %v2268
        %2270 = vmatprep.mubr.bf16.mxu0 0
        %2271 = vmatmul.mubr.bf16.gmra.mrb[0].mxu0 %v1200
        %v2272 = vpop.f32.mrb[0].mxu0
        %v2273 = vadd.f32 %v2160, %v2272
        %v2274 = vpop.f32.mrb[0].mxu0
        %v2275 = vadd.f32 %v2162, %v2274
        %v2276 = vpop.f32.mrb[0].mxu0
        %v2277 = vadd.f32 %v2164, %v2276
        %v2278 = vpop.f32.mrb[0].mxu0
        %v2279 = vadd.f32 %v2166, %v2278
        %2280 = vmatprep.mubr.bf16.mxu0 0
        %2281 = vmatmul.mubr.bf16.gmra.mrb[0].mxu0 %v1203
        %v2282 = vpop.f32.mrb[0].mxu0
        %v2283 = vadd.f32 %v2170, %v2282
        %v2284 = vpop.f32.mrb[0].mxu0
        %v2285 = vadd.f32 %v2172, %v2284
        %v2286 = vpop.f32.mrb[0].mxu0
        %v2287 = vadd.f32 %v2174, %v2286
        %v2288 = vpop.f32.mrb[0].mxu0
        %v2289 = vadd.f32 %v2176, %v2288
        %2290 = vmatprep.mubr.bf16.mxu0 0
        %2291 = vmatmul.mubr.bf16.gmra.mrb[0].mxu0 %v1206
        %v2292 = vpop.f32.mrb[0].mxu0
        %v2293 = vadd.f32 %v2180, %v2292
        %v2294 = vpop.f32.mrb[0].mxu0
        %v2295 = vadd.f32 %v2182, %v2294
        %v2296 = vpop.f32.mrb[0].mxu0
        %v2297 = vadd.f32 %v2184, %v2296
        %v2298 = vpop.f32.mrb[0].mxu0
        %v2299 = vadd.f32 %v2186, %v2298
        %2300 = vmatprep.mubr.bf16.mxu0 0
        %2301 = vmatmul.mubr.bf16.gmra.mrb[0].mxu0 %v1209
        %v2302 = vpop.f32.mrb[0].mxu0
        %v2303 = vadd.f32 %v2190, %v2302
        %v2304 = vpop.f32.mrb[0].mxu0
        %v2305 = vadd.f32 %v2192, %v2304
        %v2306 = vpop.f32.mrb[0].mxu0
        %v2307 = vadd.f32 %v2194, %v2306
        %v2308 = vpop.f32.mrb[0].mxu0
        %v2309 = vadd.f32 %v2196, %v2308
        %2310 = vmatprep.mubr.bf16.mxu0 0
        %2311 = vmatmul.mubr.bf16.gmra.mrb[0].mxu0 %v1212
        %v2312 = vpop.f32.mrb[0].mxu0
        %v2313 = vadd.f32 %v2200, %v2312
        %v2314 = vpop.f32.mrb[0].mxu0
        %v2315 = vadd.f32 %v2202, %v2314
        %v2316 = vpop.f32.mrb[0].mxu0
        %v2317 = vadd.f32 %v2204, %v2316
        %v2318 = vpop.f32.mrb[0].mxu0
        %v2319 = vadd.f32 %v2206, %v2318
        %2320 = vmatprep.mubr.bf16.mxu0 0
        %2321 = vmatmul.mubr.bf16.gmra.mrb[0].mxu0 %v1215
        %v2322 = vpop.f32.mrb[0].mxu0
        %v2323 = vadd.f32 %v2210, %v2322
        %v2324 = vpop.f32.mrb[0].mxu0
        %v2325 = vadd.f32 %v2212, %v2324
        %v2326 = vpop.f32.mrb[0].mxu0
        %v2327 = vadd.f32 %v2214, %v2326
        %v2328 = vpop.f32.mrb[0].mxu0
        %v2329 = vadd.f32 %v2216, %v2328
        %2330 = vmatprep.mubr.bf16.mxu0 0
        %2331 = vmatmul.mubr.bf16.gmra.mrb[0].mxu0 %v1218
        %v2332 = vpop.f32.mrb[0].mxu0
        %v2333 = vadd.f32 %v2220, %v2332
        %v2334 = vpop.f32.mrb[0].mxu0
        %v2335 = vadd.f32 %v2222, %v2334
        %v2336 = vpop.f32.mrb[0].mxu0
        %v2337 = vadd.f32 %v2224, %v2336
        %v2338 = vpop.f32.mrb[0].mxu0
        %v2339 = vadd.f32 %v2226, %v2338
        %2340 = vdwg.mxu0
        %2341 = vmatprep.subr.bf16.mxu0 %v1830
        %2342 = vmatpush1.bf16.msra.mxu0 %v1829
        %2343 = vmatprep.subr.bf16.mxu0 %v1836
        %2344 = vmatpush1.bf16.msra.mxu0 %v1835
        %2345 = vmatprep.subr.bf16.mxu0 %v1842
        %2346 = vmatpush1.bf16.msra.mxu0 %v1841
        %2347 = vmatprep.subr.bf16.mxu0 %v1848
        %2348 = vmatpush1.bf16.msra.mxu0 %v1847
        %2349 = vmatprep.subr.bf16.mxu0 %v1854
        %2350 = vmatpush1.bf16.msra.mxu0 %v1853
        %2351 = vmatprep.subr.bf16.mxu0 %v1860
        %2352 = vmatpush1.bf16.msra.mxu0 %v1859
        %2353 = vmatprep.subr.bf16.mxu0 %v1866
        %2354 = vmatpush1.bf16.msra.mxu0 %v1865
        %2355 = vmatprep.subr.bf16.mxu0 %v1872
        %2356 = vmatpush1.bf16.msra.mxu0 %v1871
        %2357 = vmatprep.subr.bf16.mxu0 %v1878
        %2358 = vmatpush1.bf16.msra.mxu0 %v1877
        %2359 = vmatprep.subr.bf16.mxu0 %v1884
        %2360 = vmatpush1.bf16.msra.mxu0 %v1883
        %2361 = vmatprep.subr.bf16.mxu0 %v1890
        %2362 = vmatpush1.bf16.msra.mxu0 %v1889
        %2363 = vmatprep.subr.bf16.mxu0 %v1896
        %2364 = vmatpush1.bf16.msra.mxu0 %v1895
        %2365 = vmatprep.subr.bf16.mxu0 %v1902
        %2366 = vmatpush1.bf16.msra.mxu0 %v1901
        %2367 = vmatprep.subr.bf16.mxu0 %v1908
        %2368 = vmatpush1.bf16.msra.mxu0 %v1907
        %2369 = vmatprep.subr.bf16.mxu0 %v1914
        %2370 = vmatpush1.bf16.msra.mxu0 %v1913
        %2371 = vmatprep.subr.bf16.mxu0 %v1920
        %2372 = vmatpush1.bf16.msra.mxu0 %v1919
        %2373 = vmatprep.mubr.bf16.mxu0 %v1196
        %2374 = vmatmul.mubr.bf16.gmra.mrb[0].mxu0 %v1195
        %v2375 = vpop.f32.mrb[0].mxu0
        %v2376 = vadd.f32 %v1376, %v2375
        %v2377 = vpop.f32.mrb[0].mxu0
        %v2378 = vadd.f32 %v1380, %v2377
        %v2379 = vpop.f32.mrb[0].mxu0
        %v2380 = vadd.f32 %v1376, %v2379
        %v2381 = vpop.f32.mrb[0].mxu0
        %v2382 = vadd.f32 %v1380, %v2381
        %2383 = vmatprep.mubr.bf16.mxu0 %v1199
        %2384 = vmatmul.mubr.bf16.gmra.mrb[0].mxu0 %v1198
        %v2385 = vpop.f32.mrb[0].mxu0
        %v2386 = vadd.f32 %v1376, %v2385
        %v2387 = vpop.f32.mrb[0].mxu0
        %v2388 = vadd.f32 %v1380, %v2387
        %v2389 = vpop.f32.mrb[0].mxu0
        %v2390 = vadd.f32 %v1376, %v2389
        %v2391 = vpop.f32.mrb[0].mxu0
        %v2392 = vadd.f32 %v1380, %v2391
        %2393 = vmatprep.mubr.bf16.mxu0 %v1202
        %2394 = vmatmul.mubr.bf16.gmra.mrb[0].mxu0 %v1201
        %v2395 = vpop.f32.mrb[0].mxu0
        %v2396 = vadd.f32 %v1376, %v2395
        %v2397 = vpop.f32.mrb[0].mxu0
        %v2398 = vadd.f32 %v1380, %v2397
        %v2399 = vpop.f32.mrb[0].mxu0
        %v2400 = vadd.f32 %v1376, %v2399
        %v2401 = vpop.f32.mrb[0].mxu0
        %v2402 = vadd.f32 %v1380, %v2401
        %2403 = vmatprep.mubr.bf16.mxu0 %v1205
        %2404 = vmatmul.mubr.bf16.gmra.mrb[0].mxu0 %v1204
        %v2405 = vpop.f32.mrb[0].mxu0
        %v2406 = vadd.f32 %v1376, %v2405
        %v2407 = vpop.f32.mrb[0].mxu0
        %v2408 = vadd.f32 %v1380, %v2407
        %v2409 = vpop.f32.mrb[0].mxu0
        %v2410 = vadd.f32 %v1376, %v2409
        %v2411 = vpop.f32.mrb[0].mxu0
        %v2412 = vadd.f32 %v1380, %v2411
        %2413 = vmatprep.mubr.bf16.mxu0 %v1208
        %2414 = vmatmul.mubr.bf16.gmra.mrb[0].mxu0 %v1207
        %v2415 = vpop.f32.mrb[0].mxu0
        %v2416 = vadd.f32 %v1376, %v2415
        %v2417 = vpop.f32.mrb[0].mxu0
        %v2418 = vadd.f32 %v1380, %v2417
        %v2419 = vpop.f32.mrb[0].mxu0
        %v2420 = vadd.f32 %v1376, %v2419
        %v2421 = vpop.f32.mrb[0].mxu0
        %v2422 = vadd.f32 %v1380, %v2421
        %2423 = vmatprep.mubr.bf16.mxu0 %v1211
        %2424 = vmatmul.mubr.bf16.gmra.mrb[0].mxu0 %v1210
        %v2425 = vpop.f32.mrb[0].mxu0
        %v2426 = vadd.f32 %v1376, %v2425
        %v2427 = vpop.f32.mrb[0].mxu0
        %v2428 = vadd.f32 %v1380, %v2427
        %v2429 = vpop.f32.mrb[0].mxu0
        %v2430 = vadd.f32 %v1376, %v2429
        %v2431 = vpop.f32.mrb[0].mxu0
        %v2432 = vadd.f32 %v1380, %v2431
        %2433 = vmatprep.mubr.bf16.mxu0 %v1214
        %2434 = vmatmul.mubr.bf16.gmra.mrb[0].mxu0 %v1213
        %v2435 = vpop.f32.mrb[0].mxu0
        %v2436 = vadd.f32 %v1376, %v2435
        %v2437 = vpop.f32.mrb[0].mxu0
        %v2438 = vadd.f32 %v1380, %v2437
        %v2439 = vpop.f32.mrb[0].mxu0
        %v2440 = vadd.f32 %v1376, %v2439
        %v2441 = vpop.f32.mrb[0].mxu0
        %v2442 = vadd.f32 %v1380, %v2441
        %2443 = vmatprep.mubr.bf16.mxu0 %v1217
        %2444 = vmatmul.mubr.bf16.gmra.mrb[0].mxu0 %v1216
        %v2445 = vpop.f32.mrb[0].mxu0
        %v2446 = vadd.f32 %v1376, %v2445
        %v2447 = vpop.f32.mrb[0].mxu0
        %v2448 = vadd.f32 %v1380, %v2447
        %v2449 = vpop.f32.mrb[0].mxu0
        %v2450 = vadd.f32 %v1376, %v2449
        %v2451 = vpop.f32.mrb[0].mxu0
        %v2452 = vadd.f32 %v1380, %v2451
        %2453 = vdwg.mxu0
        %2454 = vmatprep.subr.bf16.mxu0 %v1926
        %2455 = vmatpush1.bf16.msra.mxu0 %v1925
        %2456 = vmatprep.subr.bf16.mxu0 %v1932
        %2457 = vmatpush1.bf16.msra.mxu0 %v1931
        %2458 = vmatprep.subr.bf16.mxu0 %v1938
        %2459 = vmatpush1.bf16.msra.mxu0 %v1937
        %2460 = vmatprep.subr.bf16.mxu0 %v1944
        %2461 = vmatpush1.bf16.msra.mxu0 %v1943
        %2462 = vmatprep.subr.bf16.mxu0 %v1950
        %2463 = vmatpush1.bf16.msra.mxu0 %v1949
        %2464 = vmatprep.subr.bf16.mxu0 %v1956
        %2465 = vmatpush1.bf16.msra.mxu0 %v1955
        %2466 = vmatprep.subr.bf16.mxu0 %v1962
        %2467 = vmatpush1.bf16.msra.mxu0 %v1961
        %2468 = vmatprep.subr.bf16.mxu0 %v1968
        %2469 = vmatpush1.bf16.msra.mxu0 %v1967
        %2470 = vmatprep.subr.bf16.mxu0 0
        %2471 = vmatpush1.bf16.msra.mxu0 0
        %2472 = vmatprep.subr.bf16.mxu0 0
        %2473 = vmatpush1.bf16.msra.mxu0 0
        %2474 = vmatprep.subr.bf16.mxu0 0
        %2475 = vmatpush1.bf16.msra.mxu0 0
        %2476 = vmatprep.subr.bf16.mxu0 0
        %2477 = vmatpush1.bf16.msra.mxu0 0
        %2478 = vmatprep.subr.bf16.mxu0 0
        %2479 = vmatpush1.bf16.msra.mxu0 0
        %2480 = vmatprep.subr.bf16.mxu0 0
        %2481 = vmatpush1.bf16.msra.mxu0 0
        %2482 = vmatprep.subr.bf16.mxu0 0
        %2483 = vmatpush1.bf16.msra.mxu0 0
        %2484 = vmatprep.subr.bf16.mxu0 0
        %2485 = vmatpush1.bf16.msra.mxu0 0
        %2486 = vmatprep.mubr.bf16.mxu0 0
        %2487 = vmatmul.mubr.bf16.gmra.mrb[0].mxu0 %v1197
        %v2488 = vpop.f32.mrb[0].mxu0
        %v2489 = vadd.f32 %v2376, %v2488
        %v2490 = vpop.f32.mrb[0].mxu0
        %v2491 = vadd.f32 %v2378, %v2490
        %v2492 = vpop.f32.mrb[0].mxu0
        %v2493 = vadd.f32 %v2380, %v2492
        %v2494 = vpop.f32.mrb[0].mxu0
        %v2495 = vadd.f32 %v2382, %v2494
        %2496 = vmatprep.mubr.bf16.mxu0 0
        %2497 = vmatmul.mubr.bf16.gmra.mrb[0].mxu0 %v1200
        %v2498 = vpop.f32.mrb[0].mxu0
        %v2499 = vadd.f32 %v2386, %v2498
        %v2500 = vpop.f32.mrb[0].mxu0
        %v2501 = vadd.f32 %v2388, %v2500
        %v2502 = vpop.f32.mrb[0].mxu0
        %v2503 = vadd.f32 %v2390, %v2502
        %v2504 = vpop.f32.mrb[0].mxu0
        %v2505 = vadd.f32 %v2392, %v2504
        %2506 = vmatprep.mubr.bf16.mxu0 0
        %2507 = vmatmul.mubr.bf16.gmra.mrb[0].mxu0 %v1203
        %v2508 = vpop.f32.mrb[0].mxu0
        %v2509 = vadd.f32 %v2396, %v2508
        %v2510 = vpop.f32.mrb[0].mxu0
        %v2511 = vadd.f32 %v2398, %v2510
        %v2512 = vpop.f32.mrb[0].mxu0
        %v2513 = vadd.f32 %v2400, %v2512
        %v2514 = vpop.f32.mrb[0].mxu0
        %v2515 = vadd.f32 %v2402, %v2514
        %2516 = vmatprep.mubr.bf16.mxu0 0
        %2517 = vmatmul.mubr.bf16.gmra.mrb[0].mxu0 %v1206
        %v2518 = vpop.f32.mrb[0].mxu0
        %v2519 = vadd.f32 %v2406, %v2518
        %v2520 = vpop.f32.mrb[0].mxu0
        %v2521 = vadd.f32 %v2408, %v2520
        %v2522 = vpop.f32.mrb[0].mxu0
        %v2523 = vadd.f32 %v2410, %v2522
        %v2524 = vpop.f32.mrb[0].mxu0
        %v2525 = vadd.f32 %v2412, %v2524
        %2526 = vmatprep.mubr.bf16.mxu0 0
        %2527 = vmatmul.mubr.bf16.gmra.mrb[0].mxu0 %v1209
        %v2528 = vpop.f32.mrb[0].mxu0
        %v2529 = vadd.f32 %v2416, %v2528
        %v2530 = vpop.f32.mrb[0].mxu0
        %v2531 = vadd.f32 %v2418, %v2530
        %v2532 = vpop.f32.mrb[0].mxu0
        %v2533 = vadd.f32 %v2420, %v2532
        %v2534 = vpop.f32.mrb[0].mxu0
        %v2535 = vadd.f32 %v2422, %v2534
        %2536 = vmatprep.mubr.bf16.mxu0 0
        %2537 = vmatmul.mubr.bf16.gmra.mrb[0].mxu0 %v1212
        %v2538 = vpop.f32.mrb[0].mxu0
        %v2539 = vadd.f32 %v2426, %v2538
        %v2540 = vpop.f32.mrb[0].mxu0
        %v2541 = vadd.f32 %v2428, %v2540
        %v2542 = vpop.f32.mrb[0].mxu0
        %v2543 = vadd.f32 %v2430, %v2542
        %v2544 = vpop.f32.mrb[0].mxu0
        %v2545 = vadd.f32 %v2432, %v2544
        %2546 = vmatprep.mubr.bf16.mxu0 0
        %2547 = vmatmul.mubr.bf16.gmra.mrb[0].mxu0 %v1215
        %v2548 = vpop.f32.mrb[0].mxu0
        %v2549 = vadd.f32 %v2436, %v2548
        %v2550 = vpop.f32.mrb[0].mxu0
        %v2551 = vadd.f32 %v2438, %v2550
        %v2552 = vpop.f32.mrb[0].mxu0
        %v2553 = vadd.f32 %v2440, %v2552
        %v2554 = vpop.f32.mrb[0].mxu0
        %v2555 = vadd.f32 %v2442, %v2554
        %2556 = vmatprep.mubr.bf16.mxu0 0
        %2557 = vmatmul.mubr.bf16.gmra.mrb[0].mxu0 %v1218
        %v2558 = vpop.f32.mrb[0].mxu0
        %v2559 = vadd.f32 %v2446, %v2558
        %v2560 = vpop.f32.mrb[0].mxu0
        %v2561 = vadd.f32 %v2448, %v2560
        %v2562 = vpop.f32.mrb[0].mxu0
        %v2563 = vadd.f32 %v2450, %v2562
        %v2564 = vpop.f32.mrb[0].mxu0
        %v2565 = vadd.f32 %v2452, %v2564
        %2566 = vdwg.mxu0
        %2567 = vmatprep.subr.bf16.mxu0 %v1832
        %2568 = vmatpush1.bf16.msra.mxu0 %v1831
        %2569 = vmatprep.subr.bf16.mxu0 %v1838
        %2570 = vmatpush1.bf16.msra.mxu0 %v1837
        %2571 = vmatprep.subr.bf16.mxu0 %v1844
        %2572 = vmatpush1.bf16.msra.mxu0 %v1843
        %2573 = vmatprep.subr.bf16.mxu0 %v1850
        %2574 = vmatpush1.bf16.msra.mxu0 %v1849
        %2575 = vmatprep.subr.bf16.mxu0 %v1856
        %2576 = vmatpush1.bf16.msra.mxu0 %v1855
        %2577 = vmatprep.subr.bf16.mxu0 %v1862
        %2578 = vmatpush1.bf16.msra.mxu0 %v1861
        %2579 = vmatprep.subr.bf16.mxu0 %v1868
        %2580 = vmatpush1.bf16.msra.mxu0 %v1867
        %2581 = vmatprep.subr.bf16.mxu0 %v1874
        %2582 = vmatpush1.bf16.msra.mxu0 %v1873
        %2583 = vmatprep.subr.bf16.mxu0 %v1880
        %2584 = vmatpush1.bf16.msra.mxu0 %v1879
        %2585 = vmatprep.subr.bf16.mxu0 %v1886
        %2586 = vmatpush1.bf16.msra.mxu0 %v1885
        %2587 = vmatprep.subr.bf16.mxu0 %v1892
        %2588 = vmatpush1.bf16.msra.mxu0 %v1891
        %2589 = vmatprep.subr.bf16.mxu0 %v1898
        %2590 = vmatpush1.bf16.msra.mxu0 %v1897
        %2591 = vmatprep.subr.bf16.mxu0 %v1904
        %2592 = vmatpush1.bf16.msra.mxu0 %v1903
        %2593 = vmatprep.subr.bf16.mxu0 %v1910
        %2594 = vmatpush1.bf16.msra.mxu0 %v1909
        %2595 = vmatprep.subr.bf16.mxu0 %v1916
        %2596 = vmatpush1.bf16.msra.mxu0 %v1915
        %2597 = vmatprep.subr.bf16.mxu0 %v1922
        %2598 = vmatpush1.bf16.msra.mxu0 %v1921
        %2599 = vmatprep.mubr.bf16.mxu0 %v1196
        %2600 = vmatmul.mubr.bf16.gmra.mrb[0].mxu0 %v1195
        %v2601 = vpop.f32.mrb[0].mxu0
        %v2602 = vadd.f32 %v1384, %v2601
        %v2603 = vpop.f32.mrb[0].mxu0
        %v2604 = vadd.f32 %v1388, %v2603
        %v2605 = vpop.f32.mrb[0].mxu0
        %v2606 = vadd.f32 %v1384, %v2605
        %v2607 = vpop.f32.mrb[0].mxu0
        %v2608 = vadd.f32 %v1388, %v2607
        %2609 = vmatprep.mubr.bf16.mxu0 %v1199
        %2610 = vmatmul.mubr.bf16.gmra.mrb[0].mxu0 %v1198
        %v2611 = vpop.f32.mrb[0].mxu0
        %v2612 = vadd.f32 %v1384, %v2611
        %v2613 = vpop.f32.mrb[0].mxu0
        %v2614 = vadd.f32 %v1388, %v2613
        %v2615 = vpop.f32.mrb[0].mxu0
        %v2616 = vadd.f32 %v1384, %v2615
        %v2617 = vpop.f32.mrb[0].mxu0
        %v2618 = vadd.f32 %v1388, %v2617
        %2619 = vmatprep.mubr.bf16.mxu0 %v1202
        %2620 = vmatmul.mubr.bf16.gmra.mrb[0].mxu0 %v1201
        %v2621 = vpop.f32.mrb[0].mxu0
        %v2622 = vadd.f32 %v1384, %v2621
        %v2623 = vpop.f32.mrb[0].mxu0
        %v2624 = vadd.f32 %v1388, %v2623
        %v2625 = vpop.f32.mrb[0].mxu0
        %v2626 = vadd.f32 %v1384, %v2625
        %v2627 = vpop.f32.mrb[0].mxu0
        %v2628 = vadd.f32 %v1388, %v2627
        %2629 = vmatprep.mubr.bf16.mxu0 %v1205
        %2630 = vmatmul.mubr.bf16.gmra.mrb[0].mxu0 %v1204
        %v2631 = vpop.f32.mrb[0].mxu0
        %v2632 = vadd.f32 %v1384, %v2631
        %v2633 = vpop.f32.mrb[0].mxu0
        %v2634 = vadd.f32 %v1388, %v2633
        %v2635 = vpop.f32.mrb[0].mxu0
        %v2636 = vadd.f32 %v1384, %v2635
        %v2637 = vpop.f32.mrb[0].mxu0
        %v2638 = vadd.f32 %v1388, %v2637
        %2639 = vmatprep.mubr.bf16.mxu0 %v1208
        %2640 = vmatmul.mubr.bf16.gmra.mrb[0].mxu0 %v1207
        %v2641 = vpop.f32.mrb[0].mxu0
        %v2642 = vadd.f32 %v1384, %v2641
        %v2643 = vpop.f32.mrb[0].mxu0
        %v2644 = vadd.f32 %v1388, %v2643
        %v2645 = vpop.f32.mrb[0].mxu0
        %v2646 = vadd.f32 %v1384, %v2645
        %v2647 = vpop.f32.mrb[0].mxu0
        %v2648 = vadd.f32 %v1388, %v2647
        %2649 = vmatprep.mubr.bf16.mxu0 %v1211
        %2650 = vmatmul.mubr.bf16.gmra.mrb[0].mxu0 %v1210
        %v2651 = vpop.f32.mrb[0].mxu0
        %v2652 = vadd.f32 %v1384, %v2651
        %v2653 = vpop.f32.mrb[0].mxu0
        %v2654 = vadd.f32 %v1388, %v2653
        %v2655 = vpop.f32.mrb[0].mxu0
        %v2656 = vadd.f32 %v1384, %v2655
        %v2657 = vpop.f32.mrb[0].mxu0
        %v2658 = vadd.f32 %v1388, %v2657
        %2659 = vmatprep.mubr.bf16.mxu0 %v1214
        %2660 = vmatmul.mubr.bf16.gmra.mrb[0].mxu0 %v1213
        %v2661 = vpop.f32.mrb[0].mxu0
        %v2662 = vadd.f32 %v1384, %v2661
        %v2663 = vpop.f32.mrb[0].mxu0
        %v2664 = vadd.f32 %v1388, %v2663
        %v2665 = vpop.f32.mrb[0].mxu0
        %v2666 = vadd.f32 %v1384, %v2665
        %v2667 = vpop.f32.mrb[0].mxu0
        %v2668 = vadd.f32 %v1388, %v2667
        %2669 = vmatprep.mubr.bf16.mxu0 %v1217
        %2670 = vmatmul.mubr.bf16.gmra.mrb[0].mxu0 %v1216
        %v2671 = vpop.f32.mrb[0].mxu0
        %v2672 = vadd.f32 %v1384, %v2671
        %v2673 = vpop.f32.mrb[0].mxu0
        %v2674 = vadd.f32 %v1388, %v2673
        %v2675 = vpop.f32.mrb[0].mxu0
        %v2676 = vadd.f32 %v1384, %v2675
        %v2677 = vpop.f32.mrb[0].mxu0
        %v2678 = vadd.f32 %v1388, %v2677
        %2679 = vdwg.mxu0
        %2680 = vmatprep.subr.bf16.mxu0 %v1928
        %2681 = vmatpush1.bf16.msra.mxu0 %v1927
        %2682 = vmatprep.subr.bf16.mxu0 %v1934
        %2683 = vmatpush1.bf16.msra.mxu0 %v1933
        %2684 = vmatprep.subr.bf16.mxu0 %v1940
        %2685 = vmatpush1.bf16.msra.mxu0 %v1939
        %2686 = vmatprep.subr.bf16.mxu0 %v1946
        %2687 = vmatpush1.bf16.msra.mxu0 %v1945
        %2688 = vmatprep.subr.bf16.mxu0 %v1952
        %2689 = vmatpush1.bf16.msra.mxu0 %v1951
        %2690 = vmatprep.subr.bf16.mxu0 %v1958
        %2691 = vmatpush1.bf16.msra.mxu0 %v1957
        %2692 = vmatprep.subr.bf16.mxu0 %v1964
        %2693 = vmatpush1.bf16.msra.mxu0 %v1963
        %2694 = vmatprep.subr.bf16.mxu0 %v1970
        %2695 = vmatpush1.bf16.msra.mxu0 %v1969
        %2696 = vmatprep.subr.bf16.mxu0 0
        %2697 = vmatpush1.bf16.msra.mxu0 0
        %2698 = vmatprep.subr.bf16.mxu0 0
        %2699 = vmatpush1.bf16.msra.mxu0 0
        %2700 = vmatprep.subr.bf16.mxu0 0
        %2701 = vmatpush1.bf16.msra.mxu0 0
        %2702 = vmatprep.subr.bf16.mxu0 0
        %2703 = vmatpush1.bf16.msra.mxu0 0
        %2704 = vmatprep.subr.bf16.mxu0 0
        %2705 = vmatpush1.bf16.msra.mxu0 0
        %2706 = vmatprep.subr.bf16.mxu0 0
        %2707 = vmatpush1.bf16.msra.mxu0 0
        %2708 = vmatprep.subr.bf16.mxu0 0
        %2709 = vmatpush1.bf16.msra.mxu0 0
        %2710 = vmatprep.subr.bf16.mxu0 0
        %2711 = vmatpush1.bf16.msra.mxu0 0
        %2712 = vmatprep.mubr.bf16.mxu0 0
        %2713 = vmatmul.mubr.bf16.gmra.mrb[0].mxu0 %v1197
        %v2714 = vpop.f32.mrb[0].mxu0
        %v2715 = vadd.f32 %v2602, %v2714
        %v2716 = vpop.f32.mrb[0].mxu0
        %v2717 = vadd.f32 %v2604, %v2716
        %v2718 = vpop.f32.mrb[0].mxu0
        %v2719 = vadd.f32 %v2606, %v2718
        %v2720 = vpop.f32.mrb[0].mxu0
        %v2721 = vadd.f32 %v2608, %v2720
        %2722 = vmatprep.mubr.bf16.mxu0 0
        %2723 = vmatmul.mubr.bf16.gmra.mrb[0].mxu0 %v1200
        %v2724 = vpop.f32.mrb[0].mxu0
        %v2725 = vadd.f32 %v2612, %v2724
        %v2726 = vpop.f32.mrb[0].mxu0
        %v2727 = vadd.f32 %v2614, %v2726
        %v2728 = vpop.f32.mrb[0].mxu0
        %v2729 = vadd.f32 %v2616, %v2728
        %v2730 = vpop.f32.mrb[0].mxu0
        %v2731 = vadd.f32 %v2618, %v2730
        %2732 = vmatprep.mubr.bf16.mxu0 0
        %2733 = vmatmul.mubr.bf16.gmra.mrb[0].mxu0 %v1203
        %v2734 = vpop.f32.mrb[0].mxu0
        %v2735 = vadd.f32 %v2622, %v2734
        %v2736 = vpop.f32.mrb[0].mxu0
        %v2737 = vadd.f32 %v2624, %v2736
        %v2738 = vpop.f32.mrb[0].mxu0
        %v2739 = vadd.f32 %v2626, %v2738
        %v2740 = vpop.f32.mrb[0].mxu0
        %v2741 = vadd.f32 %v2628, %v2740
        %2742 = vmatprep.mubr.bf16.mxu0 0
        %2743 = vmatmul.mubr.bf16.gmra.mrb[0].mxu0 %v1206
        %v2744 = vpop.f32.mrb[0].mxu0
        %v2745 = vadd.f32 %v2632, %v2744
        %v2746 = vpop.f32.mrb[0].mxu0
        %v2747 = vadd.f32 %v2634, %v2746
        %v2748 = vpop.f32.mrb[0].mxu0
        %v2749 = vadd.f32 %v2636, %v2748
        %v2750 = vpop.f32.mrb[0].mxu0
        %v2751 = vadd.f32 %v2638, %v2750
        %2752 = vmatprep.mubr.bf16.mxu0 0
        %2753 = vmatmul.mubr.bf16.gmra.mrb[0].mxu0 %v1209
        %v2754 = vpop.f32.mrb[0].mxu0
        %v2755 = vadd.f32 %v2642, %v2754
        %v2756 = vpop.f32.mrb[0].mxu0
        %v2757 = vadd.f32 %v2644, %v2756
        %v2758 = vpop.f32.mrb[0].mxu0
        %v2759 = vadd.f32 %v2646, %v2758
        %v2760 = vpop.f32.mrb[0].mxu0
        %v2761 = vadd.f32 %v2648, %v2760
        %2762 = vmatprep.mubr.bf16.mxu0 0
        %2763 = vmatmul.mubr.bf16.gmra.mrb[0].mxu0 %v1212
        %v2764 = vpop.f32.mrb[0].mxu0
        %v2765 = vadd.f32 %v2652, %v2764
        %v2766 = vpop.f32.mrb[0].mxu0
        %v2767 = vadd.f32 %v2654, %v2766
        %v2768 = vpop.f32.mrb[0].mxu0
        %v2769 = vadd.f32 %v2656, %v2768
        %v2770 = vpop.f32.mrb[0].mxu0
        %v2771 = vadd.f32 %v2658, %v2770
        %2772 = vmatprep.mubr.bf16.mxu0 0
        %2773 = vmatmul.mubr.bf16.gmra.mrb[0].mxu0 %v1215
        %v2774 = vpop.f32.mrb[0].mxu0
        %v2775 = vadd.f32 %v2662, %v2774
        %v2776 = vpop.f32.mrb[0].mxu0
        %v2777 = vadd.f32 %v2664, %v2776
        %v2778 = vpop.f32.mrb[0].mxu0
        %v2779 = vadd.f32 %v2666, %v2778
        %v2780 = vpop.f32.mrb[0].mxu0
        %v2781 = vadd.f32 %v2668, %v2780
        %2782 = vmatprep.mubr.bf16.mxu0 0
        %2783 = vmatmul.mubr.bf16.gmra.mrb[0].mxu0 %v1218
        %v2784 = vpop.f32.mrb[0].mxu0
        %v2785 = vadd.f32 %v2672, %v2784
        %v2786 = vpop.f32.mrb[0].mxu0
        %v2787 = vadd.f32 %v2674, %v2786
        %v2788 = vpop.f32.mrb[0].mxu0
        %v2789 = vadd.f32 %v2676, %v2788
        %v2790 = vpop.f32.mrb[0].mxu0
        %v2791 = vadd.f32 %v2678, %v2790
        %2792 = vdwg.mxu0
        %v2793 = vmax.f32 %v2263, 0.0
        %v2794 = vmax.f32 %v2265, 0.0
        %v2795 = vmax.f32 %v2489, 0.0
        %v2796 = vmax.f32 %v2491, 0.0
        %v2797 = vmax.f32 %v2715, 0.0
        %v2798 = vmax.f32 %v2717, 0.0
        %v2799 = vmax.f32 %v2267, 0.0
        %v2800 = vmax.f32 %v2269, 0.0
        %v2801 = vmax.f32 %v2493, 0.0
        %v2802 = vmax.f32 %v2495, 0.0
        %v2803 = vmax.f32 %v2719, 0.0
        %v2804 = vmax.f32 %v2721, 0.0
        %v2805 = vmax.f32 %v2273, 0.0
        %v2806 = vmax.f32 %v2275, 0.0
        %v2807 = vmax.f32 %v2499, 0.0
        %v2808 = vmax.f32 %v2501, 0.0
        %v2809 = vmax.f32 %v2725, 0.0
        %v2810 = vmax.f32 %v2727, 0.0
        %v2811 = vmax.f32 %v2277, 0.0
        %v2812 = vmax.f32 %v2279, 0.0
        %v2813 = vmax.f32 %v2503, 0.0
        %v2814 = vmax.f32 %v2505, 0.0
        %v2815 = vmax.f32 %v2729, 0.0
        %v2816 = vmax.f32 %v2731, 0.0
        %v2817 = vmax.f32 %v2283, 0.0
        %v2818 = vmax.f32 %v2285, 0.0
        %v2819 = vmax.f32 %v2509, 0.0
        %v2820 = vmax.f32 %v2511, 0.0
        %v2821 = vmax.f32 %v2735, 0.0
        %v2822 = vmax.f32 %v2737, 0.0
        %v2823 = vmax.f32 %v2287, 0.0
        %v2824 = vmax.f32 %v2289, 0.0
        %v2825 = vmax.f32 %v2513, 0.0
        %v2826 = vmax.f32 %v2515, 0.0
        %v2827 = vmax.f32 %v2739, 0.0
        %v2828 = vmax.f32 %v2741, 0.0
        %v2829 = vmax.f32 %v2293, 0.0
        %v2830 = vmax.f32 %v2295, 0.0
        %v2831 = vmax.f32 %v2519, 0.0
        %v2832 = vmax.f32 %v2521, 0.0
        %v2833 = vmax.f32 %v2745, 0.0
        %v2834 = vmax.f32 %v2747, 0.0
        %v2835 = vmax.f32 %v2297, 0.0
        %v2836 = vmax.f32 %v2299, 0.0
        %v2837 = vmax.f32 %v2523, 0.0
        %v2838 = vmax.f32 %v2525, 0.0
        %v2839 = vmax.f32 %v2749, 0.0
        %v2840 = vmax.f32 %v2751, 0.0
        %v2841 = vmax.f32 %v2303, 0.0
        %v2842 = vmax.f32 %v2305, 0.0
        %v2843 = vmax.f32 %v2529, 0.0
        %v2844 = vmax.f32 %v2531, 0.0
        %v2845 = vmax.f32 %v2755, 0.0
        %v2846 = vmax.f32 %v2757, 0.0
        %v2847 = vmax.f32 %v2307, 0.0
        %v2848 = vmax.f32 %v2309, 0.0
        %v2849 = vmax.f32 %v2533, 0.0
        %v2850 = vmax.f32 %v2535, 0.0
        %v2851 = vmax.f32 %v2759, 0.0
        %v2852 = vmax.f32 %v2761, 0.0
        %v2853 = vmax.f32 %v2313, 0.0
        %v2854 = vmax.f32 %v2315, 0.0
        %v2855 = vmax.f32 %v2539, 0.0
        %v2856 = vmax.f32 %v2541, 0.0
        %v2857 = vmax.f32 %v2765, 0.0
        %v2858 = vmax.f32 %v2767, 0.0
        %v2859 = vmax.f32 %v2317, 0.0
        %v2860 = vmax.f32 %v2319, 0.0
        %v2861 = vmax.f32 %v2543, 0.0
        %v2862 = vmax.f32 %v2545, 0.0
        %v2863 = vmax.f32 %v2769, 0.0
        %v2864 = vmax.f32 %v2771, 0.0
        %v2865 = vmax.f32 %v2323, 0.0
        %v2866 = vmax.f32 %v2325, 0.0
        %v2867 = vmax.f32 %v2549, 0.0
        %v2868 = vmax.f32 %v2551, 0.0
        %v2869 = vmax.f32 %v2775, 0.0
        %v2870 = vmax.f32 %v2777, 0.0
        %v2871 = vmax.f32 %v2327, 0.0
        %v2872 = vmax.f32 %v2329, 0.0
        %v2873 = vmax.f32 %v2553, 0.0
        %v2874 = vmax.f32 %v2555, 0.0
        %v2875 = vmax.f32 %v2779, 0.0
        %v2876 = vmax.f32 %v2781, 0.0
        %v2877 = vmax.f32 %v2333, 0.0
        %v2878 = vmax.f32 %v2335, 0.0
        %v2879 = vmax.f32 %v2559, 0.0
        %v2880 = vmax.f32 %v2561, 0.0
        %v2881 = vmax.f32 %v2785, 0.0
        %v2882 = vmax.f32 %v2787, 0.0
        %v2883 = vmax.f32 %v2337, 0.0
        %v2884 = vmax.f32 %v2339, 0.0
        %v2885 = vmax.f32 %v2563, 0.0
        %v2886 = vmax.f32 %v2565, 0.0
        %v2887 = vmax.f32 %v2789, 0.0
        %v2888 = vmax.f32 %v2791, 0.0
        %v2889 = vpack.c.bf16 %v2799, %v2793
        %v2890 = vpack.c.bf16 %v2800, %v2794
        %v2891 = vpack.c.bf16 %v2801, %v2795
        %v2892 = vpack.c.bf16 %v2802, %v2796
        %v2893 = vpack.c.bf16 %v2803, %v2797
        %v2894 = vpack.c.bf16 %v2804, %v2798
        %v2895 = vpack.c.bf16 %v2811, %v2805
        %v2896 = vpack.c.bf16 %v2812, %v2806
        %v2897 = vpack.c.bf16 %v2813, %v2807
        %v2898 = vpack.c.bf16 %v2814, %v2808
        %v2899 = vpack.c.bf16 %v2815, %v2809
        %v2900 = vpack.c.bf16 %v2816, %v2810
        %v2901 = vpack.c.bf16 %v2823, %v2817
        %v2902 = vpack.c.bf16 %v2824, %v2818
        %v2903 = vpack.c.bf16 %v2825, %v2819
        %v2904 = vpack.c.bf16 %v2826, %v2820
        %v2905 = vpack.c.bf16 %v2827, %v2821
        %v2906 = vpack.c.bf16 %v2828, %v2822
        %v2907 = vpack.c.bf16 %v2835, %v2829
        %v2908 = vpack.c.bf16 %v2836, %v2830
        %v2909 = vpack.c.bf16 %v2837, %v2831
        %v2910 = vpack.c.bf16 %v2838, %v2832
        %v2911 = vpack.c.bf16 %v2839, %v2833
        %v2912 = vpack.c.bf16 %v2840, %v2834
        %v2913 = vpack.c.bf16 %v2847, %v2841
        %v2914 = vpack.c.bf16 %v2848, %v2842
        %v2915 = vpack.c.bf16 %v2849, %v2843
        %v2916 = vpack.c.bf16 %v2850, %v2844
        %v2917 = vpack.c.bf16 %v2851, %v2845
        %v2918 = vpack.c.bf16 %v2852, %v2846
        %v2919 = vpack.c.bf16 %v2859, %v2853
        %v2920 = vpack.c.bf16 %v2860, %v2854
        %v2921 = vpack.c.bf16 %v2861, %v2855
        %v2922 = vpack.c.bf16 %v2862, %v2856
        %v2923 = vpack.c.bf16 %v2863, %v2857
        %v2924 = vpack.c.bf16 %v2864, %v2858
        %v2925 = vpack.c.bf16 %v2871, %v2865
        %v2926 = vpack.c.bf16 %v2872, %v2866
        %v2927 = vpack.c.bf16 %v2873, %v2867
        %v2928 = vpack.c.bf16 %v2874, %v2868
        %v2929 = vpack.c.bf16 %v2875, %v2869
        %v2930 = vpack.c.bf16 %v2876, %v2870
        %v2931 = vpack.c.bf16 %v2883, %v2877
        %v2932 = vpack.c.bf16 %v2884, %v2878
        %v2933 = vpack.c.bf16 %v2885, %v2879
        %v2934 = vpack.c.bf16 %v2886, %v2880
        %v2935 = vpack.c.bf16 %v2887, %v2881
        %v2936 = vpack.c.bf16 %v2888, %v2882
        %v2937 = vld [vmem:[%s595] sm:$0xff]
        %v2938 = vld [vmem:[%s595 + $0x8] sm:$0xf]
        %v2939 = vld [vmem:[%s595 + $0xc] sm:$0xff]
        %v2940 = vld [vmem:[%s595 + $0x14] sm:$0xf]
        %v2941 = vld [vmem:[%s595 + $0x18] sm:$0xff]
        %v2942 = vld [vmem:[%s595 + $0x20] sm:$0xf]
        %v2943 = vld [vmem:[%s595 + $0x24] sm:$0xff]
        %v2944 = vld [vmem:[%s595 + $0x2c] sm:$0xf]
        %v2945 = vld [vmem:[%s595 + $0x30] sm:$0xff]
        %v2946 = vld [vmem:[%s595 + $0x38] sm:$0xf]
        %v2947 = vld [vmem:[%s595 + $0x3c] sm:$0xff]
        %v2948 = vld [vmem:[%s595 + $0x44] sm:$0xf]
        %v2949 = vld [vmem:[%s595 + $0x48] sm:$0xff]
        %v2950 = vld [vmem:[%s595 + $0x50] sm:$0xf]
        %v2951 = vld [vmem:[%s595 + $0x54] sm:$0xff]
        %v2952 = vld [vmem:[%s595 + $0x5c] sm:$0xf]
        %v2953 = vld [vmem:[%s595 + $0x60] sm:$0xff]
        %v2954 = vld [vmem:[%s595 + $0x68] sm:$0xf]
        %v2955 = vld [vmem:[%s595 + $0x6c] sm:$0xff]
        %v2956 = vld [vmem:[%s595 + $0x74] sm:$0xf]
        %v2957 = vld [vmem:[%s595 + $0x78] sm:$0xff]
        %v2958 = vld [vmem:[%s595 + $0x80] sm:$0xf]
        %v2959 = vld [vmem:[%s595 + $0x84] sm:$0xff]
        %v2960 = vld [vmem:[%s595 + $0x8c] sm:$0xf]
        %v2961 = vld [vmem:[%s595 + $0x90] sm:$0xff]
        %v2962 = vld [vmem:[%s595 + $0x98] sm:$0xf]
        %v2963 = vld [vmem:[%s595 + $0x9c] sm:$0xff]
        %v2964 = vld [vmem:[%s595 + $0xa4] sm:$0xf]
        %v2965 = vld [vmem:[%s595 + $0xa8] sm:$0xff]
        %v2966 = vld [vmem:[%s595 + $0xb0] sm:$0xf]
        %v2967 = vld [vmem:[%s595 + $0xb4] sm:$0xff]
        %v2968 = vld [vmem:[%s595 + $0xbc] sm:$0xf]
        %v2969 = vld [vmem:[%s595 + $0xc0] sm:$0xff]
        %v2970 = vld [vmem:[%s595 + $0xc8] sm:$0xf]
        %v2971 = vld [vmem:[%s595 + $0xcc] sm:$0xff]
        %v2972 = vld [vmem:[%s595 + $0xd4] sm:$0xf]
        %v2973 = vld [vmem:[%s595 + $0xd8] sm:$0xff]
        %v2974 = vld [vmem:[%s595 + $0xe0] sm:$0xf]
        %v2975 = vld [vmem:[%s595 + $0xe4] sm:$0xff]
        %v2976 = vld [vmem:[%s595 + $0xec] sm:$0xf]
        %v2977 = vld [vmem:[%s595 + $0xf0] sm:$0xff]
        %v2978 = vld [vmem:[%s595 + $0xf8] sm:$0xf]
        %v2979 = vld [vmem:[%s595 + $0xfc] sm:$0xff]
        %v2980 = vld [vmem:[%s595 + $0x104] sm:$0xf]
        %v2981 = vld [vmem:[%s595 + $0x108] sm:$0xff]
        %v2982 = vld [vmem:[%s595 + $0x110] sm:$0xf]
        %v2983 = vld [vmem:[%s595 + $0x114] sm:$0xff]
        %v2984 = vld [vmem:[%s595 + $0x11c] sm:$0xf]
        %v2985 = vld [vmem:[%s595 + $0x120] sm:$0xff]
        %v2986 = vld [vmem:[%s595 + $0x128] sm:$0xf]
        %v2987 = vld [vmem:[%s595 + $0x12c] sm:$0xff]
        %v2988 = vld [vmem:[%s595 + $0x134] sm:$0xf]
        %v2989 = vld [vmem:[%s595 + $0x138] sm:$0xff]
        %v2990 = vld [vmem:[%s595 + $0x140] sm:$0xf]
        %v2991 = vld [vmem:[%s595 + $0x144] sm:$0xff]
        %v2992 = vld [vmem:[%s595 + $0x14c] sm:$0xf]
        %v2993 = vld [vmem:[%s595 + $0x150] sm:$0xff]
        %v2994 = vld [vmem:[%s595 + $0x158] sm:$0xf]
        %v2995 = vld [vmem:[%s595 + $0x15c] sm:$0xff]
        %v2996 = vld [vmem:[%s595 + $0x164] sm:$0xf]
        %v2997 = vld [vmem:[%s595 + $0x168] sm:$0xff]
        %v2998 = vld [vmem:[%s595 + $0x170] sm:$0xf]
        %v2999 = vld [vmem:[%s595 + $0x174] sm:$0xff]
        %v3000 = vld [vmem:[%s595 + $0x17c] sm:$0xf]
        %v3001 = vld [vmem:[%s595 + $0x180] sm:$0xff]
        %v3002 = vld [vmem:[%s595 + $0x188] sm:$0xf]
        %v3003 = vld [vmem:[%s595 + $0x18c] sm:$0xff]
        %v3004 = vld [vmem:[%s595 + $0x194] sm:$0xf]
        %v3005 = vld [vmem:[%s595 + $0x198] sm:$0xff]
        %v3006 = vld [vmem:[%s595 + $0x1a0] sm:$0xf]
        %v3007 = vld [vmem:[%s595 + $0x1a4] sm:$0xff]
        %v3008 = vld [vmem:[%s595 + $0x1ac] sm:$0xf]
        %v3009 = vld [vmem:[%s595 + $0x1b0] sm:$0xff]
        %v3010 = vld [vmem:[%s595 + $0x1b8] sm:$0xf]
        %v3011 = vld [vmem:[%s595 + $0x1bc] sm:$0xff]
        %v3012 = vld [vmem:[%s595 + $0x1c4] sm:$0xf]
        %v3013 = vld [vmem:[%s595 + $0x1c8] sm:$0xff]
        %v3014 = vld [vmem:[%s595 + $0x1d0] sm:$0xf]
        %v3015 = vld [vmem:[%s595 + $0x1d4] sm:$0xff]
        %v3016 = vld [vmem:[%s595 + $0x1dc] sm:$0xf]
        %v3017 = vld [vmem:[%s595 + $0x1e0] sm:$0xff]
        %v3018 = vld [vmem:[%s595 + $0x1e8] sm:$0xf]
        %v3019 = vld [vmem:[%s595 + $0x1ec] sm:$0xff]
        %v3020 = vld [vmem:[%s595 + $0x1f4] sm:$0xf]
        %v3021 = vld [vmem:[%s595 + $0x1f8] sm:$0xff]
        %v3022 = vld [vmem:[%s595 + $0x200] sm:$0xf]
        %v3023 = vld [vmem:[%s595 + $0x204] sm:$0xff]
        %v3024 = vld [vmem:[%s595 + $0x20c] sm:$0xf]
        %v3025 = vld [vmem:[%s595 + $0x210] sm:$0xff]
        %v3026 = vld [vmem:[%s595 + $0x218] sm:$0xf]
        %v3027 = vld [vmem:[%s595 + $0x21c] sm:$0xff]
        %v3028 = vld [vmem:[%s595 + $0x224] sm:$0xf]
        %v3029 = vld [vmem:[%s595 + $0x228] sm:$0xff]
        %v3030 = vld [vmem:[%s595 + $0x230] sm:$0xf]
        %v3031 = vld [vmem:[%s595 + $0x234] sm:$0xff]
        %v3032 = vld [vmem:[%s595 + $0x23c] sm:$0xf]
        %v3033 = vld [vmem:[%s595 + $0x240] sm:$0xff]
        %v3034 = vld [vmem:[%s595 + $0x248] sm:$0xf]
        %v3035 = vld [vmem:[%s595 + $0x24c] sm:$0xff]
        %v3036 = vld [vmem:[%s595 + $0x254] sm:$0xf]
        %v3037 = vld [vmem:[%s595 + $0x258] sm:$0xff]
        %v3038 = vld [vmem:[%s595 + $0x260] sm:$0xf]
        %v3039 = vld [vmem:[%s595 + $0x264] sm:$0xff]
        %v3040 = vld [vmem:[%s595 + $0x26c] sm:$0xf]
        %v3041 = vld [vmem:[%s595 + $0x270] sm:$0xff]
        %v3042 = vld [vmem:[%s595 + $0x278] sm:$0xf]
        %v3043 = vld [vmem:[%s595 + $0x27c] sm:$0xff]
        %v3044 = vld [vmem:[%s595 + $0x284] sm:$0xf]
        %v3045 = vld [vmem:[%s595 + $0x288] sm:$0xff]
        %v3046 = vld [vmem:[%s595 + $0x290] sm:$0xf]
        %v3047 = vld [vmem:[%s595 + $0x294] sm:$0xff]
        %v3048 = vld [vmem:[%s595 + $0x29c] sm:$0xf]
        %v3049 = vld [vmem:[%s595 + $0x2a0] sm:$0xff]
        %v3050 = vld [vmem:[%s595 + $0x2a8] sm:$0xf]
        %v3051 = vld [vmem:[%s595 + $0x2ac] sm:$0xff]
        %v3052 = vld [vmem:[%s595 + $0x2b4] sm:$0xf]
        %v3053 = vld [vmem:[%s595 + $0x2b8] sm:$0xff]
        %v3054 = vld [vmem:[%s595 + $0x2c0] sm:$0xf]
        %v3055 = vld [vmem:[%s595 + $0x2c4] sm:$0xff]
        %v3056 = vld [vmem:[%s595 + $0x2cc] sm:$0xf]
        %v3057 = vld [vmem:[%s595 + $0x2d0] sm:$0xff]
        %v3058 = vld [vmem:[%s595 + $0x2d8] sm:$0xf]
        %v3059 = vld [vmem:[%s595 + $0x2dc] sm:$0xff]
        %v3060 = vld [vmem:[%s595 + $0x2e4] sm:$0xf]
        %v3061 = vld [vmem:[%s595 + $0x2e8] sm:$0xff]
        %v3062 = vld [vmem:[%s595 + $0x2f0] sm:$0xf]
        %v3063 = vld [vmem:[%s595 + $0x2f4] sm:$0xff]
        %v3064 = vld [vmem:[%s595 + $0x2fc] sm:$0xf]
        %v3065 = vld [vmem:[%s595 + $0x300] sm:$0xff]
        %v3066 = vld [vmem:[%s595 + $0x308] sm:$0xf]
        %v3067 = vld [vmem:[%s595 + $0x30c] sm:$0xff]
        %v3068 = vld [vmem:[%s595 + $0x314] sm:$0xf]
        %v3069 = vld [vmem:[%s595 + $0x318] sm:$0xff]
        %v3070 = vld [vmem:[%s595 + $0x320] sm:$0xf]
        %v3071 = vld [vmem:[%s595 + $0x324] sm:$0xff]
        %v3072 = vld [vmem:[%s595 + $0x32c] sm:$0xf]
        %v3073 = vld [vmem:[%s595 + $0x330] sm:$0xff]
        %v3074 = vld [vmem:[%s595 + $0x338] sm:$0xf]
        %v3075 = vld [vmem:[%s595 + $0x33c] sm:$0xff]
        %v3076 = vld [vmem:[%s595 + $0x344] sm:$0xf]
        %v3077 = vld [vmem:[%s595 + $0x348] sm:$0xff]
        %v3078 = vld [vmem:[%s595 + $0x350] sm:$0xf]
        %v3079 = vld [vmem:[%s595 + $0x354] sm:$0xff]
        %v3080 = vld [vmem:[%s595 + $0x35c] sm:$0xf]
        %v3081 = vld [vmem:[%s595 + $0x360] sm:$0xff]
        %v3082 = vld [vmem:[%s595 + $0x368] sm:$0xf]
        %v3083 = vld [vmem:[%s595 + $0x36c] sm:$0xff]
        %v3084 = vld [vmem:[%s595 + $0x374] sm:$0xf]
        %v3085 = vld [vmem:[%s595 + $0x378] sm:$0xff]
        %v3086 = vld [vmem:[%s595 + $0x380] sm:$0xf]
        %v3087 = vld [vmem:[%s595 + $0x384] sm:$0xff]
        %v3088 = vld [vmem:[%s595 + $0x38c] sm:$0xf]
        %v3089 = vld [vmem:[%s595 + $0x390] sm:$0xff]
        %v3090 = vld [vmem:[%s595 + $0x398] sm:$0xf]
        %v3091 = vld [vmem:[%s595 + $0x39c] sm:$0xff]
        %v3092 = vld [vmem:[%s595 + $0x3a4] sm:$0xf]
        %v3093 = vld [vmem:[%s595 + $0x3a8] sm:$0xff]
        %v3094 = vld [vmem:[%s595 + $0x3b0] sm:$0xf]
        %v3095 = vld [vmem:[%s595 + $0x3b4] sm:$0xff]
        %v3096 = vld [vmem:[%s595 + $0x3bc] sm:$0xf]
        %v3097 = vld [vmem:[%s595 + $0x3c0] sm:$0xff]
        %v3098 = vld [vmem:[%s595 + $0x3c8] sm:$0xf]
        %v3099 = vld [vmem:[%s595 + $0x3cc] sm:$0xff]
        %v3100 = vld [vmem:[%s595 + $0x3d4] sm:$0xf]
        %v3101 = vld [vmem:[%s595 + $0x3d8] sm:$0xff]
        %v3102 = vld [vmem:[%s595 + $0x3e0] sm:$0xf]
        %v3103 = vld [vmem:[%s595 + $0x3e4] sm:$0xff]
        %v3104 = vld [vmem:[%s595 + $0x3ec] sm:$0xf]
        %v3105 = vld [vmem:[%s595 + $0x3f0] sm:$0xff]
        %v3106 = vld [vmem:[%s595 + $0x3f8] sm:$0xf]
        %v3107 = vld [vmem:[%s595 + $0x3fc] sm:$0xff]
        %v3108 = vld [vmem:[%s595 + $0x404] sm:$0xf]
        %v3109 = vld [vmem:[%s595 + $0x408] sm:$0xff]
        %v3110 = vld [vmem:[%s595 + $0x410] sm:$0xf]
        %v3111 = vld [vmem:[%s595 + $0x414] sm:$0xff]
        %v3112 = vld [vmem:[%s595 + $0x41c] sm:$0xf]
        %v3113 = vld [vmem:[%s595 + $0x420] sm:$0xff]
        %v3114 = vld [vmem:[%s595 + $0x428] sm:$0xf]
        %v3115 = vld [vmem:[%s595 + $0x42c] sm:$0xff]
        %v3116 = vld [vmem:[%s595 + $0x434] sm:$0xf]
        %v3117 = vld [vmem:[%s595 + $0x438] sm:$0xff]
        %v3118 = vld [vmem:[%s595 + $0x440] sm:$0xf]
        %v3119 = vld [vmem:[%s595 + $0x444] sm:$0xff]
        %v3120 = vld [vmem:[%s595 + $0x44c] sm:$0xf]
        %v3121 = vld [vmem:[%s595 + $0x450] sm:$0xff]
        %v3122 = vld [vmem:[%s595 + $0x458] sm:$0xf]
        %v3123 = vld [vmem:[%s595 + $0x45c] sm:$0xff]
        %v3124 = vld [vmem:[%s595 + $0x464] sm:$0xf]
        %v3125 = vld [vmem:[%s595 + $0x468] sm:$0xff]
        %v3126 = vld [vmem:[%s595 + $0x470] sm:$0xf]
        %v3127 = vld [vmem:[%s595 + $0x474] sm:$0xff]
        %v3128 = vld [vmem:[%s595 + $0x47c] sm:$0xf]
        %v3129 = vld [vmem:[%s604] sm:$0x7]
        %v3131 = vlaneseq
        %v3132 = vshrl.u32 %v3131, 7
        %v3133 = vsub.s32 0, %v3132
        %v3134 = vrot.slane %v3129, %v3133
        %v3135 = vlaneseq
        %v3136 = vshrl.u32 %v3135, 7
        %v3137 = vsub.s32 1, %v3136
        %v3138 = vrot.slane %v3129, %v3137
        %v3139 = vlaneseq
        %v3140 = vshrl.u32 %v3139, 7
        %v3141 = vsub.s32 2, %v3140
        %v3142 = vrot.slane %v3129, %v3141
        %v3338 = vunpack.c.l.b16 %v2937
        %v3339 = vunpack.c.h.b16 %v2937
        %v3340 = vunpack.c.l.b16 %v2938
        %v3341 = vunpack.c.l.b16 %v2939
        %v3342 = vunpack.c.h.b16 %v2939
        %v3343 = vunpack.c.l.b16 %v2940
        %v3344 = vunpack.c.l.b16 %v2941
        %v3345 = vunpack.c.h.b16 %v2941
        %v3346 = vunpack.c.l.b16 %v2942
        %v3347 = vunpack.c.l.b16 %v2943
        %v3348 = vunpack.c.h.b16 %v2943
        %v3349 = vunpack.c.l.b16 %v2944
        %v3350 = vunpack.c.l.b16 %v2945
        %v3351 = vunpack.c.h.b16 %v2945
        %v3352 = vunpack.c.l.b16 %v2946
        %v3353 = vunpack.c.l.b16 %v2947
        %v3354 = vunpack.c.h.b16 %v2947
        %v3355 = vunpack.c.l.b16 %v2948
        %v3356 = vunpack.c.l.b16 %v2949
        %v3357 = vunpack.c.h.b16 %v2949
        %v3358 = vunpack.c.l.b16 %v2950
        %v3359 = vunpack.c.l.b16 %v2951
        %v3360 = vunpack.c.h.b16 %v2951
        %v3361 = vunpack.c.l.b16 %v2952
        %v3362 = vunpack.c.l.b16 %v2953
        %v3363 = vunpack.c.h.b16 %v2953
        %v3364 = vunpack.c.l.b16 %v2954
        %v3365 = vunpack.c.l.b16 %v2955
        %v3366 = vunpack.c.h.b16 %v2955
        %v3367 = vunpack.c.l.b16 %v2956
        %v3368 = vunpack.c.l.b16 %v2957
        %v3369 = vunpack.c.h.b16 %v2957
        %v3370 = vunpack.c.l.b16 %v2958
        %v3371 = vunpack.c.l.b16 %v2959
        %v3372 = vunpack.c.h.b16 %v2959
        %v3373 = vunpack.c.l.b16 %v2960
        %v3374 = vunpack.c.l.b16 %v2961
        %v3375 = vunpack.c.h.b16 %v2961
        %v3376 = vunpack.c.l.b16 %v2962
        %v3377 = vunpack.c.l.b16 %v2963
        %v3378 = vunpack.c.h.b16 %v2963
        %v3379 = vunpack.c.l.b16 %v2964
        %v3380 = vunpack.c.l.b16 %v2965
        %v3381 = vunpack.c.h.b16 %v2965
        %v3382 = vunpack.c.l.b16 %v2966
        %v3383 = vunpack.c.l.b16 %v2967
        %v3384 = vunpack.c.h.b16 %v2967
        %v3385 = vunpack.c.l.b16 %v2968
        %v3386 = vunpack.c.l.b16 %v2969
        %v3387 = vunpack.c.h.b16 %v2969
        %v3388 = vunpack.c.l.b16 %v2970
        %v3389 = vunpack.c.l.b16 %v2971
        %v3390 = vunpack.c.h.b16 %v2971
        %v3391 = vunpack.c.l.b16 %v2972
        %v3392 = vunpack.c.l.b16 %v2973
        %v3393 = vunpack.c.h.b16 %v2973
        %v3394 = vunpack.c.l.b16 %v2974
        %v3395 = vunpack.c.l.b16 %v2975
        %v3396 = vunpack.c.h.b16 %v2975
        %v3397 = vunpack.c.l.b16 %v2976
        %v3398 = vunpack.c.l.b16 %v2977
        %v3399 = vunpack.c.h.b16 %v2977
        %v3400 = vunpack.c.l.b16 %v2978
        %v3401 = vunpack.c.l.b16 %v2979
        %v3402 = vunpack.c.h.b16 %v2979
        %v3403 = vunpack.c.l.b16 %v2980
        %v3404 = vunpack.c.l.b16 %v2981
        %v3405 = vunpack.c.h.b16 %v2981
        %v3406 = vunpack.c.l.b16 %v2982
        %v3407 = vunpack.c.l.b16 %v2983
        %v3408 = vunpack.c.h.b16 %v2983
        %v3409 = vunpack.c.l.b16 %v2984
        %v3410 = vunpack.c.l.b16 %v2985
        %v3411 = vunpack.c.h.b16 %v2985
        %v3412 = vunpack.c.l.b16 %v2986
        %v3413 = vunpack.c.l.b16 %v2987
        %v3414 = vunpack.c.h.b16 %v2987
        %v3415 = vunpack.c.l.b16 %v2988
        %v3416 = vunpack.c.l.b16 %v2989
        %v3417 = vunpack.c.h.b16 %v2989
        %v3418 = vunpack.c.l.b16 %v2990
        %v3419 = vunpack.c.l.b16 %v2991
        %v3420 = vunpack.c.h.b16 %v2991
        %v3421 = vunpack.c.l.b16 %v2992
        %v3422 = vunpack.c.l.b16 %v2993
        %v3423 = vunpack.c.h.b16 %v2993
        %v3424 = vunpack.c.l.b16 %v2994
        %v3425 = vunpack.c.l.b16 %v2995
        %v3426 = vunpack.c.h.b16 %v2995
        %v3427 = vunpack.c.l.b16 %v2996
        %v3428 = vunpack.c.l.b16 %v2997
        %v3429 = vunpack.c.h.b16 %v2997
        %v3430 = vunpack.c.l.b16 %v2998
        %v3431 = vunpack.c.l.b16 %v2999
        %v3432 = vunpack.c.h.b16 %v2999
        %v3433 = vunpack.c.l.b16 %v3000
        %v3434 = vunpack.c.l.b16 %v3001
        %v3435 = vunpack.c.h.b16 %v3001
        %v3436 = vunpack.c.l.b16 %v3002
        %v3437 = vunpack.c.l.b16 %v3003
        %v3438 = vunpack.c.h.b16 %v3003
        %v3439 = vunpack.c.l.b16 %v3004
        %v3440 = vunpack.c.l.b16 %v3005
        %v3441 = vunpack.c.h.b16 %v3005
        %v3442 = vunpack.c.l.b16 %v3006
        %v3443 = vunpack.c.l.b16 %v3007
        %v3444 = vunpack.c.h.b16 %v3007
        %v3445 = vunpack.c.l.b16 %v3008
        %v3446 = vunpack.c.l.b16 %v3009
        %v3447 = vunpack.c.h.b16 %v3009
        %v3448 = vunpack.c.l.b16 %v3010
        %v3449 = vunpack.c.l.b16 %v3011
        %v3450 = vunpack.c.h.b16 %v3011
        %v3451 = vunpack.c.l.b16 %v3012
        %v3452 = vunpack.c.l.b16 %v3013
        %v3453 = vunpack.c.h.b16 %v3013
        %v3454 = vunpack.c.l.b16 %v3014
        %v3455 = vunpack.c.l.b16 %v3015
        %v3456 = vunpack.c.h.b16 %v3015
        %v3457 = vunpack.c.l.b16 %v3016
        %v3458 = vunpack.c.l.b16 %v3017
        %v3459 = vunpack.c.h.b16 %v3017
        %v3460 = vunpack.c.l.b16 %v3018
        %v3461 = vunpack.c.l.b16 %v3019
        %v3462 = vunpack.c.h.b16 %v3019
        %v3463 = vunpack.c.l.b16 %v3020
        %v3464 = vunpack.c.l.b16 %v3021
        %v3465 = vunpack.c.h.b16 %v3021
        %v3466 = vunpack.c.l.b16 %v3022
        %v3467 = vunpack.c.l.b16 %v3023
        %v3468 = vunpack.c.h.b16 %v3023
        %v3469 = vunpack.c.l.b16 %v3024
        %v3470 = vunpack.c.l.b16 %v3025
        %v3471 = vunpack.c.h.b16 %v3025
        %v3472 = vunpack.c.l.b16 %v3026
        %v3473 = vunpack.c.l.b16 %v3027
        %v3474 = vunpack.c.h.b16 %v3027
        %v3475 = vunpack.c.l.b16 %v3028
        %v3476 = vunpack.c.l.b16 %v3029
        %v3477 = vunpack.c.h.b16 %v3029
        %v3478 = vunpack.c.l.b16 %v3030
        %v3479 = vunpack.c.l.b16 %v3031
        %v3480 = vunpack.c.h.b16 %v3031
        %v3481 = vunpack.c.l.b16 %v3032
        %v3482 = vunpack.c.l.b16 %v3033
        %v3483 = vunpack.c.h.b16 %v3033
        %v3484 = vunpack.c.l.b16 %v3034
        %v3485 = vunpack.c.l.b16 %v3035
        %v3486 = vunpack.c.h.b16 %v3035
        %v3487 = vunpack.c.l.b16 %v3036
        %v3488 = vunpack.c.l.b16 %v3037
        %v3489 = vunpack.c.h.b16 %v3037
        %v3490 = vunpack.c.l.b16 %v3038
        %v3491 = vunpack.c.l.b16 %v3039
        %v3492 = vunpack.c.h.b16 %v3039
        %v3493 = vunpack.c.l.b16 %v3040
        %v3494 = vunpack.c.l.b16 %v3041
        %v3495 = vunpack.c.h.b16 %v3041
        %v3496 = vunpack.c.l.b16 %v3042
        %v3497 = vunpack.c.l.b16 %v3043
        %v3498 = vunpack.c.h.b16 %v3043
        %v3499 = vunpack.c.l.b16 %v3044
        %v3500 = vunpack.c.l.b16 %v3045
        %v3501 = vunpack.c.h.b16 %v3045
        %v3502 = vunpack.c.l.b16 %v3046
        %v3503 = vunpack.c.l.b16 %v3047
        %v3504 = vunpack.c.h.b16 %v3047
        %v3505 = vunpack.c.l.b16 %v3048
        %v3506 = vunpack.c.l.b16 %v3049
        %v3507 = vunpack.c.h.b16 %v3049
        %v3508 = vunpack.c.l.b16 %v3050
        %v3509 = vunpack.c.l.b16 %v3051
        %v3510 = vunpack.c.h.b16 %v3051
        %v3511 = vunpack.c.l.b16 %v3052
        %v3512 = vunpack.c.l.b16 %v3053
        %v3513 = vunpack.c.h.b16 %v3053
        %v3514 = vunpack.c.l.b16 %v3054
        %v3515 = vunpack.c.l.b16 %v3055
        %v3516 = vunpack.c.h.b16 %v3055
        %v3517 = vunpack.c.l.b16 %v3056
        %v3518 = vunpack.c.l.b16 %v3057
        %v3519 = vunpack.c.h.b16 %v3057
        %v3520 = vunpack.c.l.b16 %v3058
        %v3521 = vunpack.c.l.b16 %v3059
        %v3522 = vunpack.c.h.b16 %v3059
        %v3523 = vunpack.c.l.b16 %v3060
        %v3524 = vunpack.c.l.b16 %v3061
        %v3525 = vunpack.c.h.b16 %v3061
        %v3526 = vunpack.c.l.b16 %v3062
        %v3527 = vunpack.c.l.b16 %v3063
        %v3528 = vunpack.c.h.b16 %v3063
        %v3529 = vunpack.c.l.b16 %v3064
        %v3530 = vunpack.c.l.b16 %v3065
        %v3531 = vunpack.c.h.b16 %v3065
        %v3532 = vunpack.c.l.b16 %v3066
        %v3533 = vunpack.c.l.b16 %v3067
        %v3534 = vunpack.c.h.b16 %v3067
        %v3535 = vunpack.c.l.b16 %v3068
        %v3536 = vunpack.c.l.b16 %v3069
        %v3537 = vunpack.c.h.b16 %v3069
        %v3538 = vunpack.c.l.b16 %v3070
        %v3539 = vunpack.c.l.b16 %v3071
        %v3540 = vunpack.c.h.b16 %v3071
        %v3541 = vunpack.c.l.b16 %v3072
        %v3542 = vunpack.c.l.b16 %v3073
        %v3543 = vunpack.c.h.b16 %v3073
        %v3544 = vunpack.c.l.b16 %v3074
        %v3545 = vunpack.c.l.b16 %v3075
        %v3546 = vunpack.c.h.b16 %v3075
        %v3547 = vunpack.c.l.b16 %v3076
        %v3548 = vunpack.c.l.b16 %v3077
        %v3549 = vunpack.c.h.b16 %v3077
        %v3550 = vunpack.c.l.b16 %v3078
        %v3551 = vunpack.c.l.b16 %v3079
        %v3552 = vunpack.c.h.b16 %v3079
        %v3553 = vunpack.c.l.b16 %v3080
        %v3554 = vunpack.c.l.b16 %v3081
        %v3555 = vunpack.c.h.b16 %v3081
        %v3556 = vunpack.c.l.b16 %v3082
        %v3557 = vunpack.c.l.b16 %v3083
        %v3558 = vunpack.c.h.b16 %v3083
        %v3559 = vunpack.c.l.b16 %v3084
        %v3560 = vunpack.c.l.b16 %v3085
        %v3561 = vunpack.c.h.b16 %v3085
        %v3562 = vunpack.c.l.b16 %v3086
        %v3563 = vunpack.c.l.b16 %v3087
        %v3564 = vunpack.c.h.b16 %v3087
        %v3565 = vunpack.c.l.b16 %v3088
        %v3566 = vunpack.c.l.b16 %v3089
        %v3567 = vunpack.c.h.b16 %v3089
        %v3568 = vunpack.c.l.b16 %v3090
        %v3569 = vunpack.c.l.b16 %v3091
        %v3570 = vunpack.c.h.b16 %v3091
        %v3571 = vunpack.c.l.b16 %v3092
        %v3572 = vunpack.c.l.b16 %v3093
        %v3573 = vunpack.c.h.b16 %v3093
        %v3574 = vunpack.c.l.b16 %v3094
        %v3575 = vunpack.c.l.b16 %v3095
        %v3576 = vunpack.c.h.b16 %v3095
        %v3577 = vunpack.c.l.b16 %v3096
        %v3578 = vunpack.c.l.b16 %v3097
        %v3579 = vunpack.c.h.b16 %v3097
        %v3580 = vunpack.c.l.b16 %v3098
        %v3581 = vunpack.c.l.b16 %v3099
        %v3582 = vunpack.c.h.b16 %v3099
        %v3583 = vunpack.c.l.b16 %v3100
        %v3584 = vunpack.c.l.b16 %v3101
        %v3585 = vunpack.c.h.b16 %v3101
        %v3586 = vunpack.c.l.b16 %v3102
        %v3587 = vunpack.c.l.b16 %v3103
        %v3588 = vunpack.c.h.b16 %v3103
        %v3589 = vunpack.c.l.b16 %v3104
        %v3590 = vunpack.c.l.b16 %v3105
        %v3591 = vunpack.c.h.b16 %v3105
        %v3592 = vunpack.c.l.b16 %v3106
        %v3593 = vunpack.c.l.b16 %v3107
        %v3594 = vunpack.c.h.b16 %v3107
        %v3595 = vunpack.c.l.b16 %v3108
        %v3596 = vunpack.c.l.b16 %v3109
        %v3597 = vunpack.c.h.b16 %v3109
        %v3598 = vunpack.c.l.b16 %v3110
        %v3599 = vunpack.c.l.b16 %v3111
        %v3600 = vunpack.c.h.b16 %v3111
        %v3601 = vunpack.c.l.b16 %v3112
        %v3602 = vunpack.c.l.b16 %v3113
        %v3603 = vunpack.c.h.b16 %v3113
        %v3604 = vunpack.c.l.b16 %v3114
        %v3605 = vunpack.c.l.b16 %v3115
        %v3606 = vunpack.c.h.b16 %v3115
        %v3607 = vunpack.c.l.b16 %v3116
        %v3608 = vunpack.c.l.b16 %v3117
        %v3609 = vunpack.c.h.b16 %v3117
        %v3610 = vunpack.c.l.b16 %v3118
        %v3611 = vunpack.c.l.b16 %v3119
        %v3612 = vunpack.c.h.b16 %v3119
        %v3613 = vunpack.c.l.b16 %v3120
        %v3614 = vunpack.c.l.b16 %v3121
        %v3615 = vunpack.c.h.b16 %v3121
        %v3616 = vunpack.c.l.b16 %v3122
        %v3617 = vunpack.c.l.b16 %v3123
        %v3618 = vunpack.c.h.b16 %v3123
        %v3619 = vunpack.c.l.b16 %v3124
        %v3620 = vunpack.c.l.b16 %v3125
        %v3621 = vunpack.c.h.b16 %v3125
        %v3622 = vunpack.c.l.b16 %v3126
        %v3623 = vunpack.c.l.b16 %v3127
        %v3624 = vunpack.c.h.b16 %v3127
        %v3625 = vunpack.c.l.b16 %v3128
        %v3626 = vpack.c.b16 %v3341, %v3338
        %v3627 = vpack.c.b16 %v3342, %v3339
        %v3628 = vpack.c.b16 %v3343, %v3340
        %v3629 = vpack.c.b16 %v3347, %v3344
        %v3630 = vpack.c.b16 %v3348, %v3345
        %v3631 = vpack.c.b16 %v3349, %v3346
        %v3632 = vpack.c.b16 %v3353, %v3350
        %v3633 = vpack.c.b16 %v3354, %v3351
        %v3634 = vpack.c.b16 %v3355, %v3352
        %v3635 = vpack.c.b16 %v3359, %v3356
        %v3636 = vpack.c.b16 %v3360, %v3357
        %v3637 = vpack.c.b16 %v3361, %v3358
        %v3638 = vpack.c.b16 %v3365, %v3362
        %v3639 = vpack.c.b16 %v3366, %v3363
        %v3640 = vpack.c.b16 %v3367, %v3364
        %v3641 = vpack.c.b16 %v3371, %v3368
        %v3642 = vpack.c.b16 %v3372, %v3369
        %v3643 = vpack.c.b16 %v3373, %v3370
        %v3644 = vpack.c.b16 %v3377, %v3374
        %v3645 = vpack.c.b16 %v3378, %v3375
        %v3646 = vpack.c.b16 %v3379, %v3376
        %v3647 = vpack.c.b16 %v3383, %v3380
        %v3648 = vpack.c.b16 %v3384, %v3381
        %v3649 = vpack.c.b16 %v3385, %v3382
        %v3650 = vpack.c.b16 %v3389, %v3386
        %v3651 = vpack.c.b16 %v3390, %v3387
        %v3652 = vpack.c.b16 %v3391, %v3388
        %v3653 = vpack.c.b16 %v3395, %v3392
        %v3654 = vpack.c.b16 %v3396, %v3393
        %v3655 = vpack.c.b16 %v3397, %v3394
        %v3656 = vpack.c.b16 %v3401, %v3398
        %v3657 = vpack.c.b16 %v3402, %v3399
        %v3658 = vpack.c.b16 %v3403, %v3400
        %v3659 = vpack.c.b16 %v3407, %v3404
        %v3660 = vpack.c.b16 %v3408, %v3405
        %v3661 = vpack.c.b16 %v3409, %v3406
        %v3662 = vpack.c.b16 %v3413, %v3410
        %v3663 = vpack.c.b16 %v3414, %v3411
        %v3664 = vpack.c.b16 %v3415, %v3412
        %v3665 = vpack.c.b16 %v3419, %v3416
        %v3666 = vpack.c.b16 %v3420, %v3417
        %v3667 = vpack.c.b16 %v3421, %v3418
        %v3668 = vpack.c.b16 %v3425, %v3422
        %v3669 = vpack.c.b16 %v3426, %v3423
        %v3670 = vpack.c.b16 %v3427, %v3424
        %v3671 = vpack.c.b16 %v3431, %v3428
        %v3672 = vpack.c.b16 %v3432, %v3429
        %v3673 = vpack.c.b16 %v3433, %v3430
        %v3674 = vpack.c.b16 %v3437, %v3434
        %v3675 = vpack.c.b16 %v3438, %v3435
        %v3676 = vpack.c.b16 %v3439, %v3436
        %v3677 = vpack.c.b16 %v3443, %v3440
        %v3678 = vpack.c.b16 %v3444, %v3441
        %v3679 = vpack.c.b16 %v3445, %v3442
        %v3680 = vpack.c.b16 %v3449, %v3446
        %v3681 = vpack.c.b16 %v3450, %v3447
        %v3682 = vpack.c.b16 %v3451, %v3448
        %v3683 = vpack.c.b16 %v3455, %v3452
        %v3684 = vpack.c.b16 %v3456, %v3453
        %v3685 = vpack.c.b16 %v3457, %v3454
        %v3686 = vpack.c.b16 %v3461, %v3458
        %v3687 = vpack.c.b16 %v3462, %v3459
        %v3688 = vpack.c.b16 %v3463, %v3460
        %v3689 = vpack.c.b16 %v3467, %v3464
        %v3690 = vpack.c.b16 %v3468, %v3465
        %v3691 = vpack.c.b16 %v3469, %v3466
        %v3692 = vpack.c.b16 %v3473, %v3470
        %v3693 = vpack.c.b16 %v3474, %v3471
        %v3694 = vpack.c.b16 %v3475, %v3472
        %v3695 = vpack.c.b16 %v3479, %v3476
        %v3696 = vpack.c.b16 %v3480, %v3477
        %v3697 = vpack.c.b16 %v3481, %v3478
        %v3698 = vpack.c.b16 %v3485, %v3482
        %v3699 = vpack.c.b16 %v3486, %v3483
        %v3700 = vpack.c.b16 %v3487, %v3484
        %v3701 = vpack.c.b16 %v3491, %v3488
        %v3702 = vpack.c.b16 %v3492, %v3489
        %v3703 = vpack.c.b16 %v3493, %v3490
        %v3704 = vpack.c.b16 %v3497, %v3494
        %v3705 = vpack.c.b16 %v3498, %v3495
        %v3706 = vpack.c.b16 %v3499, %v3496
        %v3707 = vpack.c.b16 %v3503, %v3500
        %v3708 = vpack.c.b16 %v3504, %v3501
        %v3709 = vpack.c.b16 %v3505, %v3502
        %v3710 = vpack.c.b16 %v3509, %v3506
        %v3711 = vpack.c.b16 %v3510, %v3507
        %v3712 = vpack.c.b16 %v3511, %v3508
        %v3713 = vpack.c.b16 %v3515, %v3512
        %v3714 = vpack.c.b16 %v3516, %v3513
        %v3715 = vpack.c.b16 %v3517, %v3514
        %v3716 = vpack.c.b16 %v3521, %v3518
        %v3717 = vpack.c.b16 %v3522, %v3519
        %v3718 = vpack.c.b16 %v3523, %v3520
        %v3719 = vpack.c.b16 %v3527, %v3524
        %v3720 = vpack.c.b16 %v3528, %v3525
        %v3721 = vpack.c.b16 %v3529, %v3526
        %v3722 = vpack.c.b16 %v3533, %v3530
        %v3723 = vpack.c.b16 %v3534, %v3531
        %v3724 = vpack.c.b16 %v3535, %v3532
        %v3725 = vpack.c.b16 %v3539, %v3536
        %v3726 = vpack.c.b16 %v3540, %v3537
        %v3727 = vpack.c.b16 %v3541, %v3538
        %v3728 = vpack.c.b16 %v3545, %v3542
        %v3729 = vpack.c.b16 %v3546, %v3543
        %v3730 = vpack.c.b16 %v3547, %v3544
        %v3731 = vpack.c.b16 %v3551, %v3548
        %v3732 = vpack.c.b16 %v3552, %v3549
        %v3733 = vpack.c.b16 %v3553, %v3550
        %v3734 = vpack.c.b16 %v3557, %v3554
        %v3735 = vpack.c.b16 %v3558, %v3555
        %v3736 = vpack.c.b16 %v3559, %v3556
        %v3737 = vpack.c.b16 %v3563, %v3560
        %v3738 = vpack.c.b16 %v3564, %v3561
        %v3739 = vpack.c.b16 %v3565, %v3562
        %v3740 = vpack.c.b16 %v3569, %v3566
        %v3741 = vpack.c.b16 %v3570, %v3567
        %v3742 = vpack.c.b16 %v3571, %v3568
        %v3743 = vpack.c.b16 %v3575, %v3572
        %v3744 = vpack.c.b16 %v3576, %v3573
        %v3745 = vpack.c.b16 %v3577, %v3574
        %v3746 = vpack.c.b16 %v3581, %v3578
        %v3747 = vpack.c.b16 %v3582, %v3579
        %v3748 = vpack.c.b16 %v3583, %v3580
        %v3749 = vpack.c.b16 %v3587, %v3584
        %v3750 = vpack.c.b16 %v3588, %v3585
        %v3751 = vpack.c.b16 %v3589, %v3586
        %v3752 = vpack.c.b16 %v3593, %v3590
        %v3753 = vpack.c.b16 %v3594, %v3591
        %v3754 = vpack.c.b16 %v3595, %v3592
        %v3755 = vpack.c.b16 %v3599, %v3596
        %v3756 = vpack.c.b16 %v3600, %v3597
        %v3757 = vpack.c.b16 %v3601, %v3598
        %v3758 = vpack.c.b16 %v3605, %v3602
        %v3759 = vpack.c.b16 %v3606, %v3603
        %v3760 = vpack.c.b16 %v3607, %v3604
        %v3761 = vpack.c.b16 %v3611, %v3608
        %v3762 = vpack.c.b16 %v3612, %v3609
        %v3763 = vpack.c.b16 %v3613, %v3610
        %v3764 = vpack.c.b16 %v3617, %v3614
        %v3765 = vpack.c.b16 %v3618, %v3615
        %v3766 = vpack.c.b16 %v3619, %v3616
        %v3767 = vpack.c.b16 %v3623, %v3620
        %v3768 = vpack.c.b16 %v3624, %v3621
        %v3769 = vpack.c.b16 %v3625, %v3622
        %3914 = vmatprep.subr.bf16.mxu0 %v3627
        %3915 = vmatpush1.bf16.msra.mxu0 %v3626
        %3916 = vmatprep.subr.bf16.mxu0 %v3630
        %3917 = vmatpush1.bf16.msra.mxu0 %v3629
        %3918 = vmatprep.subr.bf16.mxu0 %v3633
        %3919 = vmatpush1.bf16.msra.mxu0 %v3632
        %3920 = vmatprep.subr.bf16.mxu0 %v3636
        %3921 = vmatpush1.bf16.msra.mxu0 %v3635
        %3922 = vmatprep.subr.bf16.mxu0 %v3639
        %3923 = vmatpush1.bf16.msra.mxu0 %v3638
        %3924 = vmatprep.subr.bf16.mxu0 %v3642
        %3925 = vmatpush1.bf16.msra.mxu0 %v3641
        %3926 = vmatprep.subr.bf16.mxu0 %v3645
        %3927 = vmatpush1.bf16.msra.mxu0 %v3644
        %3928 = vmatprep.subr.bf16.mxu0 %v3648
        %3929 = vmatpush1.bf16.msra.mxu0 %v3647
        %3930 = vmatprep.subr.bf16.mxu0 %v3651
        %3931 = vmatpush1.bf16.msra.mxu0 %v3650
        %3932 = vmatprep.subr.bf16.mxu0 %v3654
        %3933 = vmatpush1.bf16.msra.mxu0 %v3653
        %3934 = vmatprep.subr.bf16.mxu0 %v3657
        %3935 = vmatpush1.bf16.msra.mxu0 %v3656
        %3936 = vmatprep.subr.bf16.mxu0 %v3660
        %3937 = vmatpush1.bf16.msra.mxu0 %v3659
        %3938 = vmatprep.subr.bf16.mxu0 %v3663
        %3939 = vmatpush1.bf16.msra.mxu0 %v3662
        %3940 = vmatprep.subr.bf16.mxu0 %v3666
        %3941 = vmatpush1.bf16.msra.mxu0 %v3665
        %3942 = vmatprep.subr.bf16.mxu0 %v3669
        %3943 = vmatpush1.bf16.msra.mxu0 %v3668
        %3944 = vmatprep.subr.bf16.mxu0 %v3672
        %3945 = vmatpush1.bf16.msra.mxu0 %v3671
        %3946 = vmatprep.mubr.bf16.mxu0 %v2890
        %3947 = vmatmul.mubr.bf16.gmra.mrb[0].mxu0 %v2889
        %v3948 = vpop.f32.mrb[0].mxu0
        %v3949 = vadd.f32 %v3134, %v3948
        %v3950 = vpop.f32.mrb[0].mxu0
        %v3951 = vadd.f32 %v3138, %v3950
        %v3952 = vpop.f32.mrb[0].mxu0
        %v3953 = vadd.f32 %v3134, %v3952
        %v3954 = vpop.f32.mrb[0].mxu0
        %v3955 = vadd.f32 %v3138, %v3954
        %3956 = vmatprep.mubr.bf16.mxu0 %v2896
        %3957 = vmatmul.mubr.bf16.gmra.mrb[0].mxu0 %v2895
        %v3958 = vpop.f32.mrb[0].mxu0
        %v3959 = vadd.f32 %v3134, %v3958
        %v3960 = vpop.f32.mrb[0].mxu0
        %v3961 = vadd.f32 %v3138, %v3960
        %v3962 = vpop.f32.mrb[0].mxu0
        %v3963 = vadd.f32 %v3134, %v3962
        %v3964 = vpop.f32.mrb[0].mxu0
        %v3965 = vadd.f32 %v3138, %v3964
        %3966 = vmatprep.mubr.bf16.mxu0 %v2902
        %3967 = vmatmul.mubr.bf16.gmra.mrb[0].mxu0 %v2901
        %v3968 = vpop.f32.mrb[0].mxu0
        %v3969 = vadd.f32 %v3134, %v3968
        %v3970 = vpop.f32.mrb[0].mxu0
        %v3971 = vadd.f32 %v3138, %v3970
        %v3972 = vpop.f32.mrb[0].mxu0
        %v3973 = vadd.f32 %v3134, %v3972
        %v3974 = vpop.f32.mrb[0].mxu0
        %v3975 = vadd.f32 %v3138, %v3974
        %3976 = vmatprep.mubr.bf16.mxu0 %v2908
        %3977 = vmatmul.mubr.bf16.gmra.mrb[0].mxu0 %v2907
        %v3978 = vpop.f32.mrb[0].mxu0
        %v3979 = vadd.f32 %v3134, %v3978
        %v3980 = vpop.f32.mrb[0].mxu0
        %v3981 = vadd.f32 %v3138, %v3980
        %v3982 = vpop.f32.mrb[0].mxu0
        %v3983 = vadd.f32 %v3134, %v3982
        %v3984 = vpop.f32.mrb[0].mxu0
        %v3985 = vadd.f32 %v3138, %v3984
        %3986 = vmatprep.mubr.bf16.mxu0 %v2914
        %3987 = vmatmul.mubr.bf16.gmra.mrb[0].mxu0 %v2913
        %v3988 = vpop.f32.mrb[0].mxu0
        %v3989 = vadd.f32 %v3134, %v3988
        %v3990 = vpop.f32.mrb[0].mxu0
        %v3991 = vadd.f32 %v3138, %v3990
        %v3992 = vpop.f32.mrb[0].mxu0
        %v3993 = vadd.f32 %v3134, %v3992
        %v3994 = vpop.f32.mrb[0].mxu0
        %v3995 = vadd.f32 %v3138, %v3994
        %3996 = vmatprep.mubr.bf16.mxu0 %v2920
        %3997 = vmatmul.mubr.bf16.gmra.mrb[0].mxu0 %v2919
        %v3998 = vpop.f32.mrb[0].mxu0
        %v3999 = vadd.f32 %v3134, %v3998
        %v4000 = vpop.f32.mrb[0].mxu0
        %v4001 = vadd.f32 %v3138, %v4000
        %v4002 = vpop.f32.mrb[0].mxu0
        %v4003 = vadd.f32 %v3134, %v4002
        %v4004 = vpop.f32.mrb[0].mxu0
        %v4005 = vadd.f32 %v3138, %v4004
        %4006 = vmatprep.mubr.bf16.mxu0 %v2926
        %4007 = vmatmul.mubr.bf16.gmra.mrb[0].mxu0 %v2925
        %v4008 = vpop.f32.mrb[0].mxu0
        %v4009 = vadd.f32 %v3134, %v4008
        %v4010 = vpop.f32.mrb[0].mxu0
        %v4011 = vadd.f32 %v3138, %v4010
        %v4012 = vpop.f32.mrb[0].mxu0
        %v4013 = vadd.f32 %v3134, %v4012
        %v4014 = vpop.f32.mrb[0].mxu0
        %v4015 = vadd.f32 %v3138, %v4014
        %4016 = vmatprep.mubr.bf16.mxu0 %v2932
        %4017 = vmatmul.mubr.bf16.gmra.mrb[0].mxu0 %v2931
        %v4018 = vpop.f32.mrb[0].mxu0
        %v4019 = vadd.f32 %v3134, %v4018
        %v4020 = vpop.f32.mrb[0].mxu0
        %v4021 = vadd.f32 %v3138, %v4020
        %v4022 = vpop.f32.mrb[0].mxu0
        %v4023 = vadd.f32 %v3134, %v4022
        %v4024 = vpop.f32.mrb[0].mxu0
        %v4025 = vadd.f32 %v3138, %v4024
        %4026 = vdwg.mxu0
        %4027 = vmatprep.subr.bf16.mxu0 %v3675
        %4028 = vmatpush1.bf16.msra.mxu0 %v3674
        %4029 = vmatprep.subr.bf16.mxu0 %v3678
        %4030 = vmatpush1.bf16.msra.mxu0 %v3677
        %4031 = vmatprep.subr.bf16.mxu0 %v3681
        %4032 = vmatpush1.bf16.msra.mxu0 %v3680
        %4033 = vmatprep.subr.bf16.mxu0 %v3684
        %4034 = vmatpush1.bf16.msra.mxu0 %v3683
        %4035 = vmatprep.subr.bf16.mxu0 %v3687
        %4036 = vmatpush1.bf16.msra.mxu0 %v3686
        %4037 = vmatprep.subr.bf16.mxu0 %v3690
        %4038 = vmatpush1.bf16.msra.mxu0 %v3689
        %4039 = vmatprep.subr.bf16.mxu0 %v3693
        %4040 = vmatpush1.bf16.msra.mxu0 %v3692
        %4041 = vmatprep.subr.bf16.mxu0 %v3696
        %4042 = vmatpush1.bf16.msra.mxu0 %v3695
        %4043 = vmatprep.subr.bf16.mxu0 %v3699
        %4044 = vmatpush1.bf16.msra.mxu0 %v3698
        %4045 = vmatprep.subr.bf16.mxu0 %v3702
        %4046 = vmatpush1.bf16.msra.mxu0 %v3701
        %4047 = vmatprep.subr.bf16.mxu0 %v3705
        %4048 = vmatpush1.bf16.msra.mxu0 %v3704
        %4049 = vmatprep.subr.bf16.mxu0 %v3708
        %4050 = vmatpush1.bf16.msra.mxu0 %v3707
        %4051 = vmatprep.subr.bf16.mxu0 %v3711
        %4052 = vmatpush1.bf16.msra.mxu0 %v3710
        %4053 = vmatprep.subr.bf16.mxu0 %v3714
        %4054 = vmatpush1.bf16.msra.mxu0 %v3713
        %4055 = vmatprep.subr.bf16.mxu0 %v3717
        %4056 = vmatpush1.bf16.msra.mxu0 %v3716
        %4057 = vmatprep.subr.bf16.mxu0 %v3720
        %4058 = vmatpush1.bf16.msra.mxu0 %v3719
        %4059 = vmatprep.mubr.bf16.mxu0 %v2892
        %4060 = vmatmul.mubr.bf16.gmra.mrb[0].mxu0 %v2891
        %v4061 = vpop.f32.mrb[0].mxu0
        %v4062 = vadd.f32 %v3949, %v4061
        %v4063 = vpop.f32.mrb[0].mxu0
        %v4064 = vadd.f32 %v3951, %v4063
        %v4065 = vpop.f32.mrb[0].mxu0
        %v4066 = vadd.f32 %v3953, %v4065
        %v4067 = vpop.f32.mrb[0].mxu0
        %v4068 = vadd.f32 %v3955, %v4067
        %4069 = vmatprep.mubr.bf16.mxu0 %v2898
        %4070 = vmatmul.mubr.bf16.gmra.mrb[0].mxu0 %v2897
        %v4071 = vpop.f32.mrb[0].mxu0
        %v4072 = vadd.f32 %v3959, %v4071
        %v4073 = vpop.f32.mrb[0].mxu0
        %v4074 = vadd.f32 %v3961, %v4073
        %v4075 = vpop.f32.mrb[0].mxu0
        %v4076 = vadd.f32 %v3963, %v4075
        %v4077 = vpop.f32.mrb[0].mxu0
        %v4078 = vadd.f32 %v3965, %v4077
        %4079 = vmatprep.mubr.bf16.mxu0 %v2904
        %4080 = vmatmul.mubr.bf16.gmra.mrb[0].mxu0 %v2903
        %v4081 = vpop.f32.mrb[0].mxu0
        %v4082 = vadd.f32 %v3969, %v4081
        %v4083 = vpop.f32.mrb[0].mxu0
        %v4084 = vadd.f32 %v3971, %v4083
        %v4085 = vpop.f32.mrb[0].mxu0
        %v4086 = vadd.f32 %v3973, %v4085
        %v4087 = vpop.f32.mrb[0].mxu0
        %v4088 = vadd.f32 %v3975, %v4087
        %4089 = vmatprep.mubr.bf16.mxu0 %v2910
        %4090 = vmatmul.mubr.bf16.gmra.mrb[0].mxu0 %v2909
        %v4091 = vpop.f32.mrb[0].mxu0
        %v4092 = vadd.f32 %v3979, %v4091
        %v4093 = vpop.f32.mrb[0].mxu0
        %v4094 = vadd.f32 %v3981, %v4093
        %v4095 = vpop.f32.mrb[0].mxu0
        %v4096 = vadd.f32 %v3983, %v4095
        %v4097 = vpop.f32.mrb[0].mxu0
        %v4098 = vadd.f32 %v3985, %v4097
        %4099 = vmatprep.mubr.bf16.mxu0 %v2916
        %4100 = vmatmul.mubr.bf16.gmra.mrb[0].mxu0 %v2915
        %v4101 = vpop.f32.mrb[0].mxu0
        %v4102 = vadd.f32 %v3989, %v4101
        %v4103 = vpop.f32.mrb[0].mxu0
        %v4104 = vadd.f32 %v3991, %v4103
        %v4105 = vpop.f32.mrb[0].mxu0
        %v4106 = vadd.f32 %v3993, %v4105
        %v4107 = vpop.f32.mrb[0].mxu0
        %v4108 = vadd.f32 %v3995, %v4107
        %4109 = vmatprep.mubr.bf16.mxu0 %v2922
        %4110 = vmatmul.mubr.bf16.gmra.mrb[0].mxu0 %v2921
        %v4111 = vpop.f32.mrb[0].mxu0
        %v4112 = vadd.f32 %v3999, %v4111
        %v4113 = vpop.f32.mrb[0].mxu0
        %v4114 = vadd.f32 %v4001, %v4113
        %v4115 = vpop.f32.mrb[0].mxu0
        %v4116 = vadd.f32 %v4003, %v4115
        %v4117 = vpop.f32.mrb[0].mxu0
        %v4118 = vadd.f32 %v4005, %v4117
        %4119 = vmatprep.mubr.bf16.mxu0 %v2928
        %4120 = vmatmul.mubr.bf16.gmra.mrb[0].mxu0 %v2927
        %v4121 = vpop.f32.mrb[0].mxu0
        %v4122 = vadd.f32 %v4009, %v4121
        %v4123 = vpop.f32.mrb[0].mxu0
        %v4124 = vadd.f32 %v4011, %v4123
        %v4125 = vpop.f32.mrb[0].mxu0
        %v4126 = vadd.f32 %v4013, %v4125
        %v4127 = vpop.f32.mrb[0].mxu0
        %v4128 = vadd.f32 %v4015, %v4127
        %4129 = vmatprep.mubr.bf16.mxu0 %v2934
        %4130 = vmatmul.mubr.bf16.gmra.mrb[0].mxu0 %v2933
        %v4131 = vpop.f32.mrb[0].mxu0
        %v4132 = vadd.f32 %v4019, %v4131
        %v4133 = vpop.f32.mrb[0].mxu0
        %v4134 = vadd.f32 %v4021, %v4133
        %v4135 = vpop.f32.mrb[0].mxu0
        %v4136 = vadd.f32 %v4023, %v4135
        %v4137 = vpop.f32.mrb[0].mxu0
        %v4138 = vadd.f32 %v4025, %v4137
        %4139 = vdwg.mxu0
        %4140 = vmatprep.subr.bf16.mxu0 %v3723
        %4141 = vmatpush1.bf16.msra.mxu0 %v3722
        %4142 = vmatprep.subr.bf16.mxu0 %v3726
        %4143 = vmatpush1.bf16.msra.mxu0 %v3725
        %4144 = vmatprep.subr.bf16.mxu0 %v3729
        %4145 = vmatpush1.bf16.msra.mxu0 %v3728
        %4146 = vmatprep.subr.bf16.mxu0 %v3732
        %4147 = vmatpush1.bf16.msra.mxu0 %v3731
        %4148 = vmatprep.subr.bf16.mxu0 %v3735
        %4149 = vmatpush1.bf16.msra.mxu0 %v3734
        %4150 = vmatprep.subr.bf16.mxu0 %v3738
        %4151 = vmatpush1.bf16.msra.mxu0 %v3737
        %4152 = vmatprep.subr.bf16.mxu0 %v3741
        %4153 = vmatpush1.bf16.msra.mxu0 %v3740
        %4154 = vmatprep.subr.bf16.mxu0 %v3744
        %4155 = vmatpush1.bf16.msra.mxu0 %v3743
        %4156 = vmatprep.subr.bf16.mxu0 %v3747
        %4157 = vmatpush1.bf16.msra.mxu0 %v3746
        %4158 = vmatprep.subr.bf16.mxu0 %v3750
        %4159 = vmatpush1.bf16.msra.mxu0 %v3749
        %4160 = vmatprep.subr.bf16.mxu0 %v3753
        %4161 = vmatpush1.bf16.msra.mxu0 %v3752
        %4162 = vmatprep.subr.bf16.mxu0 %v3756
        %4163 = vmatpush1.bf16.msra.mxu0 %v3755
        %4164 = vmatprep.subr.bf16.mxu0 %v3759
        %4165 = vmatpush1.bf16.msra.mxu0 %v3758
        %4166 = vmatprep.subr.bf16.mxu0 %v3762
        %4167 = vmatpush1.bf16.msra.mxu0 %v3761
        %4168 = vmatprep.subr.bf16.mxu0 %v3765
        %4169 = vmatpush1.bf16.msra.mxu0 %v3764
        %4170 = vmatprep.subr.bf16.mxu0 %v3768
        %4171 = vmatpush1.bf16.msra.mxu0 %v3767
        %4172 = vmatprep.mubr.bf16.mxu0 %v2894
        %4173 = vmatmul.mubr.bf16.gmra.mrb[0].mxu0 %v2893
        %v4174 = vpop.f32.mrb[0].mxu0
        %v4175 = vadd.f32 %v4062, %v4174
        %v4176 = vpop.f32.mrb[0].mxu0
        %v4177 = vadd.f32 %v4064, %v4176
        %v4178 = vpop.f32.mrb[0].mxu0
        %v4179 = vadd.f32 %v4066, %v4178
        %v4180 = vpop.f32.mrb[0].mxu0
        %v4181 = vadd.f32 %v4068, %v4180
        %4182 = vmatprep.mubr.bf16.mxu0 %v2900
        %4183 = vmatmul.mubr.bf16.gmra.mrb[0].mxu0 %v2899
        %v4184 = vpop.f32.mrb[0].mxu0
        %v4185 = vadd.f32 %v4072, %v4184
        %v4186 = vpop.f32.mrb[0].mxu0
        %v4187 = vadd.f32 %v4074, %v4186
        %v4188 = vpop.f32.mrb[0].mxu0
        %v4189 = vadd.f32 %v4076, %v4188
        %v4190 = vpop.f32.mrb[0].mxu0
        %v4191 = vadd.f32 %v4078, %v4190
        %4192 = vmatprep.mubr.bf16.mxu0 %v2906
        %4193 = vmatmul.mubr.bf16.gmra.mrb[0].mxu0 %v2905
        %v4194 = vpop.f32.mrb[0].mxu0
        %v4195 = vadd.f32 %v4082, %v4194
        %v4196 = vpop.f32.mrb[0].mxu0
        %v4197 = vadd.f32 %v4084, %v4196
        %v4198 = vpop.f32.mrb[0].mxu0
        %v4199 = vadd.f32 %v4086, %v4198
        %v4200 = vpop.f32.mrb[0].mxu0
        %v4201 = vadd.f32 %v4088, %v4200
        %4202 = vmatprep.mubr.bf16.mxu0 %v2912
        %4203 = vmatmul.mubr.bf16.gmra.mrb[0].mxu0 %v2911
        %v4204 = vpop.f32.mrb[0].mxu0
        %v4205 = vadd.f32 %v4092, %v4204
        %v4206 = vpop.f32.mrb[0].mxu0
        %v4207 = vadd.f32 %v4094, %v4206
        %v4208 = vpop.f32.mrb[0].mxu0
        %v4209 = vadd.f32 %v4096, %v4208
        %v4210 = vpop.f32.mrb[0].mxu0
        %v4211 = vadd.f32 %v4098, %v4210
        %4212 = vmatprep.mubr.bf16.mxu0 %v2918
        %4213 = vmatmul.mubr.bf16.gmra.mrb[0].mxu0 %v2917
        %v4214 = vpop.f32.mrb[0].mxu0
        %v4215 = vadd.f32 %v4102, %v4214
        %v4216 = vpop.f32.mrb[0].mxu0
        %v4217 = vadd.f32 %v4104, %v4216
        %v4218 = vpop.f32.mrb[0].mxu0
        %v4219 = vadd.f32 %v4106, %v4218
        %v4220 = vpop.f32.mrb[0].mxu0
        %v4221 = vadd.f32 %v4108, %v4220
        %4222 = vmatprep.mubr.bf16.mxu0 %v2924
        %4223 = vmatmul.mubr.bf16.gmra.mrb[0].mxu0 %v2923
        %v4224 = vpop.f32.mrb[0].mxu0
        %v4225 = vadd.f32 %v4112, %v4224
        %v4226 = vpop.f32.mrb[0].mxu0
        %v4227 = vadd.f32 %v4114, %v4226
        %v4228 = vpop.f32.mrb[0].mxu0
        %v4229 = vadd.f32 %v4116, %v4228
        %v4230 = vpop.f32.mrb[0].mxu0
        %v4231 = vadd.f32 %v4118, %v4230
        %4232 = vmatprep.mubr.bf16.mxu0 %v2930
        %4233 = vmatmul.mubr.bf16.gmra.mrb[0].mxu0 %v2929
        %v4234 = vpop.f32.mrb[0].mxu0
        %v4235 = vadd.f32 %v4122, %v4234
        %v4236 = vpop.f32.mrb[0].mxu0
        %v4237 = vadd.f32 %v4124, %v4236
        %v4238 = vpop.f32.mrb[0].mxu0
        %v4239 = vadd.f32 %v4126, %v4238
        %v4240 = vpop.f32.mrb[0].mxu0
        %v4241 = vadd.f32 %v4128, %v4240
        %4242 = vmatprep.mubr.bf16.mxu0 %v2936
        %4243 = vmatmul.mubr.bf16.gmra.mrb[0].mxu0 %v2935
        %v4244 = vpop.f32.mrb[0].mxu0
        %v4245 = vadd.f32 %v4132, %v4244
        %v4246 = vpop.f32.mrb[0].mxu0
        %v4247 = vadd.f32 %v4134, %v4246
        %v4248 = vpop.f32.mrb[0].mxu0
        %v4249 = vadd.f32 %v4136, %v4248
        %v4250 = vpop.f32.mrb[0].mxu0
        %v4251 = vadd.f32 %v4138, %v4250
        %4252 = vdwg.mxu0
        %4253 = vmatprep.subr.bf16.mxu0 0
        %4254 = vmatpush1.bf16.msra.mxu0 %v3628
        %4255 = vmatprep.subr.bf16.mxu0 0
        %4256 = vmatpush1.bf16.msra.mxu0 %v3631
        %4257 = vmatprep.subr.bf16.mxu0 0
        %4258 = vmatpush1.bf16.msra.mxu0 %v3634
        %4259 = vmatprep.subr.bf16.mxu0 0
        %4260 = vmatpush1.bf16.msra.mxu0 %v3637
        %4261 = vmatprep.subr.bf16.mxu0 0
        %4262 = vmatpush1.bf16.msra.mxu0 %v3640
        %4263 = vmatprep.subr.bf16.mxu0 0
        %4264 = vmatpush1.bf16.msra.mxu0 %v3643
        %4265 = vmatprep.subr.bf16.mxu0 0
        %4266 = vmatpush1.bf16.msra.mxu0 %v3646
        %4267 = vmatprep.subr.bf16.mxu0 0
        %4268 = vmatpush1.bf16.msra.mxu0 %v3649
        %4269 = vmatprep.subr.bf16.mxu0 0
        %4270 = vmatpush1.bf16.msra.mxu0 %v3652
        %4271 = vmatprep.subr.bf16.mxu0 0
        %4272 = vmatpush1.bf16.msra.mxu0 %v3655
        %4273 = vmatprep.subr.bf16.mxu0 0
        %4274 = vmatpush1.bf16.msra.mxu0 %v3658
        %4275 = vmatprep.subr.bf16.mxu0 0
        %4276 = vmatpush1.bf16.msra.mxu0 %v3661
        %4277 = vmatprep.subr.bf16.mxu0 0
        %4278 = vmatpush1.bf16.msra.mxu0 %v3664
        %4279 = vmatprep.subr.bf16.mxu0 0
        %4280 = vmatpush1.bf16.msra.mxu0 %v3667
        %4281 = vmatprep.subr.bf16.mxu0 0
        %4282 = vmatpush1.bf16.msra.mxu0 %v3670
        %4283 = vmatprep.subr.bf16.mxu0 0
        %4284 = vmatpush1.bf16.msra.mxu0 %v3673
        %4285 = vmatprep.mubr.bf16.mxu0 %v2890
        %4286 = vmatmul.mubr.bf16.gmra.mrb[0].mxu0 %v2889
        %v4287 = vpop.f32.mrb[0].mxu0
        %v4288 = vadd.f32 %v3142, %v4287
        %v4289 = vpop.f32.mrb[0].mxu0
        %v4290 = vpop.f32.mrb[0].mxu0
        %v4291 = vadd.f32 %v3142, %v4290
        %v4292 = vpop.f32.mrb[0].mxu0
        %4293 = vmatprep.mubr.bf16.mxu0 %v2896
        %4294 = vmatmul.mubr.bf16.gmra.mrb[0].mxu0 %v2895
        %v4295 = vpop.f32.mrb[0].mxu0
        %v4296 = vadd.f32 %v3142, %v4295
        %v4297 = vpop.f32.mrb[0].mxu0
        %v4298 = vpop.f32.mrb[0].mxu0
        %v4299 = vadd.f32 %v3142, %v4298
        %v4300 = vpop.f32.mrb[0].mxu0
        %4301 = vmatprep.mubr.bf16.mxu0 %v2902
        %4302 = vmatmul.mubr.bf16.gmra.mrb[0].mxu0 %v2901
        %v4303 = vpop.f32.mrb[0].mxu0
        %v4304 = vadd.f32 %v3142, %v4303
        %v4305 = vpop.f32.mrb[0].mxu0
        %v4306 = vpop.f32.mrb[0].mxu0
        %v4307 = vadd.f32 %v3142, %v4306
        %v4308 = vpop.f32.mrb[0].mxu0
        %4309 = vmatprep.mubr.bf16.mxu0 %v2908
        %4310 = vmatmul.mubr.bf16.gmra.mrb[0].mxu0 %v2907
        %v4311 = vpop.f32.mrb[0].mxu0
        %v4312 = vadd.f32 %v3142, %v4311
        %v4313 = vpop.f32.mrb[0].mxu0
        %v4314 = vpop.f32.mrb[0].mxu0
        %v4315 = vadd.f32 %v3142, %v4314
        %v4316 = vpop.f32.mrb[0].mxu0
        %4317 = vmatprep.mubr.bf16.mxu0 %v2914
        %4318 = vmatmul.mubr.bf16.gmra.mrb[0].mxu0 %v2913
        %v4319 = vpop.f32.mrb[0].mxu0
        %v4320 = vadd.f32 %v3142, %v4319
        %v4321 = vpop.f32.mrb[0].mxu0
        %v4322 = vpop.f32.mrb[0].mxu0
        %v4323 = vadd.f32 %v3142, %v4322
        %v4324 = vpop.f32.mrb[0].mxu0
        %4325 = vmatprep.mubr.bf16.mxu0 %v2920
        %4326 = vmatmul.mubr.bf16.gmra.mrb[0].mxu0 %v2919
        %v4327 = vpop.f32.mrb[0].mxu0
        %v4328 = vadd.f32 %v3142, %v4327
        %v4329 = vpop.f32.mrb[0].mxu0
        %v4330 = vpop.f32.mrb[0].mxu0
        %v4331 = vadd.f32 %v3142, %v4330
        %v4332 = vpop.f32.mrb[0].mxu0
        %4333 = vmatprep.mubr.bf16.mxu0 %v2926
        %4334 = vmatmul.mubr.bf16.gmra.mrb[0].mxu0 %v2925
        %v4335 = vpop.f32.mrb[0].mxu0
        %v4336 = vadd.f32 %v3142, %v4335
        %v4337 = vpop.f32.mrb[0].mxu0
        %v4338 = vpop.f32.mrb[0].mxu0
        %v4339 = vadd.f32 %v3142, %v4338
        %v4340 = vpop.f32.mrb[0].mxu0
        %4341 = vmatprep.mubr.bf16.mxu0 %v2932
        %4342 = vmatmul.mubr.bf16.gmra.mrb[0].mxu0 %v2931
        %v4343 = vpop.f32.mrb[0].mxu0
        %v4344 = vadd.f32 %v3142, %v4343
        %v4345 = vpop.f32.mrb[0].mxu0
        %v4346 = vpop.f32.mrb[0].mxu0
        %v4347 = vadd.f32 %v3142, %v4346
        %v4348 = vpop.f32.mrb[0].mxu0
        %4349 = vdwg.mxu0
        %4350 = vmatprep.subr.bf16.mxu0 0
        %4351 = vmatpush1.bf16.msra.mxu0 %v3676
        %4352 = vmatprep.subr.bf16.mxu0 0
        %4353 = vmatpush1.bf16.msra.mxu0 %v3679
        %4354 = vmatprep.subr.bf16.mxu0 0
        %4355 = vmatpush1.bf16.msra.mxu0 %v3682
        %4356 = vmatprep.subr.bf16.mxu0 0
        %4357 = vmatpush1.bf16.msra.mxu0 %v3685
        %4358 = vmatprep.subr.bf16.mxu0 0
        %4359 = vmatpush1.bf16.msra.mxu0 %v3688
        %4360 = vmatprep.subr.bf16.mxu0 0
        %4361 = vmatpush1.bf16.msra.mxu0 %v3691
        %4362 = vmatprep.subr.bf16.mxu0 0
        %4363 = vmatpush1.bf16.msra.mxu0 %v3694
        %4364 = vmatprep.subr.bf16.mxu0 0
        %4365 = vmatpush1.bf16.msra.mxu0 %v3697
        %4366 = vmatprep.subr.bf16.mxu0 0
        %4367 = vmatpush1.bf16.msra.mxu0 %v3700
        %4368 = vmatprep.subr.bf16.mxu0 0
        %4369 = vmatpush1.bf16.msra.mxu0 %v3703
        %4370 = vmatprep.subr.bf16.mxu0 0
        %4371 = vmatpush1.bf16.msra.mxu0 %v3706
        %4372 = vmatprep.subr.bf16.mxu0 0
        %4373 = vmatpush1.bf16.msra.mxu0 %v3709
        %4374 = vmatprep.subr.bf16.mxu0 0
        %4375 = vmatpush1.bf16.msra.mxu0 %v3712
        %4376 = vmatprep.subr.bf16.mxu0 0
        %4377 = vmatpush1.bf16.msra.mxu0 %v3715
        %4378 = vmatprep.subr.bf16.mxu0 0
        %4379 = vmatpush1.bf16.msra.mxu0 %v3718
        %4380 = vmatprep.subr.bf16.mxu0 0
        %4381 = vmatpush1.bf16.msra.mxu0 %v3721
        %4382 = vmatprep.mubr.bf16.mxu0 %v2892
        %4383 = vmatmul.mubr.bf16.gmra.mrb[0].mxu0 %v2891
        %v4384 = vpop.f32.mrb[0].mxu0
        %v4385 = vadd.f32 %v4288, %v4384
        %v4386 = vpop.f32.mrb[0].mxu0
        %v4387 = vpop.f32.mrb[0].mxu0
        %v4388 = vadd.f32 %v4291, %v4387
        %v4389 = vpop.f32.mrb[0].mxu0
        %4390 = vmatprep.mubr.bf16.mxu0 %v2898
        %4391 = vmatmul.mubr.bf16.gmra.mrb[0].mxu0 %v2897
        %v4392 = vpop.f32.mrb[0].mxu0
        %v4393 = vadd.f32 %v4296, %v4392
        %v4394 = vpop.f32.mrb[0].mxu0
        %v4395 = vpop.f32.mrb[0].mxu0
        %v4396 = vadd.f32 %v4299, %v4395
        %v4397 = vpop.f32.mrb[0].mxu0
        %4398 = vmatprep.mubr.bf16.mxu0 %v2904
        %4399 = vmatmul.mubr.bf16.gmra.mrb[0].mxu0 %v2903
        %v4400 = vpop.f32.mrb[0].mxu0
        %v4401 = vadd.f32 %v4304, %v4400
        %v4402 = vpop.f32.mrb[0].mxu0
        %v4403 = vpop.f32.mrb[0].mxu0
        %v4404 = vadd.f32 %v4307, %v4403
        %v4405 = vpop.f32.mrb[0].mxu0
        %4406 = vmatprep.mubr.bf16.mxu0 %v2910
        %4407 = vmatmul.mubr.bf16.gmra.mrb[0].mxu0 %v2909
        %v4408 = vpop.f32.mrb[0].mxu0
        %v4409 = vadd.f32 %v4312, %v4408
        %v4410 = vpop.f32.mrb[0].mxu0
        %v4411 = vpop.f32.mrb[0].mxu0
        %v4412 = vadd.f32 %v4315, %v4411
        %v4413 = vpop.f32.mrb[0].mxu0
        %4414 = vmatprep.mubr.bf16.mxu0 %v2916
        %4415 = vmatmul.mubr.bf16.gmra.mrb[0].mxu0 %v2915
        %v4416 = vpop.f32.mrb[0].mxu0
        %v4417 = vadd.f32 %v4320, %v4416
        %v4418 = vpop.f32.mrb[0].mxu0
        %v4419 = vpop.f32.mrb[0].mxu0
        %v4420 = vadd.f32 %v4323, %v4419
        %v4421 = vpop.f32.mrb[0].mxu0
        %4422 = vmatprep.mubr.bf16.mxu0 %v2922
        %4423 = vmatmul.mubr.bf16.gmra.mrb[0].mxu0 %v2921
        %v4424 = vpop.f32.mrb[0].mxu0
        %v4425 = vadd.f32 %v4328, %v4424
        %v4426 = vpop.f32.mrb[0].mxu0
        %v4427 = vpop.f32.mrb[0].mxu0
        %v4428 = vadd.f32 %v4331, %v4427
        %v4429 = vpop.f32.mrb[0].mxu0
        %4430 = vmatprep.mubr.bf16.mxu0 %v2928
        %4431 = vmatmul.mubr.bf16.gmra.mrb[0].mxu0 %v2927
        %v4432 = vpop.f32.mrb[0].mxu0
        %v4433 = vadd.f32 %v4336, %v4432
        %v4434 = vpop.f32.mrb[0].mxu0
        %v4435 = vpop.f32.mrb[0].mxu0
        %v4436 = vadd.f32 %v4339, %v4435
        %v4437 = vpop.f32.mrb[0].mxu0
        %4438 = vmatprep.mubr.bf16.mxu0 %v2934
        %4439 = vmatmul.mubr.bf16.gmra.mrb[0].mxu0 %v2933
        %v4440 = vpop.f32.mrb[0].mxu0
        %v4441 = vadd.f32 %v4344, %v4440
        %v4442 = vpop.f32.mrb[0].mxu0
        %v4443 = vpop.f32.mrb[0].mxu0
        %v4444 = vadd.f32 %v4347, %v4443
        %v4445 = vpop.f32.mrb[0].mxu0
        %4446 = vdwg.mxu0
        %4447 = vmatprep.subr.bf16.mxu0 0
        %4448 = vmatpush1.bf16.msra.mxu0 %v3724
        %4449 = vmatprep.subr.bf16.mxu0 0
        %4450 = vmatpush1.bf16.msra.mxu0 %v3727
        %4451 = vmatprep.subr.bf16.mxu0 0
        %4452 = vmatpush1.bf16.msra.mxu0 %v3730
        %4453 = vmatprep.subr.bf16.mxu0 0
        %4454 = vmatpush1.bf16.msra.mxu0 %v3733
        %4455 = vmatprep.subr.bf16.mxu0 0
        %4456 = vmatpush1.bf16.msra.mxu0 %v3736
        %4457 = vmatprep.subr.bf16.mxu0 0
        %4458 = vmatpush1.bf16.msra.mxu0 %v3739
        %4459 = vmatprep.subr.bf16.mxu0 0
        %4460 = vmatpush1.bf16.msra.mxu0 %v3742
        %4461 = vmatprep.subr.bf16.mxu0 0
        %4462 = vmatpush1.bf16.msra.mxu0 %v3745
        %4463 = vmatprep.subr.bf16.mxu0 0
        %4464 = vmatpush1.bf16.msra.mxu0 %v3748
        %4465 = vmatprep.subr.bf16.mxu0 0
        %4466 = vmatpush1.bf16.msra.mxu0 %v3751
        %4467 = vmatprep.subr.bf16.mxu0 0
        %4468 = vmatpush1.bf16.msra.mxu0 %v3754
        %4469 = vmatprep.subr.bf16.mxu0 0
        %4470 = vmatpush1.bf16.msra.mxu0 %v3757
        %4471 = vmatprep.subr.bf16.mxu0 0
        %4472 = vmatpush1.bf16.msra.mxu0 %v3760
        %4473 = vmatprep.subr.bf16.mxu0 0
        %4474 = vmatpush1.bf16.msra.mxu0 %v3763
        %4475 = vmatprep.subr.bf16.mxu0 0
        %4476 = vmatpush1.bf16.msra.mxu0 %v3766
        %4477 = vmatprep.subr.bf16.mxu0 0
        %4478 = vmatpush1.bf16.msra.mxu0 %v3769
        %4479 = vmatprep.mubr.bf16.mxu0 %v2894
        %4480 = vmatmul.mubr.bf16.gmra.mrb[0].mxu0 %v2893
        %v4481 = vpop.f32.mrb[0].mxu0
        %v4482 = vadd.f32 %v4385, %v4481
        %v4483 = vpop.f32.mrb[0].mxu0
        %v4484 = vpop.f32.mrb[0].mxu0
        %v4485 = vadd.f32 %v4388, %v4484
        %v4486 = vpop.f32.mrb[0].mxu0
        %4487 = vmatprep.mubr.bf16.mxu0 %v2900
        %4488 = vmatmul.mubr.bf16.gmra.mrb[0].mxu0 %v2899
        %v4489 = vpop.f32.mrb[0].mxu0
        %v4490 = vadd.f32 %v4393, %v4489
        %v4491 = vpop.f32.mrb[0].mxu0
        %v4492 = vpop.f32.mrb[0].mxu0
        %v4493 = vadd.f32 %v4396, %v4492
        %v4494 = vpop.f32.mrb[0].mxu0
        %4495 = vmatprep.mubr.bf16.mxu0 %v2906
        %4496 = vmatmul.mubr.bf16.gmra.mrb[0].mxu0 %v2905
        %v4497 = vpop.f32.mrb[0].mxu0
        %v4498 = vadd.f32 %v4401, %v4497
        %v4499 = vpop.f32.mrb[0].mxu0
        %v4500 = vpop.f32.mrb[0].mxu0
        %v4501 = vadd.f32 %v4404, %v4500
        %v4502 = vpop.f32.mrb[0].mxu0
        %4503 = vmatprep.mubr.bf16.mxu0 %v2912
        %4504 = vmatmul.mubr.bf16.gmra.mrb[0].mxu0 %v2911
        %v4505 = vpop.f32.mrb[0].mxu0
        %v4506 = vadd.f32 %v4409, %v4505
        %v4507 = vpop.f32.mrb[0].mxu0
        %v4508 = vpop.f32.mrb[0].mxu0
        %v4509 = vadd.f32 %v4412, %v4508
        %v4510 = vpop.f32.mrb[0].mxu0
        %4511 = vmatprep.mubr.bf16.mxu0 %v2918
        %4512 = vmatmul.mubr.bf16.gmra.mrb[0].mxu0 %v2917
        %v4513 = vpop.f32.mrb[0].mxu0
        %v4514 = vadd.f32 %v4417, %v4513
        %v4515 = vpop.f32.mrb[0].mxu0
        %v4516 = vpop.f32.mrb[0].mxu0
        %v4517 = vadd.f32 %v4420, %v4516
        %v4518 = vpop.f32.mrb[0].mxu0
        %4519 = vmatprep.mubr.bf16.mxu0 %v2924
        %4520 = vmatmul.mubr.bf16.gmra.mrb[0].mxu0 %v2923
        %v4521 = vpop.f32.mrb[0].mxu0
        %v4522 = vadd.f32 %v4425, %v4521
        %v4523 = vpop.f32.mrb[0].mxu0
        %v4524 = vpop.f32.mrb[0].mxu0
        %v4525 = vadd.f32 %v4428, %v4524
        %v4526 = vpop.f32.mrb[0].mxu0
        %4527 = vmatprep.mubr.bf16.mxu0 %v2930
        %4528 = vmatmul.mubr.bf16.gmra.mrb[0].mxu0 %v2929
        %v4529 = vpop.f32.mrb[0].mxu0
        %v4530 = vadd.f32 %v4433, %v4529
        %v4531 = vpop.f32.mrb[0].mxu0
        %v4532 = vpop.f32.mrb[0].mxu0
        %v4533 = vadd.f32 %v4436, %v4532
        %v4534 = vpop.f32.mrb[0].mxu0
        %4535 = vmatprep.mubr.bf16.mxu0 %v2936
        %4536 = vmatmul.mubr.bf16.gmra.mrb[0].mxu0 %v2935
        %v4537 = vpop.f32.mrb[0].mxu0
        %v4538 = vadd.f32 %v4441, %v4537
        %v4539 = vpop.f32.mrb[0].mxu0
        %v4540 = vpop.f32.mrb[0].mxu0
        %v4541 = vadd.f32 %v4444, %v4540
        %v4542 = vpop.f32.mrb[0].mxu0
        %4543 = vdwg.mxu0
        %v4544 = vld [vmem:[%s613] sm:$0x7]
        %v4546 = vlaneseq
        %v4547 = vshrl.u32 %v4546, 7
        %v4548 = vsub.s32 0, %v4547
        %v4549 = vrot.slane %v4544, %v4548
        %v4550 = vlaneseq
        %v4551 = vshrl.u32 %v4550, 7
        %v4552 = vsub.s32 1, %v4551
        %v4553 = vrot.slane %v4544, %v4552
        %v4554 = vlaneseq
        %v4555 = vshrl.u32 %v4554, 7
        %v4556 = vsub.s32 2, %v4555
        %v4557 = vrot.slane %v4544, %v4556
        %v4561 = vmul.f32 %v4175, %v4549
        %v4562 = vmul.f32 %v4177, %v4553
        %v4563 = vmul.f32 %v4482, %v4557
        %v4564 = vmul.f32 %v4179, %v4549
        %v4565 = vmul.f32 %v4181, %v4553
        %v4566 = vmul.f32 %v4485, %v4557
        %v4567 = vmul.f32 %v4185, %v4549
        %v4568 = vmul.f32 %v4187, %v4553
        %v4569 = vmul.f32 %v4490, %v4557
        %v4570 = vmul.f32 %v4189, %v4549
        %v4571 = vmul.f32 %v4191, %v4553
        %v4572 = vmul.f32 %v4493, %v4557
        %v4573 = vmul.f32 %v4195, %v4549
        %v4574 = vmul.f32 %v4197, %v4553
        %v4575 = vmul.f32 %v4498, %v4557
        %v4576 = vmul.f32 %v4199, %v4549
        %v4577 = vmul.f32 %v4201, %v4553
        %v4578 = vmul.f32 %v4501, %v4557
        %v4579 = vmul.f32 %v4205, %v4549
        %v4580 = vmul.f32 %v4207, %v4553
        %v4581 = vmul.f32 %v4506, %v4557
        %v4582 = vmul.f32 %v4209, %v4549
        %v4583 = vmul.f32 %v4211, %v4553
        %v4584 = vmul.f32 %v4509, %v4557
        %v4585 = vmul.f32 %v4215, %v4549
        %v4586 = vmul.f32 %v4217, %v4553
        %v4587 = vmul.f32 %v4514, %v4557
        %v4588 = vmul.f32 %v4219, %v4549
        %v4589 = vmul.f32 %v4221, %v4553
        %v4590 = vmul.f32 %v4517, %v4557
        %v4591 = vmul.f32 %v4225, %v4549
        %v4592 = vmul.f32 %v4227, %v4553
        %v4593 = vmul.f32 %v4522, %v4557
        %v4594 = vmul.f32 %v4229, %v4549
        %v4595 = vmul.f32 %v4231, %v4553
        %v4596 = vmul.f32 %v4525, %v4557
        %v4597 = vmul.f32 %v4235, %v4549
        %v4598 = vmul.f32 %v4237, %v4553
        %v4599 = vmul.f32 %v4530, %v4557
        %v4600 = vmul.f32 %v4239, %v4549
        %v4601 = vmul.f32 %v4241, %v4553
        %v4602 = vmul.f32 %v4533, %v4557
        %v4603 = vmul.f32 %v4245, %v4549
        %v4604 = vmul.f32 %v4247, %v4553
        %v4605 = vmul.f32 %v4538, %v4557
        %v4606 = vmul.f32 %v4249, %v4549
        %v4607 = vmul.f32 %v4251, %v4553
        %v4608 = vmul.f32 %v4541, %v4557
        %v4609 = vld [vmem:[%s622] sm:$0x7]
        %v4611 = vlaneseq
        %v4612 = vshrl.u32 %v4611, 7
        %v4613 = vsub.s32 0, %v4612
        %v4614 = vrot.slane %v4609, %v4613
        %v4615 = vlaneseq
        %v4616 = vshrl.u32 %v4615, 7
        %v4617 = vsub.s32 1, %v4616
        %v4618 = vrot.slane %v4609, %v4617
        %v4619 = vlaneseq
        %v4620 = vshrl.u32 %v4619, 7
        %v4621 = vsub.s32 2, %v4620
        %v4622 = vrot.slane %v4609, %v4621
        %v4626 = vadd.f32 %v4561, %v4614
        %v4627 = vadd.f32 %v4562, %v4618
        %v4628 = vadd.f32 %v4563, %v4622
        %v4629 = vadd.f32 %v4564, %v4614
        %v4630 = vadd.f32 %v4565, %v4618
        %v4631 = vadd.f32 %v4566, %v4622
        %v4632 = vadd.f32 %v4567, %v4614
        %v4633 = vadd.f32 %v4568, %v4618
        %v4634 = vadd.f32 %v4569, %v4622
        %v4635 = vadd.f32 %v4570, %v4614
        %v4636 = vadd.f32 %v4571, %v4618
        %v4637 = vadd.f32 %v4572, %v4622
        %v4638 = vadd.f32 %v4573, %v4614
        %v4639 = vadd.f32 %v4574, %v4618
        %v4640 = vadd.f32 %v4575, %v4622
        %v4641 = vadd.f32 %v4576, %v4614
        %v4642 = vadd.f32 %v4577, %v4618
        %v4643 = vadd.f32 %v4578, %v4622
        %v4644 = vadd.f32 %v4579, %v4614
        %v4645 = vadd.f32 %v4580, %v4618
        %v4646 = vadd.f32 %v4581, %v4622
        %v4647 = vadd.f32 %v4582, %v4614
        %v4648 = vadd.f32 %v4583, %v4618
        %v4649 = vadd.f32 %v4584, %v4622
        %v4650 = vadd.f32 %v4585, %v4614
        %v4651 = vadd.f32 %v4586, %v4618
        %v4652 = vadd.f32 %v4587, %v4622
        %v4653 = vadd.f32 %v4588, %v4614
        %v4654 = vadd.f32 %v4589, %v4618
        %v4655 = vadd.f32 %v4590, %v4622
        %v4656 = vadd.f32 %v4591, %v4614
        %v4657 = vadd.f32 %v4592, %v4618
        %v4658 = vadd.f32 %v4593, %v4622
        %v4659 = vadd.f32 %v4594, %v4614
        %v4660 = vadd.f32 %v4595, %v4618
        %v4661 = vadd.f32 %v4596, %v4622
        %v4662 = vadd.f32 %v4597, %v4614
        %v4663 = vadd.f32 %v4598, %v4618
        %v4664 = vadd.f32 %v4599, %v4622
        %v4665 = vadd.f32 %v4600, %v4614
        %v4666 = vadd.f32 %v4601, %v4618
        %v4667 = vadd.f32 %v4602, %v4622
        %v4668 = vadd.f32 %v4603, %v4614
        %v4669 = vadd.f32 %v4604, %v4618
        %v4670 = vadd.f32 %v4605, %v4622
        %v4671 = vadd.f32 %v4606, %v4614
        %v4672 = vadd.f32 %v4607, %v4618
        %v4673 = vadd.f32 %v4608, %v4622
        %v4674 = vmax.f32 %v4626, 0.0
        %v4675 = vmax.f32 %v4627, 0.0
        %v4676 = vmax.f32 %v4628, 0.0
        %v4677 = vmax.f32 %v4629, 0.0
        %v4678 = vmax.f32 %v4630, 0.0
        %v4679 = vmax.f32 %v4631, 0.0
        %v4680 = vmax.f32 %v4632, 0.0
        %v4681 = vmax.f32 %v4633, 0.0
        %v4682 = vmax.f32 %v4634, 0.0
        %v4683 = vmax.f32 %v4635, 0.0
        %v4684 = vmax.f32 %v4636, 0.0
        %v4685 = vmax.f32 %v4637, 0.0
        %v4686 = vmax.f32 %v4638, 0.0
        %v4687 = vmax.f32 %v4639, 0.0
        %v4688 = vmax.f32 %v4640, 0.0
        %v4689 = vmax.f32 %v4641, 0.0
        %v4690 = vmax.f32 %v4642, 0.0
        %v4691 = vmax.f32 %v4643, 0.0
        %v4692 = vmax.f32 %v4644, 0.0
        %v4693 = vmax.f32 %v4645, 0.0
        %v4694 = vmax.f32 %v4646, 0.0
        %v4695 = vmax.f32 %v4647, 0.0
        %v4696 = vmax.f32 %v4648, 0.0
        %v4697 = vmax.f32 %v4649, 0.0
        %v4698 = vmax.f32 %v4650, 0.0
        %v4699 = vmax.f32 %v4651, 0.0
        %v4700 = vmax.f32 %v4652, 0.0
        %v4701 = vmax.f32 %v4653, 0.0
        %v4702 = vmax.f32 %v4654, 0.0
        %v4703 = vmax.f32 %v4655, 0.0
        %v4704 = vmax.f32 %v4656, 0.0
        %v4705 = vmax.f32 %v4657, 0.0
        %v4706 = vmax.f32 %v4658, 0.0
        %v4707 = vmax.f32 %v4659, 0.0
        %v4708 = vmax.f32 %v4660, 0.0
        %v4709 = vmax.f32 %v4661, 0.0
        %v4710 = vmax.f32 %v4662, 0.0
        %v4711 = vmax.f32 %v4663, 0.0
        %v4712 = vmax.f32 %v4664, 0.0
        %v4713 = vmax.f32 %v4665, 0.0
        %v4714 = vmax.f32 %v4666, 0.0
        %v4715 = vmax.f32 %v4667, 0.0
        %v4716 = vmax.f32 %v4668, 0.0
        %v4717 = vmax.f32 %v4669, 0.0
        %v4718 = vmax.f32 %v4670, 0.0
        %v4719 = vmax.f32 %v4671, 0.0
        %v4720 = vmax.f32 %v4672, 0.0
        %v4721 = vmax.f32 %v4673, 0.0
        %4722 = vst [vmem:[#allocation2] sm:$0xff] %v4674
        %4723 = vst [vmem:[#allocation2 + $0x8] sm:$0xff] %v4675
        %4724 = vst [vmem:[#allocation2 + $0x10] sm:$0xff] %v4676
        %4725 = vst [vmem:[#allocation2 + $0x18] sm:$0xff] %v4677
        %4726 = vst [vmem:[#allocation2 + $0x20] sm:$0xff] %v4678
        %4727 = vst [vmem:[#allocation2 + $0x28] sm:$0xff] %v4679
        %4728 = vst [vmem:[#allocation2 + $0x30] sm:$0xff] %v4680
        %4729 = vst [vmem:[#allocation2 + $0x38] sm:$0xff] %v4681
        %4730 = vst [vmem:[#allocation2 + $0x40] sm:$0xff] %v4682
        %4731 = vst [vmem:[#allocation2 + $0x48] sm:$0xff] %v4683
        %4732 = vst [vmem:[#allocation2 + $0x50] sm:$0xff] %v4684
        %4733 = vst [vmem:[#allocation2 + $0x58] sm:$0xff] %v4685
        %4734 = vst [vmem:[#allocation2 + $0x60] sm:$0xff] %v4686
        %4735 = vst [vmem:[#allocation2 + $0x68] sm:$0xff] %v4687
        %4736 = vst [vmem:[#allocation2 + $0x70] sm:$0xff] %v4688
        %4737 = vst [vmem:[#allocation2 + $0x78] sm:$0xff] %v4689
        %4738 = vst [vmem:[#allocation2 + $0x80] sm:$0xff] %v4690
        %4739 = vst [vmem:[#allocation2 + $0x88] sm:$0xff] %v4691
        %4740 = vst [vmem:[#allocation2 + $0x90] sm:$0xff] %v4692
        %4741 = vst [vmem:[#allocation2 + $0x98] sm:$0xff] %v4693
        %4742 = vst [vmem:[#allocation2 + $0xa0] sm:$0xff] %v4694
        %4743 = vst [vmem:[#allocation2 + $0xa8] sm:$0xff] %v4695
        %4744 = vst [vmem:[#allocation2 + $0xb0] sm:$0xff] %v4696
        %4745 = vst [vmem:[#allocation2 + $0xb8] sm:$0xff] %v4697
        %4746 = vst [vmem:[#allocation2 + $0xc0] sm:$0xff] %v4698
        %4747 = vst [vmem:[#allocation2 + $0xc8] sm:$0xff] %v4699
        %4748 = vst [vmem:[#allocation2 + $0xd0] sm:$0xff] %v4700
        %4749 = vst [vmem:[#allocation2 + $0xd8] sm:$0xff] %v4701
        %4750 = vst [vmem:[#allocation2 + $0xe0] sm:$0xff] %v4702
        %4751 = vst [vmem:[#allocation2 + $0xe8] sm:$0xff] %v4703
        %4752 = vst [vmem:[#allocation2 + $0xf0] sm:$0xff] %v4704
        %4753 = vst [vmem:[#allocation2 + $0xf8] sm:$0xff] %v4705
        %4754 = vst [vmem:[#allocation2 + $0x100] sm:$0xff] %v4706
        %4755 = vst [vmem:[#allocation2 + $0x108] sm:$0xff] %v4707
        %4756 = vst [vmem:[#allocation2 + $0x110] sm:$0xff] %v4708
        %4757 = vst [vmem:[#allocation2 + $0x118] sm:$0xff] %v4709
        %4758 = vst [vmem:[#allocation2 + $0x120] sm:$0xff] %v4710
        %4759 = vst [vmem:[#allocation2 + $0x128] sm:$0xff] %v4711
        %4760 = vst [vmem:[#allocation2 + $0x130] sm:$0xff] %v4712
        %4761 = vst [vmem:[#allocation2 + $0x138] sm:$0xff] %v4713
        %4762 = vst [vmem:[#allocation2 + $0x140] sm:$0xff] %v4714
        %4763 = vst [vmem:[#allocation2 + $0x148] sm:$0xff] %v4715
        %4764 = vst [vmem:[#allocation2 + $0x150] sm:$0xff] %v4716
        %4765 = vst [vmem:[#allocation2 + $0x158] sm:$0xff] %v4717
        %4766 = vst [vmem:[#allocation2 + $0x160] sm:$0xff] %v4718
        %4767 = vst [vmem:[#allocation2 + $0x168] sm:$0xff] %v4719
        %4768 = vst [vmem:[#allocation2 + $0x170] sm:$0xff] %v4720
        %4769 = vst [vmem:[#allocation2 + $0x178] sm:$0xff] %v4721
        %p4770 = scmp.eq.s32.totalorder %s27, 4
        // Predicated region
        $region121: #{tpu_custom_call.1} parent=67 // pred_check
          %p4771 = pneg %p4770
        $region122: #{tpu_custom_call.1} parent=67 // pred_check_branch
          %4773 = sbr.rel (%p4771) target = $region124
        $region123: #{tpu_custom_call.1} parent=67 // pred_region
          %v4774 = vld [vmem:[#allocation15] sm:$0xff]
          %4775 = vmatprep.subr.mxu0 %v4627
          %4776 = vmatpush1.msra.mxu0 %v4626
          %4777 = vmatprep.subr.mxu0 %v4630
          %4778 = vmatpush1.msra.mxu0 %v4629
          %4779 = vmatprep.subr.mxu0 %v4633
          %4780 = vmatpush1.msra.mxu0 %v4632
          %4781 = vmatprep.subr.mxu0 %v4636
          %4782 = vmatpush1.msra.mxu0 %v4635
          %4783 = vmatprep.subr.mxu0 %v4639
          %4784 = vmatpush1.msra.mxu0 %v4638
          %4785 = vmatprep.subr.mxu0 %v4642
          %4786 = vmatpush1.msra.mxu0 %v4641
          %4787 = vmatprep.subr.mxu0 %v4645
          %4788 = vmatpush1.msra.mxu0 %v4644
          %4789 = vmatprep.subr.mxu0 %v4648
          %4790 = vmatpush1.msra.mxu0 %v4647
          %4791 = vmatprep.subr.mxu0 %v4651
          %4792 = vmatpush1.msra.mxu0 %v4650
          %4793 = vmatprep.subr.mxu0 %v4654
          %4794 = vmatpush1.msra.mxu0 %v4653
          %4795 = vmatprep.subr.mxu0 %v4657
          %4796 = vmatpush1.msra.mxu0 %v4656
          %4797 = vmatprep.subr.mxu0 %v4660
          %4798 = vmatpush1.msra.mxu0 %v4659
          %4799 = vmatprep.subr.mxu0 %v4663
          %4800 = vmatpush1.msra.mxu0 %v4662
          %4801 = vmatprep.subr.mxu0 %v4666
          %4802 = vmatpush1.msra.mxu0 %v4665
          %4803 = vmatprep.subr.mxu0 %v4669
          %4804 = vmatpush1.msra.mxu0 %v4668
          %4805 = vmatprep.subr.mxu0 %v4672
          %4806 = vmatpush1.msra.mxu0 %v4671
          %4807 = vmatprep.subr.mxu0 0.0
          %4808 = vmatpush1.msra.mxu0 0.0
          %4809 = vmatprep.subr.mxu0 0.0
          %4810 = vmatpush1.msra.mxu0 0.0
          %4811 = vmatprep.subr.mxu0 0.0
          %4812 = vmatpush1.msra.mxu0 0.0
          %4813 = vmatprep.subr.mxu0 0.0
          %4814 = vmatpush1.msra.mxu0 0.0
          %4815 = vmatprep.subr.mxu0 0.0
          %4816 = vmatpush1.msra.mxu0 0.0
          %4817 = vmatprep.subr.mxu0 0.0
          %4818 = vmatpush1.msra.mxu0 0.0
          %4819 = vmatprep.subr.mxu0 0.0
          %4820 = vmatpush1.msra.mxu0 0.0
          %4821 = vmatprep.subr.mxu0 0.0
          %4822 = vmatpush1.msra.mxu0 0.0
          %4823 = vmatprep.subr.mxu0 0.0
          %4824 = vmatpush1.msra.mxu0 0.0
          %4825 = vmatprep.subr.mxu0 0.0
          %4826 = vmatpush1.msra.mxu0 0.0
          %4827 = vmatprep.subr.mxu0 0.0
          %4828 = vmatpush1.msra.mxu0 0.0
          %4829 = vmatprep.subr.mxu0 0.0
          %4830 = vmatpush1.msra.mxu0 0.0
          %4831 = vmatprep.subr.mxu0 0.0
          %4832 = vmatpush1.msra.mxu0 0.0
          %4833 = vmatprep.subr.mxu0 0.0
          %4834 = vmatpush1.msra.mxu0 0.0
          %4835 = vmatprep.subr.mxu0 0.0
          %4836 = vmatpush1.msra.mxu0 0.0
          %4837 = vmatprep.subr.mxu0 0.0
          %4838 = vmatpush1.msra.mxu0 0.0
          %4839 = vmatprep.mubr.f32.mxu0 0.0
          %4840 = vmatmul.mubr.f32.gmra.mrb[0].mxu0 %v4774
          %v4841 = vpop.f32.mrb[0].mxu0
          %v4842 = vadd.f32 0.0, %v4841
          %v4843 = vpop.f32.mrb[0].mxu0
          %v4844 = vadd.f32 0.0, %v4843
          %4845 = vdwg.mxu0
          %4846 = vmatprep.subr.mxu0 0.0
          %4847 = vmatpush1.msra.mxu0 %v4628
          %4848 = vmatprep.subr.mxu0 0.0
          %4849 = vmatpush1.msra.mxu0 %v4631
          %4850 = vmatprep.subr.mxu0 0.0
          %4851 = vmatpush1.msra.mxu0 %v4634
          %4852 = vmatprep.subr.mxu0 0.0
          %4853 = vmatpush1.msra.mxu0 %v4637
          %4854 = vmatprep.subr.mxu0 0.0
          %4855 = vmatpush1.msra.mxu0 %v4640
          %4856 = vmatprep.subr.mxu0 0.0
          %4857 = vmatpush1.msra.mxu0 %v4643
          %4858 = vmatprep.subr.mxu0 0.0
          %4859 = vmatpush1.msra.mxu0 %v4646
          %4860 = vmatprep.subr.mxu0 0.0
          %4861 = vmatpush1.msra.mxu0 %v4649
          %4862 = vmatprep.subr.mxu0 0.0
          %4863 = vmatpush1.msra.mxu0 %v4652
          %4864 = vmatprep.subr.mxu0 0.0
          %4865 = vmatpush1.msra.mxu0 %v4655
          %4866 = vmatprep.subr.mxu0 0.0
          %4867 = vmatpush1.msra.mxu0 %v4658
          %4868 = vmatprep.subr.mxu0 0.0
          %4869 = vmatpush1.msra.mxu0 %v4661
          %4870 = vmatprep.subr.mxu0 0.0
          %4871 = vmatpush1.msra.mxu0 %v4664
          %4872 = vmatprep.subr.mxu0 0.0
          %4873 = vmatpush1.msra.mxu0 %v4667
          %4874 = vmatprep.subr.mxu0 0.0
          %4875 = vmatpush1.msra.mxu0 %v4670
          %4876 = vmatprep.subr.mxu0 0.0
          %4877 = vmatpush1.msra.mxu0 %v4673
          %4878 = vmatprep.subr.mxu0 0.0
          %4879 = vmatpush1.msra.mxu0 0.0
          %4880 = vmatprep.subr.mxu0 0.0
          %4881 = vmatpush1.msra.mxu0 0.0
          %4882 = vmatprep.subr.mxu0 0.0
          %4883 = vmatpush1.msra.mxu0 0.0
          %4884 = vmatprep.subr.mxu0 0.0
          %4885 = vmatpush1.msra.mxu0 0.0
          %4886 = vmatprep.subr.mxu0 0.0
          %4887 = vmatpush1.msra.mxu0 0.0
          %4888 = vmatprep.subr.mxu0 0.0
          %4889 = vmatpush1.msra.mxu0 0.0
          %4890 = vmatprep.subr.mxu0 0.0
          %4891 = vmatpush1.msra.mxu0 0.0
          %4892 = vmatprep.subr.mxu0 0.0
          %4893 = vmatpush1.msra.mxu0 0.0
          %4894 = vmatprep.subr.mxu0 0.0
          %4895 = vmatpush1.msra.mxu0 0.0
          %4896 = vmatprep.subr.mxu0 0.0
          %4897 = vmatpush1.msra.mxu0 0.0
          %4898 = vmatprep.subr.mxu0 0.0
          %4899 = vmatpush1.msra.mxu0 0.0
          %4900 = vmatprep.subr.mxu0 0.0
          %4901 = vmatpush1.msra.mxu0 0.0
          %4902 = vmatprep.subr.mxu0 0.0
          %4903 = vmatpush1.msra.mxu0 0.0
          %4904 = vmatprep.subr.mxu0 0.0
          %4905 = vmatpush1.msra.mxu0 0.0
          %4906 = vmatprep.subr.mxu0 0.0
          %4907 = vmatpush1.msra.mxu0 0.0
          %4908 = vmatprep.subr.mxu0 0.0
          %4909 = vmatpush1.msra.mxu0 0.0
          %4910 = vmatprep.mubr.f32.mxu0 0.0
          %4911 = vmatmul.mubr.f32.gmra.mrb[0].mxu0 %v4774
          %v4912 = vpop.f32.mrb[0].mxu0
          %v4913 = vadd.f32 0.0, %v4912
          %v4914 = vpop.f32.mrb[0].mxu0
          %4915 = vdwg.mxu0
          %v4916 = vpack.c.bf16 %v4842, %v4842
          %v4917 = vpack.c.bf16 %v4844, %v4844
          %v4918 = vpack.c.bf16 %v4913, %v4913
          %v4919 = vld [vmem:[#allocation16] sm:$0xff]
          %v4920 = vld [vmem:[#allocation16 + $0x8] sm:$0xff]
          %v4921 = vld [vmem:[#allocation16 + $0x10] sm:$0xff]
          %v4922 = vld [vmem:[#allocation16 + $0x18] sm:$0xff]
          %v4923 = vld [vmem:[#allocation16 + $0x20] sm:$0xff]
          %v4924 = vld [vmem:[#allocation16 + $0x28] sm:$0xff]
          %v4925 = vld [vmem:[#allocation16 + $0x30] sm:$0xff]
          %v4926 = vld [vmem:[#allocation16 + $0x38] sm:$0xff]
          %v4927 = vld [vmem:[#allocation16 + $0x40] sm:$0xff]
          %v4928 = vld [vmem:[#allocation16 + $0x48] sm:$0xff]
          %v4929 = vld [vmem:[#allocation16 + $0x50] sm:$0xff]
          %v4930 = vld [vmem:[#allocation16 + $0x58] sm:$0xff]
          %v4931 = vld [vmem:[#allocation16 + $0x60] sm:$0xff]
          %v4932 = vld [vmem:[#allocation16 + $0x68] sm:$0xff]
          %v4933 = vld [vmem:[#allocation16 + $0x70] sm:$0xff]
          %v4934 = vld [vmem:[#allocation16 + $0x78] sm:$0xff]
          %v4935 = vld [vmem:[#allocation16 + $0x80] sm:$0xff]
          %v4936 = vld [vmem:[#allocation16 + $0x88] sm:$0xff]
          %v4937 = vld [vmem:[#allocation16 + $0x90] sm:$0xff]
          %v4938 = vld [vmem:[#allocation16 + $0x98] sm:$0xff]
          %v4939 = vld [vmem:[#allocation16 + $0xa0] sm:$0xff]
          %v4940 = vld [vmem:[#allocation16 + $0xa8] sm:$0xff]
          %v4941 = vld [vmem:[#allocation16 + $0xb0] sm:$0xff]
          %v4942 = vld [vmem:[#allocation16 + $0xb8] sm:$0xff]
          %v4943 = vld [vmem:[#allocation16 + $0xc0] sm:$0xff]
          %v4944 = vld [vmem:[#allocation16 + $0xc8] sm:$0xff]
          %v4945 = vld [vmem:[#allocation16 + $0xd0] sm:$0xff]
          %v4946 = vld [vmem:[#allocation16 + $0xd8] sm:$0xff]
          %v4947 = vld [vmem:[#allocation16 + $0xe0] sm:$0xff]
          %v4948 = vld [vmem:[#allocation16 + $0xe8] sm:$0xff]
          %v4949 = vld [vmem:[#allocation16 + $0xf0] sm:$0xff]
          %v4950 = vld [vmem:[#allocation16 + $0xf8] sm:$0xff]
          %v4951 = vld [vmem:[#allocation16 + $0x100] sm:$0xff]
          %v4952 = vld [vmem:[#allocation16 + $0x108] sm:$0xff]
          %v4953 = vld [vmem:[#allocation16 + $0x110] sm:$0xff]
          %v4954 = vld [vmem:[#allocation16 + $0x118] sm:$0xff]
          %v4955 = vld [vmem:[#allocation16 + $0x120] sm:$0xff]
          %v4956 = vld [vmem:[#allocation16 + $0x128] sm:$0xff]
          %v4957 = vld [vmem:[#allocation16 + $0x130] sm:$0xff]
          %v4958 = vld [vmem:[#allocation16 + $0x138] sm:$0xff]
          %v4959 = vld [vmem:[#allocation16 + $0x140] sm:$0xff]
          %v4960 = vld [vmem:[#allocation16 + $0x148] sm:$0xff]
          %v4961 = vld [vmem:[#allocation16 + $0x150] sm:$0xff]
          %v4962 = vld [vmem:[#allocation16 + $0x158] sm:$0xff]
          %v4963 = vld [vmem:[#allocation16 + $0x160] sm:$0xff]
          %v4964 = vld [vmem:[#allocation16 + $0x168] sm:$0xff]
          %v4965 = vld [vmem:[#allocation16 + $0x170] sm:$0xff]
          %v4966 = vld [vmem:[#allocation16 + $0x178] sm:$0xff]
          %v4967 = vld [vmem:[#allocation16 + $0x180] sm:$0xff]
          %v4968 = vld [vmem:[#allocation16 + $0x188] sm:$0xff]
          %v4969 = vld [vmem:[#allocation16 + $0x190] sm:$0xff]
          %v4970 = vld [vmem:[#allocation16 + $0x198] sm:$0xff]
          %v4971 = vld [vmem:[#allocation16 + $0x1a0] sm:$0xff]
          %v4972 = vld [vmem:[#allocation16 + $0x1a8] sm:$0xff]
          %v4973 = vld [vmem:[#allocation16 + $0x1b0] sm:$0xff]
          %v4974 = vld [vmem:[#allocation16 + $0x1b8] sm:$0xff]
          %v4975 = vld [vmem:[#allocation16 + $0x1c0] sm:$0xff]
          %v4976 = vld [vmem:[#allocation16 + $0x1c8] sm:$0xff]
          %v4977 = vld [vmem:[#allocation16 + $0x1d0] sm:$0xff]
          %v4978 = vld [vmem:[#allocation16 + $0x1d8] sm:$0xff]
          %v4979 = vld [vmem:[#allocation16 + $0x1e0] sm:$0xff]
          %v4980 = vld [vmem:[#allocation16 + $0x1e8] sm:$0xff]
          %v4981 = vld [vmem:[#allocation16 + $0x1f0] sm:$0xff]
          %v4982 = vld [vmem:[#allocation16 + $0x1f8] sm:$0xff]
          %v4983 = vld [vmem:[#allocation16 + $0x200] sm:$0xff]
          %v4984 = vld [vmem:[#allocation16 + $0x208] sm:$0xff]
          %v4985 = vld [vmem:[#allocation16 + $0x210] sm:$0xff]
          %v4986 = vld [vmem:[#allocation16 + $0x218] sm:$0xff]
          %v4987 = vld [vmem:[#allocation16 + $0x220] sm:$0xff]
          %v4988 = vld [vmem:[#allocation16 + $0x228] sm:$0xff]
          %v4989 = vld [vmem:[#allocation16 + $0x230] sm:$0xff]
          %v4990 = vld [vmem:[#allocation16 + $0x238] sm:$0xff]
          %v4991 = vld [vmem:[#allocation16 + $0x240] sm:$0xff]
          %v4992 = vld [vmem:[#allocation16 + $0x248] sm:$0xff]
          %v4993 = vld [vmem:[#allocation16 + $0x250] sm:$0xff]
          %v4994 = vld [vmem:[#allocation16 + $0x258] sm:$0xff]
          %v4995 = vld [vmem:[#allocation16 + $0x260] sm:$0xff]
          %v4996 = vld [vmem:[#allocation16 + $0x268] sm:$0xff]
          %v4997 = vld [vmem:[#allocation16 + $0x270] sm:$0xff]
          %v4998 = vld [vmem:[#allocation16 + $0x278] sm:$0xff]
          %v4999 = vld [vmem:[#allocation16 + $0x280] sm:$0xff]
          %v5000 = vld [vmem:[#allocation16 + $0x288] sm:$0xff]
          %v5001 = vld [vmem:[#allocation16 + $0x290] sm:$0xff]
          %v5002 = vld [vmem:[#allocation16 + $0x298] sm:$0xff]
          %v5003 = vld [vmem:[#allocation16 + $0x2a0] sm:$0xff]
          %v5004 = vld [vmem:[#allocation16 + $0x2a8] sm:$0xff]
          %v5005 = vld [vmem:[#allocation16 + $0x2b0] sm:$0xff]
          %v5006 = vld [vmem:[#allocation16 + $0x2b8] sm:$0xff]
          %v5007 = vld [vmem:[#allocation16 + $0x2c0] sm:$0xff]
          %v5008 = vld [vmem:[#allocation16 + $0x2c8] sm:$0xff]
          %v5009 = vld [vmem:[#allocation16 + $0x2d0] sm:$0xff]
          %v5010 = vld [vmem:[#allocation16 + $0x2d8] sm:$0xff]
          %v5011 = vld [vmem:[#allocation16 + $0x2e0] sm:$0xff]
          %v5012 = vld [vmem:[#allocation16 + $0x2e8] sm:$0xff]
          %v5013 = vld [vmem:[#allocation16 + $0x2f0] sm:$0xff]
          %v5014 = vld [vmem:[#allocation16 + $0x2f8] sm:$0xff]
          %v5015 = vld [vmem:[#allocation18] sm:$0xf]
          %v5017 = vlaneseq
          %v5018 = vshrl.u32 %v5017, 7
          %v5019 = vsub.s32 0, %v5018
          %v5020 = vrot.slane %v5015, %v5019
          %v5021 = vlaneseq
          %v5022 = vshrl.u32 %v5021, 7
          %v5023 = vsub.s32 1, %v5022
          %v5024 = vrot.slane %v5015, %v5023
          %v5025 = vlaneseq
          %v5026 = vshrl.u32 %v5025, 7
          %v5027 = vsub.s32 2, %v5026
          %v5028 = vrot.slane %v5015, %v5027
          %v5029 = vlaneseq
          %v5030 = vshrl.u32 %v5029, 7
          %v5031 = vsub.s32 3, %v5030
          %v5032 = vrot.slane %v5015, %v5031
          %v5133 = vunpack.c.l.b16 %v4919
          %v5134 = vunpack.c.h.b16 %v4919
          %v5135 = vunpack.c.l.b16 %v4920
          %v5136 = vunpack.c.h.b16 %v4920
          %v5137 = vunpack.c.l.b16 %v4921
          %v5138 = vunpack.c.h.b16 %v4921
          %v5139 = vunpack.c.l.b16 %v4922
          %v5140 = vunpack.c.h.b16 %v4922
          %v5141 = vunpack.c.l.b16 %v4923
          %v5142 = vunpack.c.h.b16 %v4923
          %v5143 = vunpack.c.l.b16 %v4924
          %v5144 = vunpack.c.h.b16 %v4924
          %v5145 = vunpack.c.l.b16 %v4925
          %v5146 = vunpack.c.h.b16 %v4925
          %v5147 = vunpack.c.l.b16 %v4926
          %v5148 = vunpack.c.h.b16 %v4926
          %v5149 = vunpack.c.l.b16 %v4927
          %v5150 = vunpack.c.h.b16 %v4927
          %v5151 = vunpack.c.l.b16 %v4928
          %v5152 = vunpack.c.h.b16 %v4928
          %v5153 = vunpack.c.l.b16 %v4929
          %v5154 = vunpack.c.h.b16 %v4929
          %v5155 = vunpack.c.l.b16 %v4930
          %v5156 = vunpack.c.h.b16 %v4930
          %v5157 = vunpack.c.l.b16 %v4931
          %v5158 = vunpack.c.h.b16 %v4931
          %v5159 = vunpack.c.l.b16 %v4932
          %v5160 = vunpack.c.h.b16 %v4932
          %v5161 = vunpack.c.l.b16 %v4933
          %v5162 = vunpack.c.h.b16 %v4933
          %v5163 = vunpack.c.l.b16 %v4934
          %v5164 = vunpack.c.h.b16 %v4934
          %v5165 = vunpack.c.l.b16 %v4935
          %v5166 = vunpack.c.h.b16 %v4935
          %v5167 = vunpack.c.l.b16 %v4936
          %v5168 = vunpack.c.h.b16 %v4936
          %v5169 = vunpack.c.l.b16 %v4937
          %v5170 = vunpack.c.h.b16 %v4937
          %v5171 = vunpack.c.l.b16 %v4938
          %v5172 = vunpack.c.h.b16 %v4938
          %v5173 = vunpack.c.l.b16 %v4939
          %v5174 = vunpack.c.h.b16 %v4939
          %v5175 = vunpack.c.l.b16 %v4940
          %v5176 = vunpack.c.h.b16 %v4940
          %v5177 = vunpack.c.l.b16 %v4941
          %v5178 = vunpack.c.h.b16 %v4941
          %v5179 = vunpack.c.l.b16 %v4942
          %v5180 = vunpack.c.h.b16 %v4942
          %v5181 = vunpack.c.l.b16 %v4943
          %v5182 = vunpack.c.h.b16 %v4943
          %v5183 = vunpack.c.l.b16 %v4944
          %v5184 = vunpack.c.h.b16 %v4944
          %v5185 = vunpack.c.l.b16 %v4945
          %v5186 = vunpack.c.h.b16 %v4945
          %v5187 = vunpack.c.l.b16 %v4946
          %v5188 = vunpack.c.h.b16 %v4946
          %v5189 = vunpack.c.l.b16 %v4947
          %v5190 = vunpack.c.h.b16 %v4947
          %v5191 = vunpack.c.l.b16 %v4948
          %v5192 = vunpack.c.h.b16 %v4948
          %v5193 = vunpack.c.l.b16 %v4949
          %v5194 = vunpack.c.h.b16 %v4949
          %v5195 = vunpack.c.l.b16 %v4950
          %v5196 = vunpack.c.h.b16 %v4950
          %v5197 = vunpack.c.l.b16 %v4951
          %v5198 = vunpack.c.h.b16 %v4951
          %v5199 = vunpack.c.l.b16 %v4952
          %v5200 = vunpack.c.h.b16 %v4952
          %v5201 = vunpack.c.l.b16 %v4953
          %v5202 = vunpack.c.h.b16 %v4953
          %v5203 = vunpack.c.l.b16 %v4954
          %v5204 = vunpack.c.h.b16 %v4954
          %v5205 = vunpack.c.l.b16 %v4955
          %v5206 = vunpack.c.h.b16 %v4955
          %v5207 = vunpack.c.l.b16 %v4956
          %v5208 = vunpack.c.h.b16 %v4956
          %v5209 = vunpack.c.l.b16 %v4957
          %v5210 = vunpack.c.h.b16 %v4957
          %v5211 = vunpack.c.l.b16 %v4958
          %v5212 = vunpack.c.h.b16 %v4958
          %v5213 = vunpack.c.l.b16 %v4959
          %v5214 = vunpack.c.h.b16 %v4959
          %v5215 = vunpack.c.l.b16 %v4960
          %v5216 = vunpack.c.h.b16 %v4960
          %v5217 = vunpack.c.l.b16 %v4961
          %v5218 = vunpack.c.h.b16 %v4961
          %v5219 = vunpack.c.l.b16 %v4962
          %v5220 = vunpack.c.h.b16 %v4962
          %v5221 = vunpack.c.l.b16 %v4963
          %v5222 = vunpack.c.h.b16 %v4963
          %v5223 = vunpack.c.l.b16 %v4964
          %v5224 = vunpack.c.h.b16 %v4964
          %v5225 = vunpack.c.l.b16 %v4965
          %v5226 = vunpack.c.h.b16 %v4965
          %v5227 = vunpack.c.l.b16 %v4966
          %v5228 = vunpack.c.h.b16 %v4966
          %v5229 = vunpack.c.l.b16 %v4967
          %v5230 = vunpack.c.h.b16 %v4967
          %v5231 = vunpack.c.l.b16 %v4968
          %v5232 = vunpack.c.h.b16 %v4968
          %v5233 = vunpack.c.l.b16 %v4969
          %v5234 = vunpack.c.h.b16 %v4969
          %v5235 = vunpack.c.l.b16 %v4970
          %v5236 = vunpack.c.h.b16 %v4970
          %v5237 = vunpack.c.l.b16 %v4971
          %v5238 = vunpack.c.h.b16 %v4971
          %v5239 = vunpack.c.l.b16 %v4972
          %v5240 = vunpack.c.h.b16 %v4972
          %v5241 = vunpack.c.l.b16 %v4973
          %v5242 = vunpack.c.h.b16 %v4973
          %v5243 = vunpack.c.l.b16 %v4974
          %v5244 = vunpack.c.h.b16 %v4974
          %v5245 = vunpack.c.l.b16 %v4975
          %v5246 = vunpack.c.h.b16 %v4975
          %v5247 = vunpack.c.l.b16 %v4976
          %v5248 = vunpack.c.h.b16 %v4976
          %v5249 = vunpack.c.l.b16 %v4977
          %v5250 = vunpack.c.h.b16 %v4977
          %v5251 = vunpack.c.l.b16 %v4978
          %v5252 = vunpack.c.h.b16 %v4978
          %v5253 = vunpack.c.l.b16 %v4979
          %v5254 = vunpack.c.h.b16 %v4979
          %v5255 = vunpack.c.l.b16 %v4980
          %v5256 = vunpack.c.h.b16 %v4980
          %v5257 = vunpack.c.l.b16 %v4981
          %v5258 = vunpack.c.h.b16 %v4981
          %v5259 = vunpack.c.l.b16 %v4982
          %v5260 = vunpack.c.h.b16 %v4982
          %v5261 = vunpack.c.l.b16 %v4983
          %v5262 = vunpack.c.h.b16 %v4983
          %v5263 = vunpack.c.l.b16 %v4984
          %v5264 = vunpack.c.h.b16 %v4984
          %v5265 = vunpack.c.l.b16 %v4985
          %v5266 = vunpack.c.h.b16 %v4985
          %v5267 = vunpack.c.l.b16 %v4986
          %v5268 = vunpack.c.h.b16 %v4986
          %v5269 = vunpack.c.l.b16 %v4987
          %v5270 = vunpack.c.h.b16 %v4987
          %v5271 = vunpack.c.l.b16 %v4988
          %v5272 = vunpack.c.h.b16 %v4988
          %v5273 = vunpack.c.l.b16 %v4989
          %v5274 = vunpack.c.h.b16 %v4989
          %v5275 = vunpack.c.l.b16 %v4990
          %v5276 = vunpack.c.h.b16 %v4990
          %v5277 = vunpack.c.l.b16 %v4991
          %v5278 = vunpack.c.h.b16 %v4991
          %v5279 = vunpack.c.l.b16 %v4992
          %v5280 = vunpack.c.h.b16 %v4992
          %v5281 = vunpack.c.l.b16 %v4993
          %v5282 = vunpack.c.h.b16 %v4993
          %v5283 = vunpack.c.l.b16 %v4994
          %v5284 = vunpack.c.h.b16 %v4994
          %v5285 = vunpack.c.l.b16 %v4995
          %v5286 = vunpack.c.h.b16 %v4995
          %v5287 = vunpack.c.l.b16 %v4996
          %v5288 = vunpack.c.h.b16 %v4996
          %v5289 = vunpack.c.l.b16 %v4997
          %v5290 = vunpack.c.h.b16 %v4997
          %v5291 = vunpack.c.l.b16 %v4998
          %v5292 = vunpack.c.h.b16 %v4998
          %v5293 = vunpack.c.l.b16 %v4999
          %v5294 = vunpack.c.h.b16 %v4999
          %v5295 = vunpack.c.l.b16 %v5000
          %v5296 = vunpack.c.h.b16 %v5000
          %v5297 = vunpack.c.l.b16 %v5001
          %v5298 = vunpack.c.h.b16 %v5001
          %v5299 = vunpack.c.l.b16 %v5002
          %v5300 = vunpack.c.h.b16 %v5002
          %v5301 = vunpack.c.l.b16 %v5003
          %v5302 = vunpack.c.h.b16 %v5003
          %v5303 = vunpack.c.l.b16 %v5004
          %v5304 = vunpack.c.h.b16 %v5004
          %v5305 = vunpack.c.l.b16 %v5005
          %v5306 = vunpack.c.h.b16 %v5005
          %v5307 = vunpack.c.l.b16 %v5006
          %v5308 = vunpack.c.h.b16 %v5006
          %v5309 = vunpack.c.l.b16 %v5007
          %v5310 = vunpack.c.h.b16 %v5007
          %v5311 = vunpack.c.l.b16 %v5008
          %v5312 = vunpack.c.h.b16 %v5008
          %v5313 = vunpack.c.l.b16 %v5009
          %v5314 = vunpack.c.h.b16 %v5009
          %v5315 = vunpack.c.l.b16 %v5010
          %v5316 = vunpack.c.h.b16 %v5010
          %v5317 = vunpack.c.l.b16 %v5011
          %v5318 = vunpack.c.h.b16 %v5011
          %v5319 = vunpack.c.l.b16 %v5012
          %v5320 = vunpack.c.h.b16 %v5012
          %v5321 = vunpack.c.l.b16 %v5013
          %v5322 = vunpack.c.h.b16 %v5013
          %v5323 = vunpack.c.l.b16 %v5014
          %v5324 = vunpack.c.h.b16 %v5014
          %v5325 = vpack.c.b16 %v5137, %v5133
          %v5326 = vpack.c.b16 %v5138, %v5134
          %v5327 = vpack.c.b16 %v5139, %v5135
          %v5328 = vpack.c.b16 %v5140, %v5136
          %v5329 = vpack.c.b16 %v5145, %v5141
          %v5330 = vpack.c.b16 %v5146, %v5142
          %v5331 = vpack.c.b16 %v5147, %v5143
          %v5332 = vpack.c.b16 %v5148, %v5144
          %v5333 = vpack.c.b16 %v5153, %v5149
          %v5334 = vpack.c.b16 %v5154, %v5150
          %v5335 = vpack.c.b16 %v5155, %v5151
          %v5336 = vpack.c.b16 %v5156, %v5152
          %v5337 = vpack.c.b16 %v5161, %v5157
          %v5338 = vpack.c.b16 %v5162, %v5158
          %v5339 = vpack.c.b16 %v5163, %v5159
          %v5340 = vpack.c.b16 %v5164, %v5160
          %v5341 = vpack.c.b16 %v5169, %v5165
          %v5342 = vpack.c.b16 %v5170, %v5166
          %v5343 = vpack.c.b16 %v5171, %v5167
          %v5344 = vpack.c.b16 %v5172, %v5168
          %v5345 = vpack.c.b16 %v5177, %v5173
          %v5346 = vpack.c.b16 %v5178, %v5174
          %v5347 = vpack.c.b16 %v5179, %v5175
          %v5348 = vpack.c.b16 %v5180, %v5176
          %v5349 = vpack.c.b16 %v5185, %v5181
          %v5350 = vpack.c.b16 %v5186, %v5182
          %v5351 = vpack.c.b16 %v5187, %v5183
          %v5352 = vpack.c.b16 %v5188, %v5184
          %v5353 = vpack.c.b16 %v5193, %v5189
          %v5354 = vpack.c.b16 %v5194, %v5190
          %v5355 = vpack.c.b16 %v5195, %v5191
          %v5356 = vpack.c.b16 %v5196, %v5192
          %v5357 = vpack.c.b16 %v5201, %v5197
          %v5358 = vpack.c.b16 %v5202, %v5198
          %v5359 = vpack.c.b16 %v5203, %v5199
          %v5360 = vpack.c.b16 %v5204, %v5200
          %v5361 = vpack.c.b16 %v5209, %v5205
          %v5362 = vpack.c.b16 %v5210, %v5206
          %v5363 = vpack.c.b16 %v5211, %v5207
          %v5364 = vpack.c.b16 %v5212, %v5208
          %v5365 = vpack.c.b16 %v5217, %v5213
          %v5366 = vpack.c.b16 %v5218, %v5214
          %v5367 = vpack.c.b16 %v5219, %v5215
          %v5368 = vpack.c.b16 %v5220, %v5216
          %v5369 = vpack.c.b16 %v5225, %v5221
          %v5370 = vpack.c.b16 %v5226, %v5222
          %v5371 = vpack.c.b16 %v5227, %v5223
          %v5372 = vpack.c.b16 %v5228, %v5224
          %v5373 = vpack.c.b16 %v5233, %v5229
          %v5374 = vpack.c.b16 %v5234, %v5230
          %v5375 = vpack.c.b16 %v5235, %v5231
          %v5376 = vpack.c.b16 %v5236, %v5232
          %v5377 = vpack.c.b16 %v5241, %v5237
          %v5378 = vpack.c.b16 %v5242, %v5238
          %v5379 = vpack.c.b16 %v5243, %v5239
          %v5380 = vpack.c.b16 %v5244, %v5240
          %v5381 = vpack.c.b16 %v5249, %v5245
          %v5382 = vpack.c.b16 %v5250, %v5246
          %v5383 = vpack.c.b16 %v5251, %v5247
          %v5384 = vpack.c.b16 %v5252, %v5248
          %v5385 = vpack.c.b16 %v5257, %v5253
          %v5386 = vpack.c.b16 %v5258, %v5254
          %v5387 = vpack.c.b16 %v5259, %v5255
          %v5388 = vpack.c.b16 %v5260, %v5256
          %v5389 = vpack.c.b16 %v5265, %v5261
          %v5390 = vpack.c.b16 %v5266, %v5262
          %v5391 = vpack.c.b16 %v5267, %v5263
          %v5392 = vpack.c.b16 %v5268, %v5264
          %v5393 = vpack.c.b16 %v5273, %v5269
          %v5394 = vpack.c.b16 %v5274, %v5270
          %v5395 = vpack.c.b16 %v5275, %v5271
          %v5396 = vpack.c.b16 %v5276, %v5272
          %v5397 = vpack.c.b16 %v5281, %v5277
          %v5398 = vpack.c.b16 %v5282, %v5278
          %v5399 = vpack.c.b16 %v5283, %v5279
          %v5400 = vpack.c.b16 %v5284, %v5280
          %v5401 = vpack.c.b16 %v5289, %v5285
          %v5402 = vpack.c.b16 %v5290, %v5286
          %v5403 = vpack.c.b16 %v5291, %v5287
          %v5404 = vpack.c.b16 %v5292, %v5288
          %v5405 = vpack.c.b16 %v5297, %v5293
          %v5406 = vpack.c.b16 %v5298, %v5294
          %v5407 = vpack.c.b16 %v5299, %v5295
          %v5408 = vpack.c.b16 %v5300, %v5296
          %v5409 = vpack.c.b16 %v5305, %v5301
          %v5410 = vpack.c.b16 %v5306, %v5302
          %v5411 = vpack.c.b16 %v5307, %v5303
          %v5412 = vpack.c.b16 %v5308, %v5304
          %v5413 = vpack.c.b16 %v5313, %v5309
          %v5414 = vpack.c.b16 %v5314, %v5310
          %v5415 = vpack.c.b16 %v5315, %v5311
          %v5416 = vpack.c.b16 %v5316, %v5312
          %v5417 = vpack.c.b16 %v5321, %v5317
          %v5418 = vpack.c.b16 %v5322, %v5318
          %v5419 = vpack.c.b16 %v5323, %v5319
          %v5420 = vpack.c.b16 %v5324, %v5320
          %5517 = vmatprep.subr.bf16.mxu0 %v5326
          %5518 = vmatpush1.bf16.msra.mxu0 %v5325
          %5519 = vmatprep.subr.bf16.mxu0 %v5330
          %5520 = vmatpush1.bf16.msra.mxu0 %v5329
          %5521 = vmatprep.subr.bf16.mxu0 %v5334
          %5522 = vmatpush1.bf16.msra.mxu0 %v5333
          %5523 = vmatprep.subr.bf16.mxu0 %v5338
          %5524 = vmatpush1.bf16.msra.mxu0 %v5337
          %5525 = vmatprep.subr.bf16.mxu0 %v5342
          %5526 = vmatpush1.bf16.msra.mxu0 %v5341
          %5527 = vmatprep.subr.bf16.mxu0 %v5346
          %5528 = vmatpush1.bf16.msra.mxu0 %v5345
          %5529 = vmatprep.subr.bf16.mxu0 %v5350
          %5530 = vmatpush1.bf16.msra.mxu0 %v5349
          %5531 = vmatprep.subr.bf16.mxu0 %v5354
          %5532 = vmatpush1.bf16.msra.mxu0 %v5353
          %5533 = vmatprep.subr.bf16.mxu0 %v5358
          %5534 = vmatpush1.bf16.msra.mxu0 %v5357
          %5535 = vmatprep.subr.bf16.mxu0 %v5362
          %5536 = vmatpush1.bf16.msra.mxu0 %v5361
          %5537 = vmatprep.subr.bf16.mxu0 %v5366
          %5538 = vmatpush1.bf16.msra.mxu0 %v5365
          %5539 = vmatprep.subr.bf16.mxu0 %v5370
          %5540 = vmatpush1.bf16.msra.mxu0 %v5369
          %5541 = vmatprep.subr.bf16.mxu0 %v5374
          %5542 = vmatpush1.bf16.msra.mxu0 %v5373
          %5543 = vmatprep.subr.bf16.mxu0 %v5378
          %5544 = vmatpush1.bf16.msra.mxu0 %v5377
          %5545 = vmatprep.subr.bf16.mxu0 %v5382
          %5546 = vmatpush1.bf16.msra.mxu0 %v5381
          %5547 = vmatprep.subr.bf16.mxu0 %v5386
          %5548 = vmatpush1.bf16.msra.mxu0 %v5385
          %5549 = vmatprep.mubr.bf16.mxu0 %v4917
          %5550 = vmatmul.mubr.bf16.gmra.mrb[0].mxu0 %v4916
          %v5551 = vpop.f32.mrb[0].mxu0
          %v5552 = vadd.f32 %v5020, %v5551
          %v5553 = vpop.f32.mrb[0].mxu0
          %v5554 = vadd.f32 %v5024, %v5553
          %v5555 = vpop.f32.mrb[0].mxu0
          %v5556 = vpop.f32.mrb[0].mxu0
          %5557 = vdwg.mxu0
          %5558 = vmatprep.subr.bf16.mxu0 %v5390
          %5559 = vmatpush1.bf16.msra.mxu0 %v5389
          %5560 = vmatprep.subr.bf16.mxu0 %v5394
          %5561 = vmatpush1.bf16.msra.mxu0 %v5393
          %5562 = vmatprep.subr.bf16.mxu0 %v5398
          %5563 = vmatpush1.bf16.msra.mxu0 %v5397
          %5564 = vmatprep.subr.bf16.mxu0 %v5402
          %5565 = vmatpush1.bf16.msra.mxu0 %v5401
          %5566 = vmatprep.subr.bf16.mxu0 %v5406
          %5567 = vmatpush1.bf16.msra.mxu0 %v5405
          %5568 = vmatprep.subr.bf16.mxu0 %v5410
          %5569 = vmatpush1.bf16.msra.mxu0 %v5409
          %5570 = vmatprep.subr.bf16.mxu0 %v5414
          %5571 = vmatpush1.bf16.msra.mxu0 %v5413
          %5572 = vmatprep.subr.bf16.mxu0 %v5418
          %5573 = vmatpush1.bf16.msra.mxu0 %v5417
          %5574 = vmatprep.subr.bf16.mxu0 0
          %5575 = vmatpush1.bf16.msra.mxu0 0
          %5576 = vmatprep.subr.bf16.mxu0 0
          %5577 = vmatpush1.bf16.msra.mxu0 0
          %5578 = vmatprep.subr.bf16.mxu0 0
          %5579 = vmatpush1.bf16.msra.mxu0 0
          %5580 = vmatprep.subr.bf16.mxu0 0
          %5581 = vmatpush1.bf16.msra.mxu0 0
          %5582 = vmatprep.subr.bf16.mxu0 0
          %5583 = vmatpush1.bf16.msra.mxu0 0
          %5584 = vmatprep.subr.bf16.mxu0 0
          %5585 = vmatpush1.bf16.msra.mxu0 0
          %5586 = vmatprep.subr.bf16.mxu0 0
          %5587 = vmatpush1.bf16.msra.mxu0 0
          %5588 = vmatprep.subr.bf16.mxu0 0
          %5589 = vmatpush1.bf16.msra.mxu0 0
          %5590 = vmatprep.mubr.bf16.mxu0 0
          %5591 = vmatmul.mubr.bf16.gmra.mrb[0].mxu0 %v4918
          %v5592 = vpop.f32.mrb[0].mxu0
          %v5593 = vadd.f32 %v5552, %v5592
          %v5594 = vpop.f32.mrb[0].mxu0
          %v5595 = vadd.f32 %v5554, %v5594
          %v5596 = vpop.f32.mrb[0].mxu0
          %v5597 = vpop.f32.mrb[0].mxu0
          %5598 = vdwg.mxu0
          %5599 = vmatprep.subr.bf16.mxu0 %v5328
          %5600 = vmatpush1.bf16.msra.mxu0 %v5327
          %5601 = vmatprep.subr.bf16.mxu0 %v5332
          %5602 = vmatpush1.bf16.msra.mxu0 %v5331
          %5603 = vmatprep.subr.bf16.mxu0 %v5336
          %5604 = vmatpush1.bf16.msra.mxu0 %v5335
          %5605 = vmatprep.subr.bf16.mxu0 %v5340
          %5606 = vmatpush1.bf16.msra.mxu0 %v5339
          %5607 = vmatprep.subr.bf16.mxu0 %v5344
          %5608 = vmatpush1.bf16.msra.mxu0 %v5343
          %5609 = vmatprep.subr.bf16.mxu0 %v5348
          %5610 = vmatpush1.bf16.msra.mxu0 %v5347
          %5611 = vmatprep.subr.bf16.mxu0 %v5352
          %5612 = vmatpush1.bf16.msra.mxu0 %v5351
          %5613 = vmatprep.subr.bf16.mxu0 %v5356
          %5614 = vmatpush1.bf16.msra.mxu0 %v5355
          %5615 = vmatprep.subr.bf16.mxu0 %v5360
          %5616 = vmatpush1.bf16.msra.mxu0 %v5359
          %5617 = vmatprep.subr.bf16.mxu0 %v5364
          %5618 = vmatpush1.bf16.msra.mxu0 %v5363
          %5619 = vmatprep.subr.bf16.mxu0 %v5368
          %5620 = vmatpush1.bf16.msra.mxu0 %v5367
          %5621 = vmatprep.subr.bf16.mxu0 %v5372
          %5622 = vmatpush1.bf16.msra.mxu0 %v5371
          %5623 = vmatprep.subr.bf16.mxu0 %v5376
          %5624 = vmatpush1.bf16.msra.mxu0 %v5375
          %5625 = vmatprep.subr.bf16.mxu0 %v5380
          %5626 = vmatpush1.bf16.msra.mxu0 %v5379
          %5627 = vmatprep.subr.bf16.mxu0 %v5384
          %5628 = vmatpush1.bf16.msra.mxu0 %v5383
          %5629 = vmatprep.subr.bf16.mxu0 %v5388
          %5630 = vmatpush1.bf16.msra.mxu0 %v5387
          %5631 = vmatprep.mubr.bf16.mxu0 %v4917
          %5632 = vmatmul.mubr.bf16.gmra.mrb[0].mxu0 %v4916
          %v5633 = vpop.f32.mrb[0].mxu0
          %v5634 = vadd.f32 %v5028, %v5633
          %v5635 = vpop.f32.mrb[0].mxu0
          %v5636 = vadd.f32 %v5032, %v5635
          %v5637 = vpop.f32.mrb[0].mxu0
          %v5638 = vpop.f32.mrb[0].mxu0
          %5639 = vdwg.mxu0
          %5640 = vmatprep.subr.bf16.mxu0 %v5392
          %5641 = vmatpush1.bf16.msra.mxu0 %v5391
          %5642 = vmatprep.subr.bf16.mxu0 %v5396
          %5643 = vmatpush1.bf16.msra.mxu0 %v5395
          %5644 = vmatprep.subr.bf16.mxu0 %v5400
          %5645 = vmatpush1.bf16.msra.mxu0 %v5399
          %5646 = vmatprep.subr.bf16.mxu0 %v5404
          %5647 = vmatpush1.bf16.msra.mxu0 %v5403
          %5648 = vmatprep.subr.bf16.mxu0 %v5408
          %5649 = vmatpush1.bf16.msra.mxu0 %v5407
          %5650 = vmatprep.subr.bf16.mxu0 %v5412
          %5651 = vmatpush1.bf16.msra.mxu0 %v5411
          %5652 = vmatprep.subr.bf16.mxu0 %v5416
          %5653 = vmatpush1.bf16.msra.mxu0 %v5415
          %5654 = vmatprep.subr.bf16.mxu0 %v5420
          %5655 = vmatpush1.bf16.msra.mxu0 %v5419
          %5656 = vmatprep.subr.bf16.mxu0 0
          %5657 = vmatpush1.bf16.msra.mxu0 0
          %5658 = vmatprep.subr.bf16.mxu0 0
          %5659 = vmatpush1.bf16.msra.mxu0 0
          %5660 = vmatprep.subr.bf16.mxu0 0
          %5661 = vmatpush1.bf16.msra.mxu0 0
          %5662 = vmatprep.subr.bf16.mxu0 0
          %5663 = vmatpush1.bf16.msra.mxu0 0
          %5664 = vmatprep.subr.bf16.mxu0 0
          %5665 = vmatpush1.bf16.msra.mxu0 0
          %5666 = vmatprep.subr.bf16.mxu0 0
          %5667 = vmatpush1.bf16.msra.mxu0 0
          %5668 = vmatprep.subr.bf16.mxu0 0
          %5669 = vmatpush1.bf16.msra.mxu0 0
          %5670 = vmatprep.subr.bf16.mxu0 0
          %5671 = vmatpush1.bf16.msra.mxu0 0
          %5672 = vmatprep.mubr.bf16.mxu0 0
          %5673 = vmatmul.mubr.bf16.gmra.mrb[0].mxu0 %v4918
          %v5674 = vpop.f32.mrb[0].mxu0
          %v5675 = vadd.f32 %v5634, %v5674
          %v5676 = vpop.f32.mrb[0].mxu0
          %v5677 = vadd.f32 %v5636, %v5676
          %v5678 = vpop.f32.mrb[0].mxu0
          %v5679 = vpop.f32.mrb[0].mxu0
          %5680 = vdwg.mxu0
          %5681 = vst [vmem:[#allocation19] sm:$0xff] %v5593
          %5682 = vst [vmem:[#allocation19 + $0x8] sm:$0xff] %v5595
          %5683 = vst [vmem:[#allocation19 + $0x10] sm:$0xff] %v5675
          %5684 = vst [vmem:[#allocation19 + $0x18] sm:$0xff] %v5677
        $region124: #{tpu_custom_call.1} parent=67 // pred_fallthru
          _
        // Predicated region
        $region125: #{tpu_custom_call.1} parent=67 // pred_check
          %p5685 = pneg %p327
        $region126: #{tpu_custom_call.1} parent=67 // pred_check_branch
          %5687 = sbr.rel (%p5685) target = $region128
        $region127: #{tpu_custom_call.1} parent=67 // pred_region
          %s5689 = ssub.s32 512, 512
          %5690 = vsyncadd [#allocation5], %s5689
          %s5692 = sshll.u32 [#allocation19], 4
          %s5693 = int_to_ptr.vmem [resolvable:$true] %s5692
          %5695 = dma.vmem_to_hbm [thread:$0]  %s5693, 512, %s12, [#allocation5]
        $region128: #{tpu_custom_call.1} parent=67 // pred_fallthru
          _
        // Predicated region
        $region129: #{tpu_custom_call.1} parent=67 // pred_check
          %p5696 = pneg %p327
        $region130: #{tpu_custom_call.1} parent=67 // pred_check_branch
          %5698 = sbr.rel (%p5696) target = $region132
        $region131: #{tpu_custom_call.1} parent=67 // pred_region
          %5699 = dma.done [#allocation5], 512
        $region132: #{tpu_custom_call.1} parent=67 // pred_fallthru
          _
      $region68: #{tpu_custom_call.1} parent=5 // pred_fallthru
        _
      %p5700 = scmp.le.s32.totalorder 2, %s22
      // Predicated region
      $region133: #{tpu_custom_call.1} parent=5 // pred_check
        %p5701 = pneg %p5700
      $region134: #{tpu_custom_call.1} parent=5 // pred_check_branch
        %5703 = sbr.rel (%p5701) target = $region136
      $region135: #{tpu_custom_call.1} parent=5 // pred_region
        %s5704 = ssub.s32 %s22, 2
      $region136: #{tpu_custom_call.1} parent=5 // pred_fallthru
        _
    $region6: #{tpu_custom_call.1} parent=1 // loop_footer
      %s26 = sadd.s32 1, %s22
    $region7: #{tpu_custom_call.1} parent=1 // loop_footer_branch
      %21 = sbr.rel target = $region3
    $region8: #{tpu_custom_call.1} parent=1 // loop_exit
      _
    %5705 = vsyncpa [#allocation4], 1
    %s5706 = scalar_lea.sflag [#allocation4], 1
    %5707 = vsyncpa %s5706, 1
    %5708 = vsyncpa [#allocation7], 1
    %5709 = vsyncpa [#allocation17], 1
    %5710 = vsyncpa [#allocation5], 1
    %s5711 = scalar_lea.sflag [#allocation5], 1
    %5712 = vsyncpa %s5711, 1

</llo_original>
